<compile_context>
chip_gen: v7x
topology: tpu7x:2x2x1
jax: 0.10.0
libtpu: 0.0.40
codegen_flags: <defaults>
</compile_context>

<pallas_src>
import math

import jax
import jax.numpy as jnp
from jax import lax
from jax.experimental import pallas as pl
from jax.experimental.pallas import tpu as pltpu


def _harmonic_kernel(x_ref, freq_ref, out_ref):
    # x_ref:    (tm, dim)            rows of the flattened input
    # freq_ref: (1, dim*n_harm)      frequencies tiled per input column:
    #                                freq_row[0, j*H + k] = omega0 * 2**k
    # out_ref:  (tm, 2*dim*n_harm)
    x = x_ref[...]                       # (tm, dim)
    freq_row = freq_ref[...]             # (1, half)
    tm, dim = x.shape
    half = freq_row.shape[1]
    n_harm = half // dim

    # Build the (tm, half) replicated argument directly in lane space:
    # lane l holds column (l // n_harm) of x.  Constant lane-iota + (dim-1)
    # VPU selects; every lane is an exact bit-copy of an x value (no
    # arithmetic), so the single f32 multiply below is bit-identical to the
    # reference's x[..., None] * frequencies.  No (tm, dim, H) intermediate,
    # no cross-tile relayout.
    lane = lax.broadcasted_iota(jnp.int32, (tm, half), dimension=1)
    x_rep = jnp.broadcast_to(x[:, 0:1], (tm, half))
    for j in range(1, dim):
        xj = jnp.broadcast_to(x[:, j:j + 1], (tm, half))
        # lanes >= j*n_harm take column j; later (larger j) selects overwrite.
        x_rep = jnp.where(lane >= j * n_harm, xj, x_rep)

    embed = x_rep * freq_row             # (tm, half), exact, lane-dense

    # Single full-block, offset-0, lane-dense store of the whole output tile.
    # (Review opt #2: keep the in-VMEM concat unless a dump shows it copies.)
    out = jnp.concatenate((jnp.sin(embed), jnp.cos(embed)), axis=-1)
    out_ref[...] = out.astype(out_ref.dtype)


def harmonic_embedding(x, n_harmonic_functions=60, omega0=0.1, *,
                       tm=1024, out_dtype=jnp.float32):
    """Pallas TPU HarmonicEmbedding forward.  x: [..., dim] float32.

    tm:        row-tile size (sweepable; 512-2048 is the sweet spot on the
               128 MiB-VMEM parts; the wrapper auto-caps it for VMEM safety
               and for >=2 grid steps per TensorCore).
    out_dtype: keep float32 to match the reference bit-for-bit; bf16 halves
               the dominant output writeback traffic (most valuable on v5e)
               if the consumer tolerates it.
    """
    x = jnp.asarray(x, dtype=jnp.float32)
    *lead, dim = x.shape
    n_harm = int(n_harmonic_functions)
    half = dim * n_harm
    out_last = 2 * half

    # Deterministic "buffer" (same values as register_buffer in __init__),
    # tiled once per input column so the in-kernel multiply is lane-dense.
    freqs = omega0 * (2.0 ** jnp.arange(n_harm, dtype=jnp.float32))
    freq_row = jnp.tile(freqs, (dim,)).reshape(1, half)

    n_rows = math.prod(lead) if lead else 1
    x2d = x.reshape(n_rows, dim)

    # --- row-tile choice -------------------------------------------------
    # 1) honour the request, rounded to a multiple of 8.
    tm_req = max(8, (int(tm) // 8) * 8)
    # 2) keep >= ~4 grid steps when possible (>= 2 per TC under megacore
    #    sharding on v7x); costs at most a few ~0.35 us steps elsewhere.
    tm_steps_cap = max(8, 8 * pl.cdiv(n_rows, 8 * 4))
    # 3) VMEM budget including in-kernel temporaries (x_rep, embed, sin, cos,
    #    concat) and the double-buffered output block; keeps large tm requests
    #    safe under v7x's 32 MiB scoped default.
    out_bytes = jnp.dtype(out_dtype).itemsize
    per_row_bytes = (4 * (2 * dim)                 # input block, double-buffered
                     + 4 * (4 * half + out_last)   # x_rep/embed/sin/cos + concat
                     + out_bytes * (2 * out_last)) # output block, double-buffered
    vmem_budget = 24 << 20
    tm_vmem_cap = max(8, 8 * (vmem_budget // (per_row_bytes * 8)))
    tm_eff = max(8, min(tm_req, tm_steps_cap, tm_vmem_cap))
    grid = (pl.cdiv(n_rows, tm_eff),)

    cost = pl.CostEstimate(
        flops=n_rows * half * max(dim, 1),          # multiplies + selects
        transcendentals=n_rows * out_last,          # one sin/cos per output elem
        bytes_accessed=4 * n_rows * dim + 4 * half + out_bytes * n_rows * out_last,
    )

    out2d = pl.pallas_call(
        _harmonic_kernel,
        out_shape=jax.ShapeDtypeStruct((n_rows, out_last), out_dtype),
        grid_spec=pltpu.PrefetchScalarGridSpec(
            num_scalar_prefetch=0,
            grid=grid,
            in_specs=[
                pl.BlockSpec((tm_eff, dim), lambda i: (i, 0)),
                pl.BlockSpec((1, half), lambda i: (0, 0)),
            ],
            out_specs=pl.BlockSpec((tm_eff, out_last), lambda i: (i, 0)),
        ),
        compiler_params=pltpu.CompilerParams(
            dimension_semantics=("parallel",)),
        cost_estimate=cost,
    )(x2d, freq_row)

    return out2d.reshape(*lead, out_last)


def harmonic_embedding_ref(x, n_harmonic_functions=60, omega0=0.1):
    """Pure-JAX reference mirroring the PyTorch forward."""
    x = jnp.asarray(x, dtype=jnp.float32)
    freqs = omega0 * (2.0 ** jnp.arange(n_harmonic_functions, dtype=jnp.float32))
    embed = (x[..., None] * freqs).reshape(*x.shape[:-1], -1)
    return jnp.concatenate((jnp.sin(embed), jnp.cos(embed)), axis=-1)


if __name__ == "__main__":
    key = jax.random.PRNGKey(0)
    # NeRF-style input: [batch=2, n_points=167, dim=3] -> 334 rows.
    # With the >=4-step cap this runs a 4-step grid (tiles of 88 rows) with a
    # ragged last block, and no wrapper-side padding or output slicing.
    x = jax.random.normal(key, (2, 167, 3), dtype=jnp.float32)

    out = harmonic_embedding(x, n_harmonic_functions=60, omega0=0.1)
    out = jax.block_until_ready(out)

    ref = harmonic_embedding_ref(x, n_harmonic_functions=60, omega0=0.1)
    assert out.shape == (2, 167, 2 * 3 * 60), out.shape
    assert jnp.allclose(out, ref, atol=1e-5, rtol=1e-5), \
        float(jnp.max(jnp.abs(out - ref)))

    print("KERNEL_OK")
</pallas_src>

<mosaic_0001>
module attributes {stable_mosaic.version = 11 : i64} {
  func.func @_harmonic_kernel(%arg0: i32, %arg1: memref<88x3xf32, #tpu.memory_space<vmem>>, %arg2: memref<1x180xf32, #tpu.memory_space<vmem>>, %arg3: memref<88x360xf32, #tpu.memory_space<vmem>>) attributes {dimension_semantics = [#tpu.dimension_semantics<parallel>], iteration_bounds = array<i64: 4>, scalar_prefetch = 0 : i64, scratch_operands = 0 : i64, tpu.core_type = #tpu.core_type<tc>, window_params = [{transform_indices = @transform_0, window_bounds = array<i64: 88, 3>}, {pipeline_mode = #tpu.pipeline_mode<synchronous>, transform_indices = @transform_1, window_bounds = array<i64: 1, 180>}, {transform_indices = @transform_2, window_bounds = array<i64: 88, 360>}]} {
    %c0 = arith.constant 0 : index
    %c0_0 = arith.constant 0 : index
    %0 = vector.load %arg1[%c0, %c0_0] : memref<88x3xf32, #tpu.memory_space<vmem>>, vector<88x3xf32>
    %c0_1 = arith.constant 0 : index
    %c0_2 = arith.constant 0 : index
    %1 = vector.load %arg2[%c0_1, %c0_2] : memref<1x180xf32, #tpu.memory_space<vmem>>, vector<1x180xf32>
    %2 = tpu.iota {dimensions = array<i32: 1>} : vector<88x180xi32>
    %3 = vector.extract_strided_slice %0 {offsets = [0, 0], sizes = [88, 1], strides = [1, 1]} : vector<88x3xf32> to vector<88x1xf32>
    %4 = vector.shape_cast %3 : vector<88x1xf32> to vector<88x1xf32>
    %5 = vector.broadcast %4 : vector<88x1xf32> to vector<88x180xf32>
    %6 = vector.extract_strided_slice %0 {offsets = [0, 1], sizes = [88, 1], strides = [1, 1]} : vector<88x3xf32> to vector<88x1xf32>
    %7 = vector.shape_cast %6 : vector<88x1xf32> to vector<88x1xf32>
    %8 = vector.broadcast %7 : vector<88x1xf32> to vector<88x180xf32>
    %c60_i32 = arith.constant 60 : i32
    %9 = vector.broadcast %c60_i32 : i32 to vector<88x180xi32>
    %10 = arith.cmpi sge, %2, %9 : vector<88x180xi32>
    %11 = arith.select %10, %8, %5 : vector<88x180xi1>, vector<88x180xf32>
    %12 = vector.extract_strided_slice %0 {offsets = [0, 2], sizes = [88, 1], strides = [1, 1]} : vector<88x3xf32> to vector<88x1xf32>
    %13 = vector.shape_cast %12 : vector<88x1xf32> to vector<88x1xf32>
    %14 = vector.broadcast %13 : vector<88x1xf32> to vector<88x180xf32>
    %c120_i32 = arith.constant 120 : i32
    %15 = vector.broadcast %c120_i32 : i32 to vector<88x180xi32>
    %16 = arith.cmpi sge, %2, %15 : vector<88x180xi32>
    %17 = arith.select %16, %14, %11 : vector<88x180xi1>, vector<88x180xf32>
    %18 = vector.broadcast %1 : vector<1x180xf32> to vector<88x180xf32>
    %19 = arith.mulf %17, %18 : vector<88x180xf32>
    %20 = math.sin %19 : vector<88x180xf32>
    %21 = math.cos %19 : vector<88x180xf32>
    %22 = tpu.concatenate %20, %21 in 1 : vector<88x180xf32>, vector<88x180xf32> -> vector<88x360xf32>
    %c0_3 = arith.constant 0 : index
    %c0_4 = arith.constant 0 : index
    %23 = vector.load %arg3[%c0_3, %c0_4] : memref<88x360xf32, #tpu.memory_space<vmem>>, vector<88x360xf32>
    tpu.vector_store %arg3[%c0_3, %c0_4], %22 {strides = array<i32>} : memref<88x360xf32, #tpu.memory_space<vmem>>, vector<88x360xf32>,
    return
  }
  func.func @transform_0(%arg0: i32) -> (i32, i32) {
    %c0_i32 = arith.constant 0 : i32
    %c0_i32_0 = arith.constant 0 : i32
    return %arg0, %c0_i32 : i32, i32
  }
  func.func @transform_1(%arg0: i32) -> (i32, i32) {
    %c0_i32 = arith.constant 0 : i32
    %c0_i32_0 = arith.constant 0 : i32
    %c0_i32_1 = arith.constant 0 : i32
    return %c0_i32, %c0_i32_0 : i32, i32
  }
  func.func @transform_2(%arg0: i32) -> (i32, i32) {
    %c0_i32 = arith.constant 0 : i32
    %c0_i32_0 = arith.constant 0 : i32
    return %arg0, %c0_i32 : i32, i32
  }
}

</mosaic_0001>

<llo_original>
// kernel: tpu_custom_call.1
$region0: #{tpu_custom_call.1}
  #allocation0 [shape = 'u32[]', space=smem, size = 0x4, offset = 0x4, fixed_abs, tag = 'smem constant byte address 0x4 - core index']
  #allocation1 [shape = 'u32[144,128]{1,0:T(1,128)}', space=vmem, size = 0x12000, scoped, tag = 'internal scratch']
  %s0 = inlined_call_operand.vmem [shape: f32[334,3], index: 0, kind: input, shape index: {}]
  %s1 = inlined_call_operand.vmem [shape: f32[1,180], index: 1, kind: input, shape index: {}]
  %s2 = inlined_call_operand.hbm [shape: f32[334,360], index: 2, kind: output, shape index: {}]
  %s3 = sld [smem:[#allocation0]]
  $region41: #{tpu_custom_call.1} parent=0
    _
  %s5 = ssub.s32 1, %s3
  %s6 = scalar_select 0, %s5, %s3
  $region1: #{tpu_custom_call.1} parent=0
    #allocation2 [shape = 'u8[270336]{0}', space=vmem, size = 0x42000, scoped, tag = 'output window, operand 0']
    #allocation3 [shape = 's32[2]{0}', space=sflag, size = 0x8, scoped, tag = 'scoped memory for tpu_custom_call.1']
    %7 = vsyncpa [#allocation3], 0
    %s8 = scalar_lea.sflag [#allocation3], 1
    %9 = vsyncpa %s8, 0
    loop: start=0, step=1, limit=6
    $region2: #{tpu_custom_call.1} parent=1 // loop_pre_header
      _
    $region3: #{tpu_custom_call.1} parent=1 // loop_header
      %s11 = sphi 0, %s15
      %p12 = scmp.ge.s32.totalorder %s11, 6
      %s21 = sphi 0, %s23
      %s24 = sphi 0, %s21
      %s25 = sphi 0, %s24
      %s41 = sphi 0, %s25
      %s45 = sphi 0, %s45
      %s47 = sphi 0, %s45
      %s48 = sphi 0, %s47
      %s62 = sphi 0, %s48
      %s68 = sphi 0, %s70
      %s71 = sphi 0, %s68
      %s72 = sphi 0, %s71
      %s88 = sphi 0, %s72
    $region4: #{tpu_custom_call.1} parent=1 // loop_header_branch
      %14 = sbr.rel (%p12) target = $region8
    $region5: #{tpu_custom_call.1} parent=1 // loop_body
      %s16 = ssub.s32 %s11, 1
      %s17 = ssub.s32 %s11, 2
      %s18 = sadd.s32 %s11, 1
      %s19 = ssub.s32 %s11, %s18
      %p20 = scmp.eq.s32.totalorder %s19, 0
      %s22 = sadd.s32 %s21, 1
      %s23 = scalar_select %p20, %s21, %s22
      %p26 = pneg %p20
      %p27 = scmp.eq.s32.totalorder %s11, 3
      %p28 = por %p26, %p27
      %p29 = scmp.ne.s32.totalorder %s21, %s24
      %p30 = scmp.eq.s32.totalorder %s11, 0
      %p31 = por %p29, %p30
      %p32 = scmp.ne.s32.totalorder %s21, %s24
      %p33 = scmp.eq.s32.totalorder %s16, 3
      %p34 = por %p32, %p33
      %p35 = scmp.ne.s32.totalorder %s24, %s25
      %p36 = scmp.eq.s32.totalorder %s16, 0
      %p37 = por %p35, %p36
      %p38 = scmp.ne.s32.totalorder %s24, %s25
      %p39 = scmp.eq.s32.totalorder %s17, 3
      %p40 = por %p38, %p39
      %p42 = scmp.ne.s32.totalorder %s25, %s41
      %p43 = scmp.eq.s32.totalorder %s17, 0
      %p44 = por %p42, %p43
      %s46 = sadd.s32 %s45, 1
      %p49 = scmp.eq.s32.totalorder %s11, 3
      %p50 = scmp.ne.s32.totalorder %s45, %s47
      %p51 = scmp.eq.s32.totalorder %s11, 0
      %p52 = por %p50, %p51
      %p53 = scmp.ne.s32.totalorder %s45, %s47
      %p54 = scmp.eq.s32.totalorder %s16, 3
      %p55 = por %p53, %p54
      %p56 = scmp.ne.s32.totalorder %s47, %s48
      %p57 = scmp.eq.s32.totalorder %s16, 0
      %p58 = por %p56, %p57
      %p59 = scmp.ne.s32.totalorder %s47, %s48
      %p60 = scmp.eq.s32.totalorder %s17, 3
      %p61 = por %p59, %p60
      %p63 = scmp.ne.s32.totalorder %s48, %s62
      %p64 = scmp.eq.s32.totalorder %s17, 0
      %p65 = por %p63, %p64
      %s66 = ssub.s32 %s11, %s18
      %p67 = scmp.eq.s32.totalorder %s66, 0
      %s69 = sadd.s32 %s68, 1
      %s70 = scalar_select %p67, %s68, %s69
      %p73 = pneg %p67
      %p74 = scmp.eq.s32.totalorder %s11, 3
      %p75 = por %p73, %p74
      %p76 = scmp.ne.s32.totalorder %s68, %s71
      %p77 = scmp.eq.s32.totalorder %s11, 0
      %p78 = por %p76, %p77
      %p79 = scmp.ne.s32.totalorder %s68, %s71
      %p80 = scmp.eq.s32.totalorder %s16, 3
      %p81 = por %p79, %p80
      %p82 = scmp.ne.s32.totalorder %s71, %s72
      %p83 = scmp.eq.s32.totalorder %s16, 0
      %p84 = por %p82, %p83
      %p85 = scmp.ne.s32.totalorder %s71, %s72
      %p86 = scmp.eq.s32.totalorder %s17, 3
      %p87 = por %p85, %p86
      %p89 = scmp.ne.s32.totalorder %s72, %s88
      %p90 = scmp.eq.s32.totalorder %s17, 0
      %p91 = por %p89, %p90
      %p92 = scmp.le.s32.totalorder 1, %s11
      %p93 = scmp.lt.s32.totalorder %s11, 5
      %p94 = pnand %p92, %p93
      %p95 = pneg %p94
      // Predicated region
      $region9: #{tpu_custom_call.1} parent=5 // pred_check
        _
      $region10: #{tpu_custom_call.1} parent=5 // pred_check_branch
        %97 = sbr.rel (%p94) target = $region12
      $region11: #{tpu_custom_call.1} parent=5 // pred_region
        %s98 = ssub.s32 %s11, 1
        // Predicated region
        $region13: #{tpu_custom_call.1} parent=11 // pred_check
          %p99 = pneg %p58
        $region14: #{tpu_custom_call.1} parent=11 // pred_check_branch
          %101 = sbr.rel (%p99) target = $region16
        $region15: #{tpu_custom_call.1} parent=11 // pred_region
          _
        $region16: #{tpu_custom_call.1} parent=11 // pred_fallthru
          _
      $region12: #{tpu_custom_call.1} parent=5 // pred_fallthru
        _
      %p102 = scmp.lt.s32.totalorder %s11, 4
      // Predicated region
      $region17: #{tpu_custom_call.1} parent=5 // pred_check
        %p103 = pneg %p102
      $region18: #{tpu_custom_call.1} parent=5 // pred_check_branch
        %105 = sbr.rel (%p103) target = $region20
      $region19: #{tpu_custom_call.1} parent=5 // pred_region
        // Predicated region
        $region21: #{tpu_custom_call.1} parent=19 // pred_check
          %p106 = pneg %p31
        $region22: #{tpu_custom_call.1} parent=19 // pred_check_branch
          %108 = sbr.rel (%p106) target = $region24
        $region23: #{tpu_custom_call.1} parent=19 // pred_region
          %s109 = smul.u32 11, %s11
          %s110 = ssub.s32 42, %s109
          %p111 = scmp.lt.s32.totalorder %s110, 11
          %s112 = scalar_select %p111, %s110, 11
          %s113 = smul.u32 128, %s112
          %p114 = scmp.lt.s32.totalorder %s109, 41
          %s115 = scalar_select %p114, %s109, 41
          %s116 = smul.addr %s115, 8
          %s117 = scalar_lea.vmem %s0, %s116
          %s118 = smul.u32 11, %s11
          %s119 = ssub.s32 42, %s118
          %p120 = scmp.lt.s32.totalorder %s119, 11
          %s121 = scalar_select %p120, %s119, 11
          %s122 = smul.u32 128, %s121
        $region24: #{tpu_custom_call.1} parent=19 // pred_fallthru
          _
      $region20: #{tpu_custom_call.1} parent=5 // pred_fallthru
        _
      %p123 = scmp.le.s32.totalorder 1, %s11
      %p124 = scmp.lt.s32.totalorder %s11, 5
      %p125 = pnand %p123, %p124
      %p126 = pneg %p125
      // Predicated region
      $region25: #{tpu_custom_call.1} parent=5 // pred_check
        _
      $region26: #{tpu_custom_call.1} parent=5 // pred_check_branch
        %128 = sbr.rel (%p125) target = $region28
      $region27: #{tpu_custom_call.1} parent=5 // pred_region
        %s129 = ssub.s32 %s11, 1
        %s130 = smul.u32 11, %s16
        %s131 = ssub.s32 42, %s130
        %p132 = scmp.lt.s32.totalorder %s131, 11
        %s133 = scalar_select %p132, %s131, 11
        %s134 = smul.u32 128, %s133
        %p135 = scmp.lt.s32.totalorder %s130, 41
        %s136 = scalar_select %p135, %s130, 41
        %s137 = smul.addr %s136, 8
        %s138 = scalar_lea.vmem %s0, %s137
        %p139 = pneg %p37
        %p140 = pneg %p34
        %p141 = pneg %p58
        %p142 = pneg %p55
        %p143 = pneg %p84
        %p144 = pneg %p81
        %s145 = sand.u32 %s71, 1
        %s146 = scalar_lea.sflag [#allocation3], %s145
        %s147 = sand.u32 %s71, 1
        %s148 = smul.addr %s147, 264
        %s149 = scalar_lea.vmem [#allocation2], %s148
        %s150 = smul.u32 11, %s16
        %s151 = ssub.s32 42, %s150
        %p152 = scmp.lt.s32.totalorder %s151, 11
        %s153 = scalar_select %p152, %s151, 11
        %s154 = smul.u32 128, %s153
        %p155 = scmp.lt.s32.totalorder %s150, 41
        %s156 = scalar_select %p155, %s150, 41
        %s157 = smul.addr %s156, 8
        %s158 = scalar_lea.vmem %s0, %s157
        %s159 = smul.u32 11, %s16
        %s160 = ssub.s32 42, %s159
        %p161 = scmp.lt.s32.totalorder %s160, 11
        %s162 = scalar_select %p161, %s160, 11
        %s163 = smul.u32 128, %s162
        %s164 = smul.u32 11, %s16
        %s165 = ssub.s32 42, %s164
        %p166 = scmp.lt.s32.totalorder %s165, 11
        %s167 = scalar_select %p166, %s165, 11
        %s168 = smul.u32 128, %s167
        %s169 = smul.u32 %s168, 3
        %v170 = vld [vmem:[%s158] sm:$0xff]
        %v171 = vld [vmem:[%s158 + $0x8] sm:$0xff]
        %v172 = vld [vmem:[%s158 + $0x10] sm:$0xff]
        %v173 = vld [vmem:[%s158 + $0x18] sm:$0xff]
        %v174 = vld [vmem:[%s158 + $0x20] sm:$0xff]
        %v175 = vld [vmem:[%s158 + $0x28] sm:$0xff]
        %v176 = vld [vmem:[%s158 + $0x30] sm:$0xff]
        %v177 = vld [vmem:[%s158 + $0x38] sm:$0xff]
        %v178 = vld [vmem:[%s158 + $0x40] sm:$0xff]
        %v179 = vld [vmem:[%s158 + $0x48] sm:$0xff]
        %v180 = vld [vmem:[%s158 + $0x50] sm:$0xff]
        %v181 = vld [vmem:[%s1] sm:$0x3]
        %v182 = vlaneseq
        %v183 = vand.u32 %v182, 127
        %v184 = vadd.s32 %v183, 128
        %186 = vset.pattern.permute.xlu0 0
        %187 = vperm.xlu0 %186, %v170
        %v188 = vpop.permute.xlu0 %187
        %191 = vset.pattern.permute.xlu0 0
        %192 = vperm.xlu0 %191, %v171
        %v193 = vpop.permute.xlu0 %192
        %196 = vset.pattern.permute.xlu0 0
        %197 = vperm.xlu0 %196, %v172
        %v198 = vpop.permute.xlu0 %197
        %201 = vset.pattern.permute.xlu0 0
        %202 = vperm.xlu0 %201, %v173
        %v203 = vpop.permute.xlu0 %202
        %206 = vset.pattern.permute.xlu0 0
        %207 = vperm.xlu0 %206, %v174
        %v208 = vpop.permute.xlu0 %207
        %211 = vset.pattern.permute.xlu0 0
        %212 = vperm.xlu0 %211, %v175
        %v213 = vpop.permute.xlu0 %212
        %216 = vset.pattern.permute.xlu0 0
        %217 = vperm.xlu0 %216, %v176
        %v218 = vpop.permute.xlu0 %217
        %221 = vset.pattern.permute.xlu0 0
        %222 = vperm.xlu0 %221, %v177
        %v223 = vpop.permute.xlu0 %222
        %226 = vset.pattern.permute.xlu0 0
        %227 = vperm.xlu0 %226, %v178
        %v228 = vpop.permute.xlu0 %227
        %231 = vset.pattern.permute.xlu0 0
        %232 = vperm.xlu0 %231, %v179
        %v233 = vpop.permute.xlu0 %232
        %236 = vset.pattern.permute.xlu0 0
        %237 = vperm.xlu0 %236, %v180
        %v238 = vpop.permute.xlu0 %237
        %240 = vset.pattern.permute.xlu0 1
        %241 = vperm.xlu0 %240, %v170
        %v242 = vpop.permute.xlu0 %241
        %244 = vset.pattern.permute.xlu0 1
        %245 = vperm.xlu0 %244, %v171
        %v246 = vpop.permute.xlu0 %245
        %248 = vset.pattern.permute.xlu0 1
        %249 = vperm.xlu0 %248, %v172
        %v250 = vpop.permute.xlu0 %249
        %252 = vset.pattern.permute.xlu0 1
        %253 = vperm.xlu0 %252, %v173
        %v254 = vpop.permute.xlu0 %253
        %256 = vset.pattern.permute.xlu0 1
        %257 = vperm.xlu0 %256, %v174
        %v258 = vpop.permute.xlu0 %257
        %260 = vset.pattern.permute.xlu0 1
        %261 = vperm.xlu0 %260, %v175
        %v262 = vpop.permute.xlu0 %261
        %264 = vset.pattern.permute.xlu0 1
        %265 = vperm.xlu0 %264, %v176
        %v266 = vpop.permute.xlu0 %265
        %268 = vset.pattern.permute.xlu0 1
        %269 = vperm.xlu0 %268, %v177
        %v270 = vpop.permute.xlu0 %269
        %272 = vset.pattern.permute.xlu0 1
        %273 = vperm.xlu0 %272, %v178
        %v274 = vpop.permute.xlu0 %273
        %276 = vset.pattern.permute.xlu0 1
        %277 = vperm.xlu0 %276, %v179
        %v278 = vpop.permute.xlu0 %277
        %280 = vset.pattern.permute.xlu0 1
        %281 = vperm.xlu0 %280, %v180
        %v282 = vpop.permute.xlu0 %281
        %vm284 = vcmp.ge.s32.totalorder %v183, 60
        %vm285 = vcmp.ge.s32.totalorder %v184, 60
        %v286 = vsel %vm284, %v242, %v188
        %v287 = vsel %vm285, %v242, %v188
        %v288 = vsel %vm284, %v246, %v193
        %v289 = vsel %vm285, %v246, %v193
        %v290 = vsel %vm284, %v250, %v198
        %v291 = vsel %vm285, %v250, %v198
        %v292 = vsel %vm284, %v254, %v203
        %v293 = vsel %vm285, %v254, %v203
        %v294 = vsel %vm284, %v258, %v208
        %v295 = vsel %vm285, %v258, %v208
        %v296 = vsel %vm284, %v262, %v213
        %v297 = vsel %vm285, %v262, %v213
        %v298 = vsel %vm284, %v266, %v218
        %v299 = vsel %vm285, %v266, %v218
        %v300 = vsel %vm284, %v270, %v223
        %v301 = vsel %vm285, %v270, %v223
        %v302 = vsel %vm284, %v274, %v228
        %v303 = vsel %vm285, %v274, %v228
        %v304 = vsel %vm284, %v278, %v233
        %v305 = vsel %vm285, %v278, %v233
        %v306 = vsel %vm284, %v282, %v238
        %v307 = vsel %vm285, %v282, %v238
        %308 = vset.pattern.permute.xlu0 2
        %309 = vperm.xlu0 %308, %v170
        %v310 = vpop.permute.xlu0 %309
        %312 = vset.pattern.permute.xlu0 2
        %313 = vperm.xlu0 %312, %v171
        %v314 = vpop.permute.xlu0 %313
        %316 = vset.pattern.permute.xlu0 2
        %317 = vperm.xlu0 %316, %v172
        %v318 = vpop.permute.xlu0 %317
        %320 = vset.pattern.permute.xlu0 2
        %321 = vperm.xlu0 %320, %v173
        %v322 = vpop.permute.xlu0 %321
        %324 = vset.pattern.permute.xlu0 2
        %325 = vperm.xlu0 %324, %v174
        %v326 = vpop.permute.xlu0 %325
        %328 = vset.pattern.permute.xlu0 2
        %329 = vperm.xlu0 %328, %v175
        %v330 = vpop.permute.xlu0 %329
        %332 = vset.pattern.permute.xlu0 2
        %333 = vperm.xlu0 %332, %v176
        %v334 = vpop.permute.xlu0 %333
        %336 = vset.pattern.permute.xlu0 2
        %337 = vperm.xlu0 %336, %v177
        %v338 = vpop.permute.xlu0 %337
        %340 = vset.pattern.permute.xlu0 2
        %341 = vperm.xlu0 %340, %v178
        %v342 = vpop.permute.xlu0 %341
        %344 = vset.pattern.permute.xlu0 2
        %345 = vperm.xlu0 %344, %v179
        %v346 = vpop.permute.xlu0 %345
        %348 = vset.pattern.permute.xlu0 2
        %349 = vperm.xlu0 %348, %v180
        %v350 = vpop.permute.xlu0 %349
        %vm352 = vcmp.ge.s32.totalorder %v183, 120
        %vm353 = vcmp.ge.s32.totalorder %v184, 120
        %v354 = vsel %vm352, %v310, %v286
        %v355 = vsel %vm353, %v310, %v287
        %v356 = vsel %vm352, %v314, %v288
        %v357 = vsel %vm353, %v314, %v289
        %v358 = vsel %vm352, %v318, %v290
        %v359 = vsel %vm353, %v318, %v291
        %v360 = vsel %vm352, %v322, %v292
        %v361 = vsel %vm353, %v322, %v293
        %v362 = vsel %vm352, %v326, %v294
        %v363 = vsel %vm353, %v326, %v295
        %v364 = vsel %vm352, %v330, %v296
        %v365 = vsel %vm353, %v330, %v297
        %v366 = vsel %vm352, %v334, %v298
        %v367 = vsel %vm353, %v334, %v299
        %v368 = vsel %vm352, %v338, %v300
        %v369 = vsel %vm353, %v338, %v301
        %v370 = vsel %vm352, %v342, %v302
        %v371 = vsel %vm353, %v342, %v303
        %v372 = vsel %vm352, %v346, %v304
        %v373 = vsel %vm353, %v346, %v305
        %v374 = vsel %vm352, %v350, %v306
        %v375 = vsel %vm353, %v350, %v307
        %v377 = vlaneseq
        %v378 = vshrl.u32 %v377, 7
        %v379 = vsub.s32 0, %v378
        %v380 = vrot.slane %v181, %v379
        %v381 = vlaneseq
        %v382 = vshrl.u32 %v381, 7
        %v383 = vsub.s32 1, %v382
        %v384 = vrot.slane %v181, %v383
        %v387 = vmul.f32 %v354, %v380
        %v388 = vmul.f32 %v355, %v384
        %v389 = vmul.f32 %v356, %v380
        %v390 = vmul.f32 %v357, %v384
        %v391 = vmul.f32 %v358, %v380
        %v392 = vmul.f32 %v359, %v384
        %v393 = vmul.f32 %v360, %v380
        %v394 = vmul.f32 %v361, %v384
        %v395 = vmul.f32 %v362, %v380
        %v396 = vmul.f32 %v363, %v384
        %v397 = vmul.f32 %v364, %v380
        %v398 = vmul.f32 %v365, %v384
        %v399 = vmul.f32 %v366, %v380
        %v400 = vmul.f32 %v367, %v384
        %v401 = vmul.f32 %v368, %v380
        %v402 = vmul.f32 %v369, %v384
        %v403 = vmul.f32 %v370, %v380
        %v404 = vmul.f32 %v371, %v384
        %v405 = vmul.f32 %v372, %v380
        %v406 = vmul.f32 %v373, %v384
        %v407 = vmul.f32 %v374, %v380
        %v408 = vmul.f32 %v375, %v384
        %v409 = vand.u32 2147483647, %v387
        %vm410 = vcmp.le.f32.partialorder %v409, 0.7853982
        %vm411 = vcmp.lt.s32.totalorder %v387, 0
        %v412 = vand.u32 %v387, 2139095040
        %v413 = vshrl.u32 %v412, 23
        %v414 = vsub.s32 %v413, 127
        %v415 = vand.u32 2147483647, %v387
        %v416 = vand.u32 %v415, 8388607
        %v417 = vor.u32 %v416, 8388608
        %v418 = vsub.s32 0, %v417
        %v419 = vadd.s32 %v414, 1
        %vm420 = vcmp.gt.s32.totalorder %v419, 0
        %v421 = vsel %vm420, %v419, 0
        %v422 = vshrl.u32 %v421, 5
        %v423 = vand.u32 %v421, 31
        %v424 = vsub.s32 32, %v423
        %v425 = vshrl.u32 683565275, %v424
        %v426 = vshll.u32 683565275, %v423
        %v427 = vshrl.u32 2475754826, %v424
        %v428 = vor.u32 %v426, %v427
        %v429 = vshll.u32 2475754826, %v423
        %v430 = vshrl.u32 2131351028, %v424
        %v431 = vor.u32 %v429, %v430
        %v432 = vshll.u32 2131351028, %v423
        %v433 = vshrl.u32 2102212464, %v424
        %v434 = vor.u32 %v432, %v433
        %v435 = vshll.u32 2102212464, %v423
        %v436 = vshrl.u32 920167782, %v424
        %v437 = vor.u32 %v435, %v436
        %v438 = vshll.u32 920167782, %v423
        %v439 = vshrl.u32 1326507024, %v424
        %v440 = vor.u32 %v438, %v439
        %vm441 = vcmp.lt.s32.totalorder %v422, 1
        %vm442 = vcmp.lt.s32.totalorder %v422, 2
        %vm443 = vcmp.lt.s32.totalorder %v422, 3
        %vm444 = vcmp.lt.s32.totalorder %v422, 4
        %v445 = vsel %vm441, %v425, %v428
        %v446 = vsel %vm444, %v434, 2102212464
        %v447 = vsel %vm443, %v431, %v446
        %v448 = vsel %vm442, %v445, %v447
        %v449 = vsel %vm441, %v428, %v431
        %v450 = vsel %vm444, %v437, 920167782
        %v451 = vsel %vm443, %v434, %v450
        %v452 = vsel %vm442, %v449, %v451
        %v453 = vsel %vm441, %v431, %v434
        %v454 = vsel %vm444, %v440, 1326507024
        %v455 = vsel %vm443, %v437, %v454
        %v456 = vsel %vm442, %v453, %v455
        %v457 = vshll.u32 %v417, 8
        %v458 = vmul.u32.u64.compose %v457, %v456
        %v459 = vextract.low.u32 %v458
        %v460 = vextract.high.u32 %v458
        %v461 = vmul.u32.u64.compose %v457, %v452
        %v462 = vextract.low.u32 %v461
        %v463 = vextract.high.u32 %v461
        %v464 = vmul.u32 %v457, %v448
        %v465 = vadd.s32 %v460, %v462
        %vm466 = vc.u32 %v460, %v462
        %v467 = vadd.s32 %v463, 1
        %v468 = vsel %vm466, %v467, %v463
        %v469 = vadd.s32 %v464, %v468
        %v470 = vadd.s32 %v469, 536870912
        %v471 = vshrl.u32 %v470, 30
        %v472 = vshll.u32 %v471, 30
        %v473 = vsub.s32 %v469, %v472
        %vm474 = vcmp.lt.s32.totalorder %v473, 0
        %v475 = vsub.s32 0, %v473
        %v476 = vsel %vm474, %v475, %v473
        %v477 = vclz %v476
        %v478 = vsub.s32 %v477, 2
        %vm479 = vcmp.gt.s32.totalorder 0, %v478
        %v480 = vsel %vm479, 0, %v478
        %v481 = vsub.s32 32, %v480
        %v482 = vshll.u32 %v473, %v480
        %v483 = vshrl.u32 %v465, %v481
        %v484 = vor.u32 %v482, %v483
        %v485 = vsub.s32 4294967266, %v480
        %v486 = vadd.s32 %v485, 127
        %v487 = vshll.u32 %v486, 23
        %v488 = vor.u32 4788187, %v487
        %v489 = vand.u32 2147483647, %v488
        %v491 = vcvt.s32.f32 %v484
        %v492 = vmul.f32 %v491, %v489
        %v493 = vxor.u32 %v492, 2147483648
        %v494 = vsel %vm411, %v493, %v492
        %v495 = vsub.s32 4, %v471
        %v496 = vsel %vm411, %v495, %v471
        %v497 = vsel %vm410, %v387, %v494
        %v498 = vsel %vm410, 0, %v496
        %v499 = vcosq.f32.pop %v497
        %v500 = vsinq.f32.pop %v497
        %vm501 = vweird.f32 %v387
        %v502 = vadd.s32 %v498, 3
        %v503 = vand.u32 %v502, 3
        %vm504 = vcmp.lt.s32.totalorder %v503, 2
        %vm505 = vcmp.eq.s32.totalorder %v503, 0
        %v506 = vxor.u32 %v500, 2147483648
        %v507 = vsel %vm505, %v499, %v506
        %vm508 = vcmp.eq.s32.totalorder %v503, 2
        %v509 = vxor.u32 %v499, 2147483648
        %v510 = vsel %vm508, %v509, %v500
        %v511 = vsel %vm504, %v507, %v510
        %v512 = vsel %vm501, nan, %v511
        %v513 = vand.u32 2147483647, %v388
        %vm514 = vcmp.le.f32.partialorder %v513, 0.7853982
        %vm515 = vcmp.lt.s32.totalorder %v388, 0
        %v516 = vand.u32 %v388, 2139095040
        %v517 = vshrl.u32 %v516, 23
        %v518 = vsub.s32 %v517, 127
        %v519 = vand.u32 2147483647, %v388
        %v520 = vand.u32 %v519, 8388607
        %v521 = vor.u32 %v520, 8388608
        %v522 = vsub.s32 0, %v521
        %v523 = vadd.s32 %v518, 1
        %vm524 = vcmp.gt.s32.totalorder %v523, 0
        %v525 = vsel %vm524, %v523, 0
        %v526 = vshrl.u32 %v525, 5
        %v527 = vand.u32 %v525, 31
        %v528 = vsub.s32 32, %v527
        %v529 = vshrl.u32 683565275, %v528
        %v530 = vshll.u32 683565275, %v527
        %v531 = vshrl.u32 2475754826, %v528
        %v532 = vor.u32 %v530, %v531
        %v533 = vshll.u32 2475754826, %v527
        %v534 = vshrl.u32 2131351028, %v528
        %v535 = vor.u32 %v533, %v534
        %v536 = vshll.u32 2131351028, %v527
        %v537 = vshrl.u32 2102212464, %v528
        %v538 = vor.u32 %v536, %v537
        %v539 = vshll.u32 2102212464, %v527
        %v540 = vshrl.u32 920167782, %v528
        %v541 = vor.u32 %v539, %v540
        %v542 = vshll.u32 920167782, %v527
        %v543 = vshrl.u32 1326507024, %v528
        %v544 = vor.u32 %v542, %v543
        %vm545 = vcmp.lt.s32.totalorder %v526, 1
        %vm546 = vcmp.lt.s32.totalorder %v526, 2
        %vm547 = vcmp.lt.s32.totalorder %v526, 3
        %vm548 = vcmp.lt.s32.totalorder %v526, 4
        %v549 = vsel %vm545, %v529, %v532
        %v550 = vsel %vm548, %v538, 2102212464
        %v551 = vsel %vm547, %v535, %v550
        %v552 = vsel %vm546, %v549, %v551
        %v553 = vsel %vm545, %v532, %v535
        %v554 = vsel %vm548, %v541, 920167782
        %v555 = vsel %vm547, %v538, %v554
        %v556 = vsel %vm546, %v553, %v555
        %v557 = vsel %vm545, %v535, %v538
        %v558 = vsel %vm548, %v544, 1326507024
        %v559 = vsel %vm547, %v541, %v558
        %v560 = vsel %vm546, %v557, %v559
        %v561 = vshll.u32 %v521, 8
        %v562 = vmul.u32.u64.compose %v561, %v560
        %v563 = vextract.low.u32 %v562
        %v564 = vextract.high.u32 %v562
        %v565 = vmul.u32.u64.compose %v561, %v556
        %v566 = vextract.low.u32 %v565
        %v567 = vextract.high.u32 %v565
        %v568 = vmul.u32 %v561, %v552
        %v569 = vadd.s32 %v564, %v566
        %vm570 = vc.u32 %v564, %v566
        %v571 = vadd.s32 %v567, 1
        %v572 = vsel %vm570, %v571, %v567
        %v573 = vadd.s32 %v568, %v572
        %v574 = vadd.s32 %v573, 536870912
        %v575 = vshrl.u32 %v574, 30
        %v576 = vshll.u32 %v575, 30
        %v577 = vsub.s32 %v573, %v576
        %vm578 = vcmp.lt.s32.totalorder %v577, 0
        %v579 = vsub.s32 0, %v577
        %v580 = vsel %vm578, %v579, %v577
        %v581 = vclz %v580
        %v582 = vsub.s32 %v581, 2
        %vm583 = vcmp.gt.s32.totalorder 0, %v582
        %v584 = vsel %vm583, 0, %v582
        %v585 = vsub.s32 32, %v584
        %v586 = vshll.u32 %v577, %v584
        %v587 = vshrl.u32 %v569, %v585
        %v588 = vor.u32 %v586, %v587
        %v589 = vsub.s32 4294967266, %v584
        %v590 = vadd.s32 %v589, 127
        %v591 = vshll.u32 %v590, 23
        %v592 = vor.u32 4788187, %v591
        %v593 = vand.u32 2147483647, %v592
        %v595 = vcvt.s32.f32 %v588
        %v596 = vmul.f32 %v595, %v593
        %v597 = vxor.u32 %v596, 2147483648
        %v598 = vsel %vm515, %v597, %v596
        %v599 = vsub.s32 4, %v575
        %v600 = vsel %vm515, %v599, %v575
        %v601 = vsel %vm514, %v388, %v598
        %v602 = vsel %vm514, 0, %v600
        %v603 = vcosq.f32.pop %v601
        %v604 = vsinq.f32.pop %v601
        %vm605 = vweird.f32 %v388
        %v606 = vadd.s32 %v602, 3
        %v607 = vand.u32 %v606, 3
        %vm608 = vcmp.lt.s32.totalorder %v607, 2
        %vm609 = vcmp.eq.s32.totalorder %v607, 0
        %v610 = vxor.u32 %v604, 2147483648
        %v611 = vsel %vm609, %v603, %v610
        %vm612 = vcmp.eq.s32.totalorder %v607, 2
        %v613 = vxor.u32 %v603, 2147483648
        %v614 = vsel %vm612, %v613, %v604
        %v615 = vsel %vm608, %v611, %v614
        %v616 = vsel %vm605, nan, %v615
        %v617 = vand.u32 2147483647, %v389
        %vm618 = vcmp.le.f32.partialorder %v617, 0.7853982
        %vm619 = vcmp.lt.s32.totalorder %v389, 0
        %v620 = vand.u32 %v389, 2139095040
        %v621 = vshrl.u32 %v620, 23
        %v622 = vsub.s32 %v621, 127
        %v623 = vand.u32 2147483647, %v389
        %v624 = vand.u32 %v623, 8388607
        %v625 = vor.u32 %v624, 8388608
        %v626 = vsub.s32 0, %v625
        %v627 = vadd.s32 %v622, 1
        %vm628 = vcmp.gt.s32.totalorder %v627, 0
        %v629 = vsel %vm628, %v627, 0
        %v630 = vshrl.u32 %v629, 5
        %v631 = vand.u32 %v629, 31
        %v632 = vsub.s32 32, %v631
        %v633 = vshrl.u32 683565275, %v632
        %v634 = vshll.u32 683565275, %v631
        %v635 = vshrl.u32 2475754826, %v632
        %v636 = vor.u32 %v634, %v635
        %v637 = vshll.u32 2475754826, %v631
        %v638 = vshrl.u32 2131351028, %v632
        %v639 = vor.u32 %v637, %v638
        %v640 = vshll.u32 2131351028, %v631
        %v641 = vshrl.u32 2102212464, %v632
        %v642 = vor.u32 %v640, %v641
        %v643 = vshll.u32 2102212464, %v631
        %v644 = vshrl.u32 920167782, %v632
        %v645 = vor.u32 %v643, %v644
        %v646 = vshll.u32 920167782, %v631
        %v647 = vshrl.u32 1326507024, %v632
        %v648 = vor.u32 %v646, %v647
        %vm649 = vcmp.lt.s32.totalorder %v630, 1
        %vm650 = vcmp.lt.s32.totalorder %v630, 2
        %vm651 = vcmp.lt.s32.totalorder %v630, 3
        %vm652 = vcmp.lt.s32.totalorder %v630, 4
        %v653 = vsel %vm649, %v633, %v636
        %v654 = vsel %vm652, %v642, 2102212464
        %v655 = vsel %vm651, %v639, %v654
        %v656 = vsel %vm650, %v653, %v655
        %v657 = vsel %vm649, %v636, %v639
        %v658 = vsel %vm652, %v645, 920167782
        %v659 = vsel %vm651, %v642, %v658
        %v660 = vsel %vm650, %v657, %v659
        %v661 = vsel %vm649, %v639, %v642
        %v662 = vsel %vm652, %v648, 1326507024
        %v663 = vsel %vm651, %v645, %v662
        %v664 = vsel %vm650, %v661, %v663
        %v665 = vshll.u32 %v625, 8
        %v666 = vmul.u32.u64.compose %v665, %v664
        %v667 = vextract.low.u32 %v666
        %v668 = vextract.high.u32 %v666
        %v669 = vmul.u32.u64.compose %v665, %v660
        %v670 = vextract.low.u32 %v669
        %v671 = vextract.high.u32 %v669
        %v672 = vmul.u32 %v665, %v656
        %v673 = vadd.s32 %v668, %v670
        %vm674 = vc.u32 %v668, %v670
        %v675 = vadd.s32 %v671, 1
        %v676 = vsel %vm674, %v675, %v671
        %v677 = vadd.s32 %v672, %v676
        %v678 = vadd.s32 %v677, 536870912
        %v679 = vshrl.u32 %v678, 30
        %v680 = vshll.u32 %v679, 30
        %v681 = vsub.s32 %v677, %v680
        %vm682 = vcmp.lt.s32.totalorder %v681, 0
        %v683 = vsub.s32 0, %v681
        %v684 = vsel %vm682, %v683, %v681
        %v685 = vclz %v684
        %v686 = vsub.s32 %v685, 2
        %vm687 = vcmp.gt.s32.totalorder 0, %v686
        %v688 = vsel %vm687, 0, %v686
        %v689 = vsub.s32 32, %v688
        %v690 = vshll.u32 %v681, %v688
        %v691 = vshrl.u32 %v673, %v689
        %v692 = vor.u32 %v690, %v691
        %v693 = vsub.s32 4294967266, %v688
        %v694 = vadd.s32 %v693, 127
        %v695 = vshll.u32 %v694, 23
        %v696 = vor.u32 4788187, %v695
        %v697 = vand.u32 2147483647, %v696
        %v699 = vcvt.s32.f32 %v692
        %v700 = vmul.f32 %v699, %v697
        %v701 = vxor.u32 %v700, 2147483648
        %v702 = vsel %vm619, %v701, %v700
        %v703 = vsub.s32 4, %v679
        %v704 = vsel %vm619, %v703, %v679
        %v705 = vsel %vm618, %v389, %v702
        %v706 = vsel %vm618, 0, %v704
        %v707 = vcosq.f32.pop %v705
        %v708 = vsinq.f32.pop %v705
        %vm709 = vweird.f32 %v389
        %v710 = vadd.s32 %v706, 3
        %v711 = vand.u32 %v710, 3
        %vm712 = vcmp.lt.s32.totalorder %v711, 2
        %vm713 = vcmp.eq.s32.totalorder %v711, 0
        %v714 = vxor.u32 %v708, 2147483648
        %v715 = vsel %vm713, %v707, %v714
        %vm716 = vcmp.eq.s32.totalorder %v711, 2
        %v717 = vxor.u32 %v707, 2147483648
        %v718 = vsel %vm716, %v717, %v708
        %v719 = vsel %vm712, %v715, %v718
        %v720 = vsel %vm709, nan, %v719
        %v721 = vand.u32 2147483647, %v390
        %vm722 = vcmp.le.f32.partialorder %v721, 0.7853982
        %vm723 = vcmp.lt.s32.totalorder %v390, 0
        %v724 = vand.u32 %v390, 2139095040
        %v725 = vshrl.u32 %v724, 23
        %v726 = vsub.s32 %v725, 127
        %v727 = vand.u32 2147483647, %v390
        %v728 = vand.u32 %v727, 8388607
        %v729 = vor.u32 %v728, 8388608
        %v730 = vsub.s32 0, %v729
        %v731 = vadd.s32 %v726, 1
        %vm732 = vcmp.gt.s32.totalorder %v731, 0
        %v733 = vsel %vm732, %v731, 0
        %v734 = vshrl.u32 %v733, 5
        %v735 = vand.u32 %v733, 31
        %v736 = vsub.s32 32, %v735
        %v737 = vshrl.u32 683565275, %v736
        %v738 = vshll.u32 683565275, %v735
        %v739 = vshrl.u32 2475754826, %v736
        %v740 = vor.u32 %v738, %v739
        %v741 = vshll.u32 2475754826, %v735
        %v742 = vshrl.u32 2131351028, %v736
        %v743 = vor.u32 %v741, %v742
        %v744 = vshll.u32 2131351028, %v735
        %v745 = vshrl.u32 2102212464, %v736
        %v746 = vor.u32 %v744, %v745
        %v747 = vshll.u32 2102212464, %v735
        %v748 = vshrl.u32 920167782, %v736
        %v749 = vor.u32 %v747, %v748
        %v750 = vshll.u32 920167782, %v735
        %v751 = vshrl.u32 1326507024, %v736
        %v752 = vor.u32 %v750, %v751
        %vm753 = vcmp.lt.s32.totalorder %v734, 1
        %vm754 = vcmp.lt.s32.totalorder %v734, 2
        %vm755 = vcmp.lt.s32.totalorder %v734, 3
        %vm756 = vcmp.lt.s32.totalorder %v734, 4
        %v757 = vsel %vm753, %v737, %v740
        %v758 = vsel %vm756, %v746, 2102212464
        %v759 = vsel %vm755, %v743, %v758
        %v760 = vsel %vm754, %v757, %v759
        %v761 = vsel %vm753, %v740, %v743
        %v762 = vsel %vm756, %v749, 920167782
        %v763 = vsel %vm755, %v746, %v762
        %v764 = vsel %vm754, %v761, %v763
        %v765 = vsel %vm753, %v743, %v746
        %v766 = vsel %vm756, %v752, 1326507024
        %v767 = vsel %vm755, %v749, %v766
        %v768 = vsel %vm754, %v765, %v767
        %v769 = vshll.u32 %v729, 8
        %v770 = vmul.u32.u64.compose %v769, %v768
        %v771 = vextract.low.u32 %v770
        %v772 = vextract.high.u32 %v770
        %v773 = vmul.u32.u64.compose %v769, %v764
        %v774 = vextract.low.u32 %v773
        %v775 = vextract.high.u32 %v773
        %v776 = vmul.u32 %v769, %v760
        %v777 = vadd.s32 %v772, %v774
        %vm778 = vc.u32 %v772, %v774
        %v779 = vadd.s32 %v775, 1
        %v780 = vsel %vm778, %v779, %v775
        %v781 = vadd.s32 %v776, %v780
        %v782 = vadd.s32 %v781, 536870912
        %v783 = vshrl.u32 %v782, 30
        %v784 = vshll.u32 %v783, 30
        %v785 = vsub.s32 %v781, %v784
        %vm786 = vcmp.lt.s32.totalorder %v785, 0
        %v787 = vsub.s32 0, %v785
        %v788 = vsel %vm786, %v787, %v785
        %v789 = vclz %v788
        %v790 = vsub.s32 %v789, 2
        %vm791 = vcmp.gt.s32.totalorder 0, %v790
        %v792 = vsel %vm791, 0, %v790
        %v793 = vsub.s32 32, %v792
        %v794 = vshll.u32 %v785, %v792
        %v795 = vshrl.u32 %v777, %v793
        %v796 = vor.u32 %v794, %v795
        %v797 = vsub.s32 4294967266, %v792
        %v798 = vadd.s32 %v797, 127
        %v799 = vshll.u32 %v798, 23
        %v800 = vor.u32 4788187, %v799
        %v801 = vand.u32 2147483647, %v800
        %v803 = vcvt.s32.f32 %v796
        %v804 = vmul.f32 %v803, %v801
        %v805 = vxor.u32 %v804, 2147483648
        %v806 = vsel %vm723, %v805, %v804
        %v807 = vsub.s32 4, %v783
        %v808 = vsel %vm723, %v807, %v783
        %v809 = vsel %vm722, %v390, %v806
        %v810 = vsel %vm722, 0, %v808
        %v811 = vcosq.f32.pop %v809
        %v812 = vsinq.f32.pop %v809
        %vm813 = vweird.f32 %v390
        %v814 = vadd.s32 %v810, 3
        %v815 = vand.u32 %v814, 3
        %vm816 = vcmp.lt.s32.totalorder %v815, 2
        %vm817 = vcmp.eq.s32.totalorder %v815, 0
        %v818 = vxor.u32 %v812, 2147483648
        %v819 = vsel %vm817, %v811, %v818
        %vm820 = vcmp.eq.s32.totalorder %v815, 2
        %v821 = vxor.u32 %v811, 2147483648
        %v822 = vsel %vm820, %v821, %v812
        %v823 = vsel %vm816, %v819, %v822
        %v824 = vsel %vm813, nan, %v823
        %v825 = vand.u32 2147483647, %v391
        %vm826 = vcmp.le.f32.partialorder %v825, 0.7853982
        %vm827 = vcmp.lt.s32.totalorder %v391, 0
        %v828 = vand.u32 %v391, 2139095040
        %v829 = vshrl.u32 %v828, 23
        %v830 = vsub.s32 %v829, 127
        %v831 = vand.u32 2147483647, %v391
        %v832 = vand.u32 %v831, 8388607
        %v833 = vor.u32 %v832, 8388608
        %v834 = vsub.s32 0, %v833
        %v835 = vadd.s32 %v830, 1
        %vm836 = vcmp.gt.s32.totalorder %v835, 0
        %v837 = vsel %vm836, %v835, 0
        %v838 = vshrl.u32 %v837, 5
        %v839 = vand.u32 %v837, 31
        %v840 = vsub.s32 32, %v839
        %v841 = vshrl.u32 683565275, %v840
        %v842 = vshll.u32 683565275, %v839
        %v843 = vshrl.u32 2475754826, %v840
        %v844 = vor.u32 %v842, %v843
        %v845 = vshll.u32 2475754826, %v839
        %v846 = vshrl.u32 2131351028, %v840
        %v847 = vor.u32 %v845, %v846
        %v848 = vshll.u32 2131351028, %v839
        %v849 = vshrl.u32 2102212464, %v840
        %v850 = vor.u32 %v848, %v849
        %v851 = vshll.u32 2102212464, %v839
        %v852 = vshrl.u32 920167782, %v840
        %v853 = vor.u32 %v851, %v852
        %v854 = vshll.u32 920167782, %v839
        %v855 = vshrl.u32 1326507024, %v840
        %v856 = vor.u32 %v854, %v855
        %vm857 = vcmp.lt.s32.totalorder %v838, 1
        %vm858 = vcmp.lt.s32.totalorder %v838, 2
        %vm859 = vcmp.lt.s32.totalorder %v838, 3
        %vm860 = vcmp.lt.s32.totalorder %v838, 4
        %v861 = vsel %vm857, %v841, %v844
        %v862 = vsel %vm860, %v850, 2102212464
        %v863 = vsel %vm859, %v847, %v862
        %v864 = vsel %vm858, %v861, %v863
        %v865 = vsel %vm857, %v844, %v847
        %v866 = vsel %vm860, %v853, 920167782
        %v867 = vsel %vm859, %v850, %v866
        %v868 = vsel %vm858, %v865, %v867
        %v869 = vsel %vm857, %v847, %v850
        %v870 = vsel %vm860, %v856, 1326507024
        %v871 = vsel %vm859, %v853, %v870
        %v872 = vsel %vm858, %v869, %v871
        %v873 = vshll.u32 %v833, 8
        %v874 = vmul.u32.u64.compose %v873, %v872
        %v875 = vextract.low.u32 %v874
        %v876 = vextract.high.u32 %v874
        %v877 = vmul.u32.u64.compose %v873, %v868
        %v878 = vextract.low.u32 %v877
        %v879 = vextract.high.u32 %v877
        %v880 = vmul.u32 %v873, %v864
        %v881 = vadd.s32 %v876, %v878
        %vm882 = vc.u32 %v876, %v878
        %v883 = vadd.s32 %v879, 1
        %v884 = vsel %vm882, %v883, %v879
        %v885 = vadd.s32 %v880, %v884
        %v886 = vadd.s32 %v885, 536870912
        %v887 = vshrl.u32 %v886, 30
        %v888 = vshll.u32 %v887, 30
        %v889 = vsub.s32 %v885, %v888
        %vm890 = vcmp.lt.s32.totalorder %v889, 0
        %v891 = vsub.s32 0, %v889
        %v892 = vsel %vm890, %v891, %v889
        %v893 = vclz %v892
        %v894 = vsub.s32 %v893, 2
        %vm895 = vcmp.gt.s32.totalorder 0, %v894
        %v896 = vsel %vm895, 0, %v894
        %v897 = vsub.s32 32, %v896
        %v898 = vshll.u32 %v889, %v896
        %v899 = vshrl.u32 %v881, %v897
        %v900 = vor.u32 %v898, %v899
        %v901 = vsub.s32 4294967266, %v896
        %v902 = vadd.s32 %v901, 127
        %v903 = vshll.u32 %v902, 23
        %v904 = vor.u32 4788187, %v903
        %v905 = vand.u32 2147483647, %v904
        %v907 = vcvt.s32.f32 %v900
        %v908 = vmul.f32 %v907, %v905
        %v909 = vxor.u32 %v908, 2147483648
        %v910 = vsel %vm827, %v909, %v908
        %v911 = vsub.s32 4, %v887
        %v912 = vsel %vm827, %v911, %v887
        %v913 = vsel %vm826, %v391, %v910
        %v914 = vsel %vm826, 0, %v912
        %v915 = vcosq.f32.pop %v913
        %v916 = vsinq.f32.pop %v913
        %vm917 = vweird.f32 %v391
        %v918 = vadd.s32 %v914, 3
        %v919 = vand.u32 %v918, 3
        %vm920 = vcmp.lt.s32.totalorder %v919, 2
        %vm921 = vcmp.eq.s32.totalorder %v919, 0
        %v922 = vxor.u32 %v916, 2147483648
        %v923 = vsel %vm921, %v915, %v922
        %vm924 = vcmp.eq.s32.totalorder %v919, 2
        %v925 = vxor.u32 %v915, 2147483648
        %v926 = vsel %vm924, %v925, %v916
        %v927 = vsel %vm920, %v923, %v926
        %v928 = vsel %vm917, nan, %v927
        %v929 = vand.u32 2147483647, %v392
        %vm930 = vcmp.le.f32.partialorder %v929, 0.7853982
        %vm931 = vcmp.lt.s32.totalorder %v392, 0
        %v932 = vand.u32 %v392, 2139095040
        %v933 = vshrl.u32 %v932, 23
        %v934 = vsub.s32 %v933, 127
        %v935 = vand.u32 2147483647, %v392
        %v936 = vand.u32 %v935, 8388607
        %v937 = vor.u32 %v936, 8388608
        %v938 = vsub.s32 0, %v937
        %v939 = vadd.s32 %v934, 1
        %vm940 = vcmp.gt.s32.totalorder %v939, 0
        %v941 = vsel %vm940, %v939, 0
        %v942 = vshrl.u32 %v941, 5
        %v943 = vand.u32 %v941, 31
        %v944 = vsub.s32 32, %v943
        %v945 = vshrl.u32 683565275, %v944
        %v946 = vshll.u32 683565275, %v943
        %v947 = vshrl.u32 2475754826, %v944
        %v948 = vor.u32 %v946, %v947
        %v949 = vshll.u32 2475754826, %v943
        %v950 = vshrl.u32 2131351028, %v944
        %v951 = vor.u32 %v949, %v950
        %v952 = vshll.u32 2131351028, %v943
        %v953 = vshrl.u32 2102212464, %v944
        %v954 = vor.u32 %v952, %v953
        %v955 = vshll.u32 2102212464, %v943
        %v956 = vshrl.u32 920167782, %v944
        %v957 = vor.u32 %v955, %v956
        %v958 = vshll.u32 920167782, %v943
        %v959 = vshrl.u32 1326507024, %v944
        %v960 = vor.u32 %v958, %v959
        %vm961 = vcmp.lt.s32.totalorder %v942, 1
        %vm962 = vcmp.lt.s32.totalorder %v942, 2
        %vm963 = vcmp.lt.s32.totalorder %v942, 3
        %vm964 = vcmp.lt.s32.totalorder %v942, 4
        %v965 = vsel %vm961, %v945, %v948
        %v966 = vsel %vm964, %v954, 2102212464
        %v967 = vsel %vm963, %v951, %v966
        %v968 = vsel %vm962, %v965, %v967
        %v969 = vsel %vm961, %v948, %v951
        %v970 = vsel %vm964, %v957, 920167782
        %v971 = vsel %vm963, %v954, %v970
        %v972 = vsel %vm962, %v969, %v971
        %v973 = vsel %vm961, %v951, %v954
        %v974 = vsel %vm964, %v960, 1326507024
        %v975 = vsel %vm963, %v957, %v974
        %v976 = vsel %vm962, %v973, %v975
        %v977 = vshll.u32 %v937, 8
        %v978 = vmul.u32.u64.compose %v977, %v976
        %v979 = vextract.low.u32 %v978
        %v980 = vextract.high.u32 %v978
        %v981 = vmul.u32.u64.compose %v977, %v972
        %v982 = vextract.low.u32 %v981
        %v983 = vextract.high.u32 %v981
        %v984 = vmul.u32 %v977, %v968
        %v985 = vadd.s32 %v980, %v982
        %vm986 = vc.u32 %v980, %v982
        %v987 = vadd.s32 %v983, 1
        %v988 = vsel %vm986, %v987, %v983
        %v989 = vadd.s32 %v984, %v988
        %v990 = vadd.s32 %v989, 536870912
        %v991 = vshrl.u32 %v990, 30
        %v992 = vshll.u32 %v991, 30
        %v993 = vsub.s32 %v989, %v992
        %vm994 = vcmp.lt.s32.totalorder %v993, 0
        %v995 = vsub.s32 0, %v993
        %v996 = vsel %vm994, %v995, %v993
        %v997 = vclz %v996
        %v998 = vsub.s32 %v997, 2
        %vm999 = vcmp.gt.s32.totalorder 0, %v998
        %v1000 = vsel %vm999, 0, %v998
        %v1001 = vsub.s32 32, %v1000
        %v1002 = vshll.u32 %v993, %v1000
        %v1003 = vshrl.u32 %v985, %v1001
        %v1004 = vor.u32 %v1002, %v1003
        %v1005 = vsub.s32 4294967266, %v1000
        %v1006 = vadd.s32 %v1005, 127
        %v1007 = vshll.u32 %v1006, 23
        %v1008 = vor.u32 4788187, %v1007
        %v1009 = vand.u32 2147483647, %v1008
        %v1011 = vcvt.s32.f32 %v1004
        %v1012 = vmul.f32 %v1011, %v1009
        %v1013 = vxor.u32 %v1012, 2147483648
        %v1014 = vsel %vm931, %v1013, %v1012
        %v1015 = vsub.s32 4, %v991
        %v1016 = vsel %vm931, %v1015, %v991
        %v1017 = vsel %vm930, %v392, %v1014
        %v1018 = vsel %vm930, 0, %v1016
        %v1019 = vcosq.f32.pop %v1017
        %v1020 = vsinq.f32.pop %v1017
        %vm1021 = vweird.f32 %v392
        %v1022 = vadd.s32 %v1018, 3
        %v1023 = vand.u32 %v1022, 3
        %vm1024 = vcmp.lt.s32.totalorder %v1023, 2
        %vm1025 = vcmp.eq.s32.totalorder %v1023, 0
        %v1026 = vxor.u32 %v1020, 2147483648
        %v1027 = vsel %vm1025, %v1019, %v1026
        %vm1028 = vcmp.eq.s32.totalorder %v1023, 2
        %v1029 = vxor.u32 %v1019, 2147483648
        %v1030 = vsel %vm1028, %v1029, %v1020
        %v1031 = vsel %vm1024, %v1027, %v1030
        %v1032 = vsel %vm1021, nan, %v1031
        %v1033 = vand.u32 2147483647, %v393
        %vm1034 = vcmp.le.f32.partialorder %v1033, 0.7853982
        %vm1035 = vcmp.lt.s32.totalorder %v393, 0
        %v1036 = vand.u32 %v393, 2139095040
        %v1037 = vshrl.u32 %v1036, 23
        %v1038 = vsub.s32 %v1037, 127
        %v1039 = vand.u32 2147483647, %v393
        %v1040 = vand.u32 %v1039, 8388607
        %v1041 = vor.u32 %v1040, 8388608
        %v1042 = vsub.s32 0, %v1041
        %v1043 = vadd.s32 %v1038, 1
        %vm1044 = vcmp.gt.s32.totalorder %v1043, 0
        %v1045 = vsel %vm1044, %v1043, 0
        %v1046 = vshrl.u32 %v1045, 5
        %v1047 = vand.u32 %v1045, 31
        %v1048 = vsub.s32 32, %v1047
        %v1049 = vshrl.u32 683565275, %v1048
        %v1050 = vshll.u32 683565275, %v1047
        %v1051 = vshrl.u32 2475754826, %v1048
        %v1052 = vor.u32 %v1050, %v1051
        %v1053 = vshll.u32 2475754826, %v1047
        %v1054 = vshrl.u32 2131351028, %v1048
        %v1055 = vor.u32 %v1053, %v1054
        %v1056 = vshll.u32 2131351028, %v1047
        %v1057 = vshrl.u32 2102212464, %v1048
        %v1058 = vor.u32 %v1056, %v1057
        %v1059 = vshll.u32 2102212464, %v1047
        %v1060 = vshrl.u32 920167782, %v1048
        %v1061 = vor.u32 %v1059, %v1060
        %v1062 = vshll.u32 920167782, %v1047
        %v1063 = vshrl.u32 1326507024, %v1048
        %v1064 = vor.u32 %v1062, %v1063
        %vm1065 = vcmp.lt.s32.totalorder %v1046, 1
        %vm1066 = vcmp.lt.s32.totalorder %v1046, 2
        %vm1067 = vcmp.lt.s32.totalorder %v1046, 3
        %vm1068 = vcmp.lt.s32.totalorder %v1046, 4
        %v1069 = vsel %vm1065, %v1049, %v1052
        %v1070 = vsel %vm1068, %v1058, 2102212464
        %v1071 = vsel %vm1067, %v1055, %v1070
        %v1072 = vsel %vm1066, %v1069, %v1071
        %v1073 = vsel %vm1065, %v1052, %v1055
        %v1074 = vsel %vm1068, %v1061, 920167782
        %v1075 = vsel %vm1067, %v1058, %v1074
        %v1076 = vsel %vm1066, %v1073, %v1075
        %v1077 = vsel %vm1065, %v1055, %v1058
        %v1078 = vsel %vm1068, %v1064, 1326507024
        %v1079 = vsel %vm1067, %v1061, %v1078
        %v1080 = vsel %vm1066, %v1077, %v1079
        %v1081 = vshll.u32 %v1041, 8
        %v1082 = vmul.u32.u64.compose %v1081, %v1080
        %v1083 = vextract.low.u32 %v1082
        %v1084 = vextract.high.u32 %v1082
        %v1085 = vmul.u32.u64.compose %v1081, %v1076
        %v1086 = vextract.low.u32 %v1085
        %v1087 = vextract.high.u32 %v1085
        %v1088 = vmul.u32 %v1081, %v1072
        %v1089 = vadd.s32 %v1084, %v1086
        %vm1090 = vc.u32 %v1084, %v1086
        %v1091 = vadd.s32 %v1087, 1
        %v1092 = vsel %vm1090, %v1091, %v1087
        %v1093 = vadd.s32 %v1088, %v1092
        %v1094 = vadd.s32 %v1093, 536870912
        %v1095 = vshrl.u32 %v1094, 30
        %v1096 = vshll.u32 %v1095, 30
        %v1097 = vsub.s32 %v1093, %v1096
        %vm1098 = vcmp.lt.s32.totalorder %v1097, 0
        %v1099 = vsub.s32 0, %v1097
        %v1100 = vsel %vm1098, %v1099, %v1097
        %v1101 = vclz %v1100
        %v1102 = vsub.s32 %v1101, 2
        %vm1103 = vcmp.gt.s32.totalorder 0, %v1102
        %v1104 = vsel %vm1103, 0, %v1102
        %v1105 = vsub.s32 32, %v1104
        %v1106 = vshll.u32 %v1097, %v1104
        %v1107 = vshrl.u32 %v1089, %v1105
        %v1108 = vor.u32 %v1106, %v1107
        %v1109 = vsub.s32 4294967266, %v1104
        %v1110 = vadd.s32 %v1109, 127
        %v1111 = vshll.u32 %v1110, 23
        %v1112 = vor.u32 4788187, %v1111
        %v1113 = vand.u32 2147483647, %v1112
        %v1115 = vcvt.s32.f32 %v1108
        %v1116 = vmul.f32 %v1115, %v1113
        %v1117 = vxor.u32 %v1116, 2147483648
        %v1118 = vsel %vm1035, %v1117, %v1116
        %v1119 = vsub.s32 4, %v1095
        %v1120 = vsel %vm1035, %v1119, %v1095
        %v1121 = vsel %vm1034, %v393, %v1118
        %v1122 = vsel %vm1034, 0, %v1120
        %v1123 = vcosq.f32.pop %v1121
        %v1124 = vsinq.f32.pop %v1121
        %vm1125 = vweird.f32 %v393
        %v1126 = vadd.s32 %v1122, 3
        %v1127 = vand.u32 %v1126, 3
        %vm1128 = vcmp.lt.s32.totalorder %v1127, 2
        %vm1129 = vcmp.eq.s32.totalorder %v1127, 0
        %v1130 = vxor.u32 %v1124, 2147483648
        %v1131 = vsel %vm1129, %v1123, %v1130
        %vm1132 = vcmp.eq.s32.totalorder %v1127, 2
        %v1133 = vxor.u32 %v1123, 2147483648
        %v1134 = vsel %vm1132, %v1133, %v1124
        %v1135 = vsel %vm1128, %v1131, %v1134
        %v1136 = vsel %vm1125, nan, %v1135
        %v1137 = vand.u32 2147483647, %v394
        %vm1138 = vcmp.le.f32.partialorder %v1137, 0.7853982
        %vm1139 = vcmp.lt.s32.totalorder %v394, 0
        %v1140 = vand.u32 %v394, 2139095040
        %v1141 = vshrl.u32 %v1140, 23
        %v1142 = vsub.s32 %v1141, 127
        %v1143 = vand.u32 2147483647, %v394
        %v1144 = vand.u32 %v1143, 8388607
        %v1145 = vor.u32 %v1144, 8388608
        %v1146 = vsub.s32 0, %v1145
        %v1147 = vadd.s32 %v1142, 1
        %vm1148 = vcmp.gt.s32.totalorder %v1147, 0
        %v1149 = vsel %vm1148, %v1147, 0
        %v1150 = vshrl.u32 %v1149, 5
        %v1151 = vand.u32 %v1149, 31
        %v1152 = vsub.s32 32, %v1151
        %v1153 = vshrl.u32 683565275, %v1152
        %v1154 = vshll.u32 683565275, %v1151
        %v1155 = vshrl.u32 2475754826, %v1152
        %v1156 = vor.u32 %v1154, %v1155
        %v1157 = vshll.u32 2475754826, %v1151
        %v1158 = vshrl.u32 2131351028, %v1152
        %v1159 = vor.u32 %v1157, %v1158
        %v1160 = vshll.u32 2131351028, %v1151
        %v1161 = vshrl.u32 2102212464, %v1152
        %v1162 = vor.u32 %v1160, %v1161
        %v1163 = vshll.u32 2102212464, %v1151
        %v1164 = vshrl.u32 920167782, %v1152
        %v1165 = vor.u32 %v1163, %v1164
        %v1166 = vshll.u32 920167782, %v1151
        %v1167 = vshrl.u32 1326507024, %v1152
        %v1168 = vor.u32 %v1166, %v1167
        %vm1169 = vcmp.lt.s32.totalorder %v1150, 1
        %vm1170 = vcmp.lt.s32.totalorder %v1150, 2
        %vm1171 = vcmp.lt.s32.totalorder %v1150, 3
        %vm1172 = vcmp.lt.s32.totalorder %v1150, 4
        %v1173 = vsel %vm1169, %v1153, %v1156
        %v1174 = vsel %vm1172, %v1162, 2102212464
        %v1175 = vsel %vm1171, %v1159, %v1174
        %v1176 = vsel %vm1170, %v1173, %v1175
        %v1177 = vsel %vm1169, %v1156, %v1159
        %v1178 = vsel %vm1172, %v1165, 920167782
        %v1179 = vsel %vm1171, %v1162, %v1178
        %v1180 = vsel %vm1170, %v1177, %v1179
        %v1181 = vsel %vm1169, %v1159, %v1162
        %v1182 = vsel %vm1172, %v1168, 1326507024
        %v1183 = vsel %vm1171, %v1165, %v1182
        %v1184 = vsel %vm1170, %v1181, %v1183
        %v1185 = vshll.u32 %v1145, 8
        %v1186 = vmul.u32.u64.compose %v1185, %v1184
        %v1187 = vextract.low.u32 %v1186
        %v1188 = vextract.high.u32 %v1186
        %v1189 = vmul.u32.u64.compose %v1185, %v1180
        %v1190 = vextract.low.u32 %v1189
        %v1191 = vextract.high.u32 %v1189
        %v1192 = vmul.u32 %v1185, %v1176
        %v1193 = vadd.s32 %v1188, %v1190
        %vm1194 = vc.u32 %v1188, %v1190
        %v1195 = vadd.s32 %v1191, 1
        %v1196 = vsel %vm1194, %v1195, %v1191
        %v1197 = vadd.s32 %v1192, %v1196
        %v1198 = vadd.s32 %v1197, 536870912
        %v1199 = vshrl.u32 %v1198, 30
        %v1200 = vshll.u32 %v1199, 30
        %v1201 = vsub.s32 %v1197, %v1200
        %vm1202 = vcmp.lt.s32.totalorder %v1201, 0
        %v1203 = vsub.s32 0, %v1201
        %v1204 = vsel %vm1202, %v1203, %v1201
        %v1205 = vclz %v1204
        %v1206 = vsub.s32 %v1205, 2
        %vm1207 = vcmp.gt.s32.totalorder 0, %v1206
        %v1208 = vsel %vm1207, 0, %v1206
        %v1209 = vsub.s32 32, %v1208
        %v1210 = vshll.u32 %v1201, %v1208
        %v1211 = vshrl.u32 %v1193, %v1209
        %v1212 = vor.u32 %v1210, %v1211
        %v1213 = vsub.s32 4294967266, %v1208
        %v1214 = vadd.s32 %v1213, 127
        %v1215 = vshll.u32 %v1214, 23
        %v1216 = vor.u32 4788187, %v1215
        %v1217 = vand.u32 2147483647, %v1216
        %v1219 = vcvt.s32.f32 %v1212
        %v1220 = vmul.f32 %v1219, %v1217
        %v1221 = vxor.u32 %v1220, 2147483648
        %v1222 = vsel %vm1139, %v1221, %v1220
        %v1223 = vsub.s32 4, %v1199
        %v1224 = vsel %vm1139, %v1223, %v1199
        %v1225 = vsel %vm1138, %v394, %v1222
        %v1226 = vsel %vm1138, 0, %v1224
        %v1227 = vcosq.f32.pop %v1225
        %v1228 = vsinq.f32.pop %v1225
        %vm1229 = vweird.f32 %v394
        %v1230 = vadd.s32 %v1226, 3
        %v1231 = vand.u32 %v1230, 3
        %vm1232 = vcmp.lt.s32.totalorder %v1231, 2
        %vm1233 = vcmp.eq.s32.totalorder %v1231, 0
        %v1234 = vxor.u32 %v1228, 2147483648
        %v1235 = vsel %vm1233, %v1227, %v1234
        %vm1236 = vcmp.eq.s32.totalorder %v1231, 2
        %v1237 = vxor.u32 %v1227, 2147483648
        %v1238 = vsel %vm1236, %v1237, %v1228
        %v1239 = vsel %vm1232, %v1235, %v1238
        %v1240 = vsel %vm1229, nan, %v1239
        %v1241 = vand.u32 2147483647, %v395
        %vm1242 = vcmp.le.f32.partialorder %v1241, 0.7853982
        %vm1243 = vcmp.lt.s32.totalorder %v395, 0
        %v1244 = vand.u32 %v395, 2139095040
        %v1245 = vshrl.u32 %v1244, 23
        %v1246 = vsub.s32 %v1245, 127
        %v1247 = vand.u32 2147483647, %v395
        %v1248 = vand.u32 %v1247, 8388607
        %v1249 = vor.u32 %v1248, 8388608
        %v1250 = vsub.s32 0, %v1249
        %v1251 = vadd.s32 %v1246, 1
        %vm1252 = vcmp.gt.s32.totalorder %v1251, 0
        %v1253 = vsel %vm1252, %v1251, 0
        %v1254 = vshrl.u32 %v1253, 5
        %v1255 = vand.u32 %v1253, 31
        %v1256 = vsub.s32 32, %v1255
        %v1257 = vshrl.u32 683565275, %v1256
        %v1258 = vshll.u32 683565275, %v1255
        %v1259 = vshrl.u32 2475754826, %v1256
        %v1260 = vor.u32 %v1258, %v1259
        %v1261 = vshll.u32 2475754826, %v1255
        %v1262 = vshrl.u32 2131351028, %v1256
        %v1263 = vor.u32 %v1261, %v1262
        %v1264 = vshll.u32 2131351028, %v1255
        %v1265 = vshrl.u32 2102212464, %v1256
        %v1266 = vor.u32 %v1264, %v1265
        %v1267 = vshll.u32 2102212464, %v1255
        %v1268 = vshrl.u32 920167782, %v1256
        %v1269 = vor.u32 %v1267, %v1268
        %v1270 = vshll.u32 920167782, %v1255
        %v1271 = vshrl.u32 1326507024, %v1256
        %v1272 = vor.u32 %v1270, %v1271
        %vm1273 = vcmp.lt.s32.totalorder %v1254, 1
        %vm1274 = vcmp.lt.s32.totalorder %v1254, 2
        %vm1275 = vcmp.lt.s32.totalorder %v1254, 3
        %vm1276 = vcmp.lt.s32.totalorder %v1254, 4
        %v1277 = vsel %vm1273, %v1257, %v1260
        %v1278 = vsel %vm1276, %v1266, 2102212464
        %v1279 = vsel %vm1275, %v1263, %v1278
        %v1280 = vsel %vm1274, %v1277, %v1279
        %v1281 = vsel %vm1273, %v1260, %v1263
        %v1282 = vsel %vm1276, %v1269, 920167782
        %v1283 = vsel %vm1275, %v1266, %v1282
        %v1284 = vsel %vm1274, %v1281, %v1283
        %v1285 = vsel %vm1273, %v1263, %v1266
        %v1286 = vsel %vm1276, %v1272, 1326507024
        %v1287 = vsel %vm1275, %v1269, %v1286
        %v1288 = vsel %vm1274, %v1285, %v1287
        %v1289 = vshll.u32 %v1249, 8
        %v1290 = vmul.u32.u64.compose %v1289, %v1288
        %v1291 = vextract.low.u32 %v1290
        %v1292 = vextract.high.u32 %v1290
        %v1293 = vmul.u32.u64.compose %v1289, %v1284
        %v1294 = vextract.low.u32 %v1293
        %v1295 = vextract.high.u32 %v1293
        %v1296 = vmul.u32 %v1289, %v1280
        %v1297 = vadd.s32 %v1292, %v1294
        %vm1298 = vc.u32 %v1292, %v1294
        %v1299 = vadd.s32 %v1295, 1
        %v1300 = vsel %vm1298, %v1299, %v1295
        %v1301 = vadd.s32 %v1296, %v1300
        %v1302 = vadd.s32 %v1301, 536870912
        %v1303 = vshrl.u32 %v1302, 30
        %v1304 = vshll.u32 %v1303, 30
        %v1305 = vsub.s32 %v1301, %v1304
        %vm1306 = vcmp.lt.s32.totalorder %v1305, 0
        %v1307 = vsub.s32 0, %v1305
        %v1308 = vsel %vm1306, %v1307, %v1305
        %v1309 = vclz %v1308
        %v1310 = vsub.s32 %v1309, 2
        %vm1311 = vcmp.gt.s32.totalorder 0, %v1310
        %v1312 = vsel %vm1311, 0, %v1310
        %v1313 = vsub.s32 32, %v1312
        %v1314 = vshll.u32 %v1305, %v1312
        %v1315 = vshrl.u32 %v1297, %v1313
        %v1316 = vor.u32 %v1314, %v1315
        %v1317 = vsub.s32 4294967266, %v1312
        %v1318 = vadd.s32 %v1317, 127
        %v1319 = vshll.u32 %v1318, 23
        %v1320 = vor.u32 4788187, %v1319
        %v1321 = vand.u32 2147483647, %v1320
        %v1323 = vcvt.s32.f32 %v1316
        %v1324 = vmul.f32 %v1323, %v1321
        %v1325 = vxor.u32 %v1324, 2147483648
        %v1326 = vsel %vm1243, %v1325, %v1324
        %v1327 = vsub.s32 4, %v1303
        %v1328 = vsel %vm1243, %v1327, %v1303
        %v1329 = vsel %vm1242, %v395, %v1326
        %v1330 = vsel %vm1242, 0, %v1328
        %v1331 = vcosq.f32.pop %v1329
        %v1332 = vsinq.f32.pop %v1329
        %vm1333 = vweird.f32 %v395
        %v1334 = vadd.s32 %v1330, 3
        %v1335 = vand.u32 %v1334, 3
        %vm1336 = vcmp.lt.s32.totalorder %v1335, 2
        %vm1337 = vcmp.eq.s32.totalorder %v1335, 0
        %v1338 = vxor.u32 %v1332, 2147483648
        %v1339 = vsel %vm1337, %v1331, %v1338
        %vm1340 = vcmp.eq.s32.totalorder %v1335, 2
        %v1341 = vxor.u32 %v1331, 2147483648
        %v1342 = vsel %vm1340, %v1341, %v1332
        %v1343 = vsel %vm1336, %v1339, %v1342
        %v1344 = vsel %vm1333, nan, %v1343
        %v1345 = vand.u32 2147483647, %v396
        %vm1346 = vcmp.le.f32.partialorder %v1345, 0.7853982
        %vm1347 = vcmp.lt.s32.totalorder %v396, 0
        %v1348 = vand.u32 %v396, 2139095040
        %v1349 = vshrl.u32 %v1348, 23
        %v1350 = vsub.s32 %v1349, 127
        %v1351 = vand.u32 2147483647, %v396
        %v1352 = vand.u32 %v1351, 8388607
        %v1353 = vor.u32 %v1352, 8388608
        %v1354 = vsub.s32 0, %v1353
        %v1355 = vadd.s32 %v1350, 1
        %vm1356 = vcmp.gt.s32.totalorder %v1355, 0
        %v1357 = vsel %vm1356, %v1355, 0
        %v1358 = vshrl.u32 %v1357, 5
        %v1359 = vand.u32 %v1357, 31
        %v1360 = vsub.s32 32, %v1359
        %v1361 = vshrl.u32 683565275, %v1360
        %v1362 = vshll.u32 683565275, %v1359
        %v1363 = vshrl.u32 2475754826, %v1360
        %v1364 = vor.u32 %v1362, %v1363
        %v1365 = vshll.u32 2475754826, %v1359
        %v1366 = vshrl.u32 2131351028, %v1360
        %v1367 = vor.u32 %v1365, %v1366
        %v1368 = vshll.u32 2131351028, %v1359
        %v1369 = vshrl.u32 2102212464, %v1360
        %v1370 = vor.u32 %v1368, %v1369
        %v1371 = vshll.u32 2102212464, %v1359
        %v1372 = vshrl.u32 920167782, %v1360
        %v1373 = vor.u32 %v1371, %v1372
        %v1374 = vshll.u32 920167782, %v1359
        %v1375 = vshrl.u32 1326507024, %v1360
        %v1376 = vor.u32 %v1374, %v1375
        %vm1377 = vcmp.lt.s32.totalorder %v1358, 1
        %vm1378 = vcmp.lt.s32.totalorder %v1358, 2
        %vm1379 = vcmp.lt.s32.totalorder %v1358, 3
        %vm1380 = vcmp.lt.s32.totalorder %v1358, 4
        %v1381 = vsel %vm1377, %v1361, %v1364
        %v1382 = vsel %vm1380, %v1370, 2102212464
        %v1383 = vsel %vm1379, %v1367, %v1382
        %v1384 = vsel %vm1378, %v1381, %v1383
        %v1385 = vsel %vm1377, %v1364, %v1367
        %v1386 = vsel %vm1380, %v1373, 920167782
        %v1387 = vsel %vm1379, %v1370, %v1386
        %v1388 = vsel %vm1378, %v1385, %v1387
        %v1389 = vsel %vm1377, %v1367, %v1370
        %v1390 = vsel %vm1380, %v1376, 1326507024
        %v1391 = vsel %vm1379, %v1373, %v1390
        %v1392 = vsel %vm1378, %v1389, %v1391
        %v1393 = vshll.u32 %v1353, 8
        %v1394 = vmul.u32.u64.compose %v1393, %v1392
        %v1395 = vextract.low.u32 %v1394
        %v1396 = vextract.high.u32 %v1394
        %v1397 = vmul.u32.u64.compose %v1393, %v1388
        %v1398 = vextract.low.u32 %v1397
        %v1399 = vextract.high.u32 %v1397
        %v1400 = vmul.u32 %v1393, %v1384
        %v1401 = vadd.s32 %v1396, %v1398
        %vm1402 = vc.u32 %v1396, %v1398
        %v1403 = vadd.s32 %v1399, 1
        %v1404 = vsel %vm1402, %v1403, %v1399
        %v1405 = vadd.s32 %v1400, %v1404
        %v1406 = vadd.s32 %v1405, 536870912
        %v1407 = vshrl.u32 %v1406, 30
        %v1408 = vshll.u32 %v1407, 30
        %v1409 = vsub.s32 %v1405, %v1408
        %vm1410 = vcmp.lt.s32.totalorder %v1409, 0
        %v1411 = vsub.s32 0, %v1409
        %v1412 = vsel %vm1410, %v1411, %v1409
        %v1413 = vclz %v1412
        %v1414 = vsub.s32 %v1413, 2
        %vm1415 = vcmp.gt.s32.totalorder 0, %v1414
        %v1416 = vsel %vm1415, 0, %v1414
        %v1417 = vsub.s32 32, %v1416
        %v1418 = vshll.u32 %v1409, %v1416
        %v1419 = vshrl.u32 %v1401, %v1417
        %v1420 = vor.u32 %v1418, %v1419
        %v1421 = vsub.s32 4294967266, %v1416
        %v1422 = vadd.s32 %v1421, 127
        %v1423 = vshll.u32 %v1422, 23
        %v1424 = vor.u32 4788187, %v1423
        %v1425 = vand.u32 2147483647, %v1424
        %v1427 = vcvt.s32.f32 %v1420
        %v1428 = vmul.f32 %v1427, %v1425
        %v1429 = vxor.u32 %v1428, 2147483648
        %v1430 = vsel %vm1347, %v1429, %v1428
        %v1431 = vsub.s32 4, %v1407
        %v1432 = vsel %vm1347, %v1431, %v1407
        %v1433 = vsel %vm1346, %v396, %v1430
        %v1434 = vsel %vm1346, 0, %v1432
        %v1435 = vcosq.f32.pop %v1433
        %v1436 = vsinq.f32.pop %v1433
        %vm1437 = vweird.f32 %v396
        %v1438 = vadd.s32 %v1434, 3
        %v1439 = vand.u32 %v1438, 3
        %vm1440 = vcmp.lt.s32.totalorder %v1439, 2
        %vm1441 = vcmp.eq.s32.totalorder %v1439, 0
        %v1442 = vxor.u32 %v1436, 2147483648
        %v1443 = vsel %vm1441, %v1435, %v1442
        %vm1444 = vcmp.eq.s32.totalorder %v1439, 2
        %v1445 = vxor.u32 %v1435, 2147483648
        %v1446 = vsel %vm1444, %v1445, %v1436
        %v1447 = vsel %vm1440, %v1443, %v1446
        %v1448 = vsel %vm1437, nan, %v1447
        %v1449 = vand.u32 2147483647, %v397
        %vm1450 = vcmp.le.f32.partialorder %v1449, 0.7853982
        %vm1451 = vcmp.lt.s32.totalorder %v397, 0
        %v1452 = vand.u32 %v397, 2139095040
        %v1453 = vshrl.u32 %v1452, 23
        %v1454 = vsub.s32 %v1453, 127
        %v1455 = vand.u32 2147483647, %v397
        %v1456 = vand.u32 %v1455, 8388607
        %v1457 = vor.u32 %v1456, 8388608
        %v1458 = vsub.s32 0, %v1457
        %v1459 = vadd.s32 %v1454, 1
        %vm1460 = vcmp.gt.s32.totalorder %v1459, 0
        %v1461 = vsel %vm1460, %v1459, 0
        %v1462 = vshrl.u32 %v1461, 5
        %v1463 = vand.u32 %v1461, 31
        %v1464 = vsub.s32 32, %v1463
        %v1465 = vshrl.u32 683565275, %v1464
        %v1466 = vshll.u32 683565275, %v1463
        %v1467 = vshrl.u32 2475754826, %v1464
        %v1468 = vor.u32 %v1466, %v1467
        %v1469 = vshll.u32 2475754826, %v1463
        %v1470 = vshrl.u32 2131351028, %v1464
        %v1471 = vor.u32 %v1469, %v1470
        %v1472 = vshll.u32 2131351028, %v1463
        %v1473 = vshrl.u32 2102212464, %v1464
        %v1474 = vor.u32 %v1472, %v1473
        %v1475 = vshll.u32 2102212464, %v1463
        %v1476 = vshrl.u32 920167782, %v1464
        %v1477 = vor.u32 %v1475, %v1476
        %v1478 = vshll.u32 920167782, %v1463
        %v1479 = vshrl.u32 1326507024, %v1464
        %v1480 = vor.u32 %v1478, %v1479
        %vm1481 = vcmp.lt.s32.totalorder %v1462, 1
        %vm1482 = vcmp.lt.s32.totalorder %v1462, 2
        %vm1483 = vcmp.lt.s32.totalorder %v1462, 3
        %vm1484 = vcmp.lt.s32.totalorder %v1462, 4
        %v1485 = vsel %vm1481, %v1465, %v1468
        %v1486 = vsel %vm1484, %v1474, 2102212464
        %v1487 = vsel %vm1483, %v1471, %v1486
        %v1488 = vsel %vm1482, %v1485, %v1487
        %v1489 = vsel %vm1481, %v1468, %v1471
        %v1490 = vsel %vm1484, %v1477, 920167782
        %v1491 = vsel %vm1483, %v1474, %v1490
        %v1492 = vsel %vm1482, %v1489, %v1491
        %v1493 = vsel %vm1481, %v1471, %v1474
        %v1494 = vsel %vm1484, %v1480, 1326507024
        %v1495 = vsel %vm1483, %v1477, %v1494
        %v1496 = vsel %vm1482, %v1493, %v1495
        %v1497 = vshll.u32 %v1457, 8
        %v1498 = vmul.u32.u64.compose %v1497, %v1496
        %v1499 = vextract.low.u32 %v1498
        %v1500 = vextract.high.u32 %v1498
        %v1501 = vmul.u32.u64.compose %v1497, %v1492
        %v1502 = vextract.low.u32 %v1501
        %v1503 = vextract.high.u32 %v1501
        %v1504 = vmul.u32 %v1497, %v1488
        %v1505 = vadd.s32 %v1500, %v1502
        %vm1506 = vc.u32 %v1500, %v1502
        %v1507 = vadd.s32 %v1503, 1
        %v1508 = vsel %vm1506, %v1507, %v1503
        %v1509 = vadd.s32 %v1504, %v1508
        %v1510 = vadd.s32 %v1509, 536870912
        %v1511 = vshrl.u32 %v1510, 30
        %v1512 = vshll.u32 %v1511, 30
        %v1513 = vsub.s32 %v1509, %v1512
        %vm1514 = vcmp.lt.s32.totalorder %v1513, 0
        %v1515 = vsub.s32 0, %v1513
        %v1516 = vsel %vm1514, %v1515, %v1513
        %v1517 = vclz %v1516
        %v1518 = vsub.s32 %v1517, 2
        %vm1519 = vcmp.gt.s32.totalorder 0, %v1518
        %v1520 = vsel %vm1519, 0, %v1518
        %v1521 = vsub.s32 32, %v1520
        %v1522 = vshll.u32 %v1513, %v1520
        %v1523 = vshrl.u32 %v1505, %v1521
        %v1524 = vor.u32 %v1522, %v1523
        %v1525 = vsub.s32 4294967266, %v1520
        %v1526 = vadd.s32 %v1525, 127
        %v1527 = vshll.u32 %v1526, 23
        %v1528 = vor.u32 4788187, %v1527
        %v1529 = vand.u32 2147483647, %v1528
        %v1531 = vcvt.s32.f32 %v1524
        %v1532 = vmul.f32 %v1531, %v1529
        %v1533 = vxor.u32 %v1532, 2147483648
        %v1534 = vsel %vm1451, %v1533, %v1532
        %v1535 = vsub.s32 4, %v1511
        %v1536 = vsel %vm1451, %v1535, %v1511
        %v1537 = vsel %vm1450, %v397, %v1534
        %v1538 = vsel %vm1450, 0, %v1536
        %v1539 = vcosq.f32.pop %v1537
        %v1540 = vsinq.f32.pop %v1537
        %vm1541 = vweird.f32 %v397
        %v1542 = vadd.s32 %v1538, 3
        %v1543 = vand.u32 %v1542, 3
        %vm1544 = vcmp.lt.s32.totalorder %v1543, 2
        %vm1545 = vcmp.eq.s32.totalorder %v1543, 0
        %v1546 = vxor.u32 %v1540, 2147483648
        %v1547 = vsel %vm1545, %v1539, %v1546
        %vm1548 = vcmp.eq.s32.totalorder %v1543, 2
        %v1549 = vxor.u32 %v1539, 2147483648
        %v1550 = vsel %vm1548, %v1549, %v1540
        %v1551 = vsel %vm1544, %v1547, %v1550
        %v1552 = vsel %vm1541, nan, %v1551
        %v1553 = vand.u32 2147483647, %v398
        %vm1554 = vcmp.le.f32.partialorder %v1553, 0.7853982
        %vm1555 = vcmp.lt.s32.totalorder %v398, 0
        %v1556 = vand.u32 %v398, 2139095040
        %v1557 = vshrl.u32 %v1556, 23
        %v1558 = vsub.s32 %v1557, 127
        %v1559 = vand.u32 2147483647, %v398
        %v1560 = vand.u32 %v1559, 8388607
        %v1561 = vor.u32 %v1560, 8388608
        %v1562 = vsub.s32 0, %v1561
        %v1563 = vadd.s32 %v1558, 1
        %vm1564 = vcmp.gt.s32.totalorder %v1563, 0
        %v1565 = vsel %vm1564, %v1563, 0
        %v1566 = vshrl.u32 %v1565, 5
        %v1567 = vand.u32 %v1565, 31
        %v1568 = vsub.s32 32, %v1567
        %v1569 = vshrl.u32 683565275, %v1568
        %v1570 = vshll.u32 683565275, %v1567
        %v1571 = vshrl.u32 2475754826, %v1568
        %v1572 = vor.u32 %v1570, %v1571
        %v1573 = vshll.u32 2475754826, %v1567
        %v1574 = vshrl.u32 2131351028, %v1568
        %v1575 = vor.u32 %v1573, %v1574
        %v1576 = vshll.u32 2131351028, %v1567
        %v1577 = vshrl.u32 2102212464, %v1568
        %v1578 = vor.u32 %v1576, %v1577
        %v1579 = vshll.u32 2102212464, %v1567
        %v1580 = vshrl.u32 920167782, %v1568
        %v1581 = vor.u32 %v1579, %v1580
        %v1582 = vshll.u32 920167782, %v1567
        %v1583 = vshrl.u32 1326507024, %v1568
        %v1584 = vor.u32 %v1582, %v1583
        %vm1585 = vcmp.lt.s32.totalorder %v1566, 1
        %vm1586 = vcmp.lt.s32.totalorder %v1566, 2
        %vm1587 = vcmp.lt.s32.totalorder %v1566, 3
        %vm1588 = vcmp.lt.s32.totalorder %v1566, 4
        %v1589 = vsel %vm1585, %v1569, %v1572
        %v1590 = vsel %vm1588, %v1578, 2102212464
        %v1591 = vsel %vm1587, %v1575, %v1590
        %v1592 = vsel %vm1586, %v1589, %v1591
        %v1593 = vsel %vm1585, %v1572, %v1575
        %v1594 = vsel %vm1588, %v1581, 920167782
        %v1595 = vsel %vm1587, %v1578, %v1594
        %v1596 = vsel %vm1586, %v1593, %v1595
        %v1597 = vsel %vm1585, %v1575, %v1578
        %v1598 = vsel %vm1588, %v1584, 1326507024
        %v1599 = vsel %vm1587, %v1581, %v1598
        %v1600 = vsel %vm1586, %v1597, %v1599
        %v1601 = vshll.u32 %v1561, 8
        %v1602 = vmul.u32.u64.compose %v1601, %v1600
        %v1603 = vextract.low.u32 %v1602
        %v1604 = vextract.high.u32 %v1602
        %v1605 = vmul.u32.u64.compose %v1601, %v1596
        %v1606 = vextract.low.u32 %v1605
        %v1607 = vextract.high.u32 %v1605
        %v1608 = vmul.u32 %v1601, %v1592
        %v1609 = vadd.s32 %v1604, %v1606
        %vm1610 = vc.u32 %v1604, %v1606
        %v1611 = vadd.s32 %v1607, 1
        %v1612 = vsel %vm1610, %v1611, %v1607
        %v1613 = vadd.s32 %v1608, %v1612
        %v1614 = vadd.s32 %v1613, 536870912
        %v1615 = vshrl.u32 %v1614, 30
        %v1616 = vshll.u32 %v1615, 30
        %v1617 = vsub.s32 %v1613, %v1616
        %vm1618 = vcmp.lt.s32.totalorder %v1617, 0
        %v1619 = vsub.s32 0, %v1617
        %v1620 = vsel %vm1618, %v1619, %v1617
        %v1621 = vclz %v1620
        %v1622 = vsub.s32 %v1621, 2
        %vm1623 = vcmp.gt.s32.totalorder 0, %v1622
        %v1624 = vsel %vm1623, 0, %v1622
        %v1625 = vsub.s32 32, %v1624
        %v1626 = vshll.u32 %v1617, %v1624
        %v1627 = vshrl.u32 %v1609, %v1625
        %v1628 = vor.u32 %v1626, %v1627
        %v1629 = vsub.s32 4294967266, %v1624
        %v1630 = vadd.s32 %v1629, 127
        %v1631 = vshll.u32 %v1630, 23
        %v1632 = vor.u32 4788187, %v1631
        %v1633 = vand.u32 2147483647, %v1632
        %v1635 = vcvt.s32.f32 %v1628
        %v1636 = vmul.f32 %v1635, %v1633
        %v1637 = vxor.u32 %v1636, 2147483648
        %v1638 = vsel %vm1555, %v1637, %v1636
        %v1639 = vsub.s32 4, %v1615
        %v1640 = vsel %vm1555, %v1639, %v1615
        %v1641 = vsel %vm1554, %v398, %v1638
        %v1642 = vsel %vm1554, 0, %v1640
        %v1643 = vcosq.f32.pop %v1641
        %v1644 = vsinq.f32.pop %v1641
        %vm1645 = vweird.f32 %v398
        %v1646 = vadd.s32 %v1642, 3
        %v1647 = vand.u32 %v1646, 3
        %vm1648 = vcmp.lt.s32.totalorder %v1647, 2
        %vm1649 = vcmp.eq.s32.totalorder %v1647, 0
        %v1650 = vxor.u32 %v1644, 2147483648
        %v1651 = vsel %vm1649, %v1643, %v1650
        %vm1652 = vcmp.eq.s32.totalorder %v1647, 2
        %v1653 = vxor.u32 %v1643, 2147483648
        %v1654 = vsel %vm1652, %v1653, %v1644
        %v1655 = vsel %vm1648, %v1651, %v1654
        %v1656 = vsel %vm1645, nan, %v1655
        %v1657 = vand.u32 2147483647, %v399
        %vm1658 = vcmp.le.f32.partialorder %v1657, 0.7853982
        %vm1659 = vcmp.lt.s32.totalorder %v399, 0
        %v1660 = vand.u32 %v399, 2139095040
        %v1661 = vshrl.u32 %v1660, 23
        %v1662 = vsub.s32 %v1661, 127
        %v1663 = vand.u32 2147483647, %v399
        %v1664 = vand.u32 %v1663, 8388607
        %v1665 = vor.u32 %v1664, 8388608
        %v1666 = vsub.s32 0, %v1665
        %v1667 = vadd.s32 %v1662, 1
        %vm1668 = vcmp.gt.s32.totalorder %v1667, 0
        %v1669 = vsel %vm1668, %v1667, 0
        %v1670 = vshrl.u32 %v1669, 5
        %v1671 = vand.u32 %v1669, 31
        %v1672 = vsub.s32 32, %v1671
        %v1673 = vshrl.u32 683565275, %v1672
        %v1674 = vshll.u32 683565275, %v1671
        %v1675 = vshrl.u32 2475754826, %v1672
        %v1676 = vor.u32 %v1674, %v1675
        %v1677 = vshll.u32 2475754826, %v1671
        %v1678 = vshrl.u32 2131351028, %v1672
        %v1679 = vor.u32 %v1677, %v1678
        %v1680 = vshll.u32 2131351028, %v1671
        %v1681 = vshrl.u32 2102212464, %v1672
        %v1682 = vor.u32 %v1680, %v1681
        %v1683 = vshll.u32 2102212464, %v1671
        %v1684 = vshrl.u32 920167782, %v1672
        %v1685 = vor.u32 %v1683, %v1684
        %v1686 = vshll.u32 920167782, %v1671
        %v1687 = vshrl.u32 1326507024, %v1672
        %v1688 = vor.u32 %v1686, %v1687
        %vm1689 = vcmp.lt.s32.totalorder %v1670, 1
        %vm1690 = vcmp.lt.s32.totalorder %v1670, 2
        %vm1691 = vcmp.lt.s32.totalorder %v1670, 3
        %vm1692 = vcmp.lt.s32.totalorder %v1670, 4
        %v1693 = vsel %vm1689, %v1673, %v1676
        %v1694 = vsel %vm1692, %v1682, 2102212464
        %v1695 = vsel %vm1691, %v1679, %v1694
        %v1696 = vsel %vm1690, %v1693, %v1695
        %v1697 = vsel %vm1689, %v1676, %v1679
        %v1698 = vsel %vm1692, %v1685, 920167782
        %v1699 = vsel %vm1691, %v1682, %v1698
        %v1700 = vsel %vm1690, %v1697, %v1699
        %v1701 = vsel %vm1689, %v1679, %v1682
        %v1702 = vsel %vm1692, %v1688, 1326507024
        %v1703 = vsel %vm1691, %v1685, %v1702
        %v1704 = vsel %vm1690, %v1701, %v1703
        %v1705 = vshll.u32 %v1665, 8
        %v1706 = vmul.u32.u64.compose %v1705, %v1704
        %v1707 = vextract.low.u32 %v1706
        %v1708 = vextract.high.u32 %v1706
        %v1709 = vmul.u32.u64.compose %v1705, %v1700
        %v1710 = vextract.low.u32 %v1709
        %v1711 = vextract.high.u32 %v1709
        %v1712 = vmul.u32 %v1705, %v1696
        %v1713 = vadd.s32 %v1708, %v1710
        %vm1714 = vc.u32 %v1708, %v1710
        %v1715 = vadd.s32 %v1711, 1
        %v1716 = vsel %vm1714, %v1715, %v1711
        %v1717 = vadd.s32 %v1712, %v1716
        %v1718 = vadd.s32 %v1717, 536870912
        %v1719 = vshrl.u32 %v1718, 30
        %v1720 = vshll.u32 %v1719, 30
        %v1721 = vsub.s32 %v1717, %v1720
        %vm1722 = vcmp.lt.s32.totalorder %v1721, 0
        %v1723 = vsub.s32 0, %v1721
        %v1724 = vsel %vm1722, %v1723, %v1721
        %v1725 = vclz %v1724
        %v1726 = vsub.s32 %v1725, 2
        %vm1727 = vcmp.gt.s32.totalorder 0, %v1726
        %v1728 = vsel %vm1727, 0, %v1726
        %v1729 = vsub.s32 32, %v1728
        %v1730 = vshll.u32 %v1721, %v1728
        %v1731 = vshrl.u32 %v1713, %v1729
        %v1732 = vor.u32 %v1730, %v1731
        %v1733 = vsub.s32 4294967266, %v1728
        %v1734 = vadd.s32 %v1733, 127
        %v1735 = vshll.u32 %v1734, 23
        %v1736 = vor.u32 4788187, %v1735
        %v1737 = vand.u32 2147483647, %v1736
        %v1739 = vcvt.s32.f32 %v1732
        %v1740 = vmul.f32 %v1739, %v1737
        %v1741 = vxor.u32 %v1740, 2147483648
        %v1742 = vsel %vm1659, %v1741, %v1740
        %v1743 = vsub.s32 4, %v1719
        %v1744 = vsel %vm1659, %v1743, %v1719
        %v1745 = vsel %vm1658, %v399, %v1742
        %v1746 = vsel %vm1658, 0, %v1744
        %v1747 = vcosq.f32.pop %v1745
        %v1748 = vsinq.f32.pop %v1745
        %vm1749 = vweird.f32 %v399
        %v1750 = vadd.s32 %v1746, 3
        %v1751 = vand.u32 %v1750, 3
        %vm1752 = vcmp.lt.s32.totalorder %v1751, 2
        %vm1753 = vcmp.eq.s32.totalorder %v1751, 0
        %v1754 = vxor.u32 %v1748, 2147483648
        %v1755 = vsel %vm1753, %v1747, %v1754
        %vm1756 = vcmp.eq.s32.totalorder %v1751, 2
        %v1757 = vxor.u32 %v1747, 2147483648
        %v1758 = vsel %vm1756, %v1757, %v1748
        %v1759 = vsel %vm1752, %v1755, %v1758
        %v1760 = vsel %vm1749, nan, %v1759
        %v1761 = vand.u32 2147483647, %v400
        %vm1762 = vcmp.le.f32.partialorder %v1761, 0.7853982
        %vm1763 = vcmp.lt.s32.totalorder %v400, 0
        %v1764 = vand.u32 %v400, 2139095040
        %v1765 = vshrl.u32 %v1764, 23
        %v1766 = vsub.s32 %v1765, 127
        %v1767 = vand.u32 2147483647, %v400
        %v1768 = vand.u32 %v1767, 8388607
        %v1769 = vor.u32 %v1768, 8388608
        %v1770 = vsub.s32 0, %v1769
        %v1771 = vadd.s32 %v1766, 1
        %vm1772 = vcmp.gt.s32.totalorder %v1771, 0
        %v1773 = vsel %vm1772, %v1771, 0
        %v1774 = vshrl.u32 %v1773, 5
        %v1775 = vand.u32 %v1773, 31
        %v1776 = vsub.s32 32, %v1775
        %v1777 = vshrl.u32 683565275, %v1776
        %v1778 = vshll.u32 683565275, %v1775
        %v1779 = vshrl.u32 2475754826, %v1776
        %v1780 = vor.u32 %v1778, %v1779
        %v1781 = vshll.u32 2475754826, %v1775
        %v1782 = vshrl.u32 2131351028, %v1776
        %v1783 = vor.u32 %v1781, %v1782
        %v1784 = vshll.u32 2131351028, %v1775
        %v1785 = vshrl.u32 2102212464, %v1776
        %v1786 = vor.u32 %v1784, %v1785
        %v1787 = vshll.u32 2102212464, %v1775
        %v1788 = vshrl.u32 920167782, %v1776
        %v1789 = vor.u32 %v1787, %v1788
        %v1790 = vshll.u32 920167782, %v1775
        %v1791 = vshrl.u32 1326507024, %v1776
        %v1792 = vor.u32 %v1790, %v1791
        %vm1793 = vcmp.lt.s32.totalorder %v1774, 1
        %vm1794 = vcmp.lt.s32.totalorder %v1774, 2
        %vm1795 = vcmp.lt.s32.totalorder %v1774, 3
        %vm1796 = vcmp.lt.s32.totalorder %v1774, 4
        %v1797 = vsel %vm1793, %v1777, %v1780
        %v1798 = vsel %vm1796, %v1786, 2102212464
        %v1799 = vsel %vm1795, %v1783, %v1798
        %v1800 = vsel %vm1794, %v1797, %v1799
        %v1801 = vsel %vm1793, %v1780, %v1783
        %v1802 = vsel %vm1796, %v1789, 920167782
        %v1803 = vsel %vm1795, %v1786, %v1802
        %v1804 = vsel %vm1794, %v1801, %v1803
        %v1805 = vsel %vm1793, %v1783, %v1786
        %v1806 = vsel %vm1796, %v1792, 1326507024
        %v1807 = vsel %vm1795, %v1789, %v1806
        %v1808 = vsel %vm1794, %v1805, %v1807
        %v1809 = vshll.u32 %v1769, 8
        %v1810 = vmul.u32.u64.compose %v1809, %v1808
        %v1811 = vextract.low.u32 %v1810
        %v1812 = vextract.high.u32 %v1810
        %v1813 = vmul.u32.u64.compose %v1809, %v1804
        %v1814 = vextract.low.u32 %v1813
        %v1815 = vextract.high.u32 %v1813
        %v1816 = vmul.u32 %v1809, %v1800
        %v1817 = vadd.s32 %v1812, %v1814
        %vm1818 = vc.u32 %v1812, %v1814
        %v1819 = vadd.s32 %v1815, 1
        %v1820 = vsel %vm1818, %v1819, %v1815
        %v1821 = vadd.s32 %v1816, %v1820
        %v1822 = vadd.s32 %v1821, 536870912
        %v1823 = vshrl.u32 %v1822, 30
        %v1824 = vshll.u32 %v1823, 30
        %v1825 = vsub.s32 %v1821, %v1824
        %vm1826 = vcmp.lt.s32.totalorder %v1825, 0
        %v1827 = vsub.s32 0, %v1825
        %v1828 = vsel %vm1826, %v1827, %v1825
        %v1829 = vclz %v1828
        %v1830 = vsub.s32 %v1829, 2
        %vm1831 = vcmp.gt.s32.totalorder 0, %v1830
        %v1832 = vsel %vm1831, 0, %v1830
        %v1833 = vsub.s32 32, %v1832
        %v1834 = vshll.u32 %v1825, %v1832
        %v1835 = vshrl.u32 %v1817, %v1833
        %v1836 = vor.u32 %v1834, %v1835
        %v1837 = vsub.s32 4294967266, %v1832
        %v1838 = vadd.s32 %v1837, 127
        %v1839 = vshll.u32 %v1838, 23
        %v1840 = vor.u32 4788187, %v1839
        %v1841 = vand.u32 2147483647, %v1840
        %v1843 = vcvt.s32.f32 %v1836
        %v1844 = vmul.f32 %v1843, %v1841
        %v1845 = vxor.u32 %v1844, 2147483648
        %v1846 = vsel %vm1763, %v1845, %v1844
        %v1847 = vsub.s32 4, %v1823
        %v1848 = vsel %vm1763, %v1847, %v1823
        %v1849 = vsel %vm1762, %v400, %v1846
        %v1850 = vsel %vm1762, 0, %v1848
        %v1851 = vcosq.f32.pop %v1849
        %v1852 = vsinq.f32.pop %v1849
        %vm1853 = vweird.f32 %v400
        %v1854 = vadd.s32 %v1850, 3
        %v1855 = vand.u32 %v1854, 3
        %vm1856 = vcmp.lt.s32.totalorder %v1855, 2
        %vm1857 = vcmp.eq.s32.totalorder %v1855, 0
        %v1858 = vxor.u32 %v1852, 2147483648
        %v1859 = vsel %vm1857, %v1851, %v1858
        %vm1860 = vcmp.eq.s32.totalorder %v1855, 2
        %v1861 = vxor.u32 %v1851, 2147483648
        %v1862 = vsel %vm1860, %v1861, %v1852
        %v1863 = vsel %vm1856, %v1859, %v1862
        %v1864 = vsel %vm1853, nan, %v1863
        %v1865 = vand.u32 2147483647, %v401
        %vm1866 = vcmp.le.f32.partialorder %v1865, 0.7853982
        %vm1867 = vcmp.lt.s32.totalorder %v401, 0
        %v1868 = vand.u32 %v401, 2139095040
        %v1869 = vshrl.u32 %v1868, 23
        %v1870 = vsub.s32 %v1869, 127
        %v1871 = vand.u32 2147483647, %v401
        %v1872 = vand.u32 %v1871, 8388607
        %v1873 = vor.u32 %v1872, 8388608
        %v1874 = vsub.s32 0, %v1873
        %v1875 = vadd.s32 %v1870, 1
        %vm1876 = vcmp.gt.s32.totalorder %v1875, 0
        %v1877 = vsel %vm1876, %v1875, 0
        %v1878 = vshrl.u32 %v1877, 5
        %v1879 = vand.u32 %v1877, 31
        %v1880 = vsub.s32 32, %v1879
        %v1881 = vshrl.u32 683565275, %v1880
        %v1882 = vshll.u32 683565275, %v1879
        %v1883 = vshrl.u32 2475754826, %v1880
        %v1884 = vor.u32 %v1882, %v1883
        %v1885 = vshll.u32 2475754826, %v1879
        %v1886 = vshrl.u32 2131351028, %v1880
        %v1887 = vor.u32 %v1885, %v1886
        %v1888 = vshll.u32 2131351028, %v1879
        %v1889 = vshrl.u32 2102212464, %v1880
        %v1890 = vor.u32 %v1888, %v1889
        %v1891 = vshll.u32 2102212464, %v1879
        %v1892 = vshrl.u32 920167782, %v1880
        %v1893 = vor.u32 %v1891, %v1892
        %v1894 = vshll.u32 920167782, %v1879
        %v1895 = vshrl.u32 1326507024, %v1880
        %v1896 = vor.u32 %v1894, %v1895
        %vm1897 = vcmp.lt.s32.totalorder %v1878, 1
        %vm1898 = vcmp.lt.s32.totalorder %v1878, 2
        %vm1899 = vcmp.lt.s32.totalorder %v1878, 3
        %vm1900 = vcmp.lt.s32.totalorder %v1878, 4
        %v1901 = vsel %vm1897, %v1881, %v1884
        %v1902 = vsel %vm1900, %v1890, 2102212464
        %v1903 = vsel %vm1899, %v1887, %v1902
        %v1904 = vsel %vm1898, %v1901, %v1903
        %v1905 = vsel %vm1897, %v1884, %v1887
        %v1906 = vsel %vm1900, %v1893, 920167782
        %v1907 = vsel %vm1899, %v1890, %v1906
        %v1908 = vsel %vm1898, %v1905, %v1907
        %v1909 = vsel %vm1897, %v1887, %v1890
        %v1910 = vsel %vm1900, %v1896, 1326507024
        %v1911 = vsel %vm1899, %v1893, %v1910
        %v1912 = vsel %vm1898, %v1909, %v1911
        %v1913 = vshll.u32 %v1873, 8
        %v1914 = vmul.u32.u64.compose %v1913, %v1912
        %v1915 = vextract.low.u32 %v1914
        %v1916 = vextract.high.u32 %v1914
        %v1917 = vmul.u32.u64.compose %v1913, %v1908
        %v1918 = vextract.low.u32 %v1917
        %v1919 = vextract.high.u32 %v1917
        %v1920 = vmul.u32 %v1913, %v1904
        %v1921 = vadd.s32 %v1916, %v1918
        %vm1922 = vc.u32 %v1916, %v1918
        %v1923 = vadd.s32 %v1919, 1
        %v1924 = vsel %vm1922, %v1923, %v1919
        %v1925 = vadd.s32 %v1920, %v1924
        %v1926 = vadd.s32 %v1925, 536870912
        %v1927 = vshrl.u32 %v1926, 30
        %v1928 = vshll.u32 %v1927, 30
        %v1929 = vsub.s32 %v1925, %v1928
        %vm1930 = vcmp.lt.s32.totalorder %v1929, 0
        %v1931 = vsub.s32 0, %v1929
        %v1932 = vsel %vm1930, %v1931, %v1929
        %v1933 = vclz %v1932
        %v1934 = vsub.s32 %v1933, 2
        %vm1935 = vcmp.gt.s32.totalorder 0, %v1934
        %v1936 = vsel %vm1935, 0, %v1934
        %v1937 = vsub.s32 32, %v1936
        %v1938 = vshll.u32 %v1929, %v1936
        %v1939 = vshrl.u32 %v1921, %v1937
        %v1940 = vor.u32 %v1938, %v1939
        %v1941 = vsub.s32 4294967266, %v1936
        %v1942 = vadd.s32 %v1941, 127
        %v1943 = vshll.u32 %v1942, 23
        %v1944 = vor.u32 4788187, %v1943
        %v1945 = vand.u32 2147483647, %v1944
        %v1947 = vcvt.s32.f32 %v1940
        %v1948 = vmul.f32 %v1947, %v1945
        %v1949 = vxor.u32 %v1948, 2147483648
        %v1950 = vsel %vm1867, %v1949, %v1948
        %v1951 = vsub.s32 4, %v1927
        %v1952 = vsel %vm1867, %v1951, %v1927
        %v1953 = vsel %vm1866, %v401, %v1950
        %v1954 = vsel %vm1866, 0, %v1952
        %v1955 = vcosq.f32.pop %v1953
        %v1956 = vsinq.f32.pop %v1953
        %vm1957 = vweird.f32 %v401
        %v1958 = vadd.s32 %v1954, 3
        %v1959 = vand.u32 %v1958, 3
        %vm1960 = vcmp.lt.s32.totalorder %v1959, 2
        %vm1961 = vcmp.eq.s32.totalorder %v1959, 0
        %v1962 = vxor.u32 %v1956, 2147483648
        %v1963 = vsel %vm1961, %v1955, %v1962
        %vm1964 = vcmp.eq.s32.totalorder %v1959, 2
        %v1965 = vxor.u32 %v1955, 2147483648
        %v1966 = vsel %vm1964, %v1965, %v1956
        %v1967 = vsel %vm1960, %v1963, %v1966
        %v1968 = vsel %vm1957, nan, %v1967
        %v1969 = vand.u32 2147483647, %v402
        %vm1970 = vcmp.le.f32.partialorder %v1969, 0.7853982
        %vm1971 = vcmp.lt.s32.totalorder %v402, 0
        %v1972 = vand.u32 %v402, 2139095040
        %v1973 = vshrl.u32 %v1972, 23
        %v1974 = vsub.s32 %v1973, 127
        %v1975 = vand.u32 2147483647, %v402
        %v1976 = vand.u32 %v1975, 8388607
        %v1977 = vor.u32 %v1976, 8388608
        %v1978 = vsub.s32 0, %v1977
        %v1979 = vadd.s32 %v1974, 1
        %vm1980 = vcmp.gt.s32.totalorder %v1979, 0
        %v1981 = vsel %vm1980, %v1979, 0
        %v1982 = vshrl.u32 %v1981, 5
        %v1983 = vand.u32 %v1981, 31
        %v1984 = vsub.s32 32, %v1983
        %v1985 = vshrl.u32 683565275, %v1984
        %v1986 = vshll.u32 683565275, %v1983
        %v1987 = vshrl.u32 2475754826, %v1984
        %v1988 = vor.u32 %v1986, %v1987
        %v1989 = vshll.u32 2475754826, %v1983
        %v1990 = vshrl.u32 2131351028, %v1984
        %v1991 = vor.u32 %v1989, %v1990
        %v1992 = vshll.u32 2131351028, %v1983
        %v1993 = vshrl.u32 2102212464, %v1984
        %v1994 = vor.u32 %v1992, %v1993
        %v1995 = vshll.u32 2102212464, %v1983
        %v1996 = vshrl.u32 920167782, %v1984
        %v1997 = vor.u32 %v1995, %v1996
        %v1998 = vshll.u32 920167782, %v1983
        %v1999 = vshrl.u32 1326507024, %v1984
        %v2000 = vor.u32 %v1998, %v1999
        %vm2001 = vcmp.lt.s32.totalorder %v1982, 1
        %vm2002 = vcmp.lt.s32.totalorder %v1982, 2
        %vm2003 = vcmp.lt.s32.totalorder %v1982, 3
        %vm2004 = vcmp.lt.s32.totalorder %v1982, 4
        %v2005 = vsel %vm2001, %v1985, %v1988
        %v2006 = vsel %vm2004, %v1994, 2102212464
        %v2007 = vsel %vm2003, %v1991, %v2006
        %v2008 = vsel %vm2002, %v2005, %v2007
        %v2009 = vsel %vm2001, %v1988, %v1991
        %v2010 = vsel %vm2004, %v1997, 920167782
        %v2011 = vsel %vm2003, %v1994, %v2010
        %v2012 = vsel %vm2002, %v2009, %v2011
        %v2013 = vsel %vm2001, %v1991, %v1994
        %v2014 = vsel %vm2004, %v2000, 1326507024
        %v2015 = vsel %vm2003, %v1997, %v2014
        %v2016 = vsel %vm2002, %v2013, %v2015
        %v2017 = vshll.u32 %v1977, 8
        %v2018 = vmul.u32.u64.compose %v2017, %v2016
        %v2019 = vextract.low.u32 %v2018
        %v2020 = vextract.high.u32 %v2018
        %v2021 = vmul.u32.u64.compose %v2017, %v2012
        %v2022 = vextract.low.u32 %v2021
        %v2023 = vextract.high.u32 %v2021
        %v2024 = vmul.u32 %v2017, %v2008
        %v2025 = vadd.s32 %v2020, %v2022
        %vm2026 = vc.u32 %v2020, %v2022
        %v2027 = vadd.s32 %v2023, 1
        %v2028 = vsel %vm2026, %v2027, %v2023
        %v2029 = vadd.s32 %v2024, %v2028
        %v2030 = vadd.s32 %v2029, 536870912
        %v2031 = vshrl.u32 %v2030, 30
        %v2032 = vshll.u32 %v2031, 30
        %v2033 = vsub.s32 %v2029, %v2032
        %vm2034 = vcmp.lt.s32.totalorder %v2033, 0
        %v2035 = vsub.s32 0, %v2033
        %v2036 = vsel %vm2034, %v2035, %v2033
        %v2037 = vclz %v2036
        %v2038 = vsub.s32 %v2037, 2
        %vm2039 = vcmp.gt.s32.totalorder 0, %v2038
        %v2040 = vsel %vm2039, 0, %v2038
        %v2041 = vsub.s32 32, %v2040
        %v2042 = vshll.u32 %v2033, %v2040
        %v2043 = vshrl.u32 %v2025, %v2041
        %v2044 = vor.u32 %v2042, %v2043
        %v2045 = vsub.s32 4294967266, %v2040
        %v2046 = vadd.s32 %v2045, 127
        %v2047 = vshll.u32 %v2046, 23
        %v2048 = vor.u32 4788187, %v2047
        %v2049 = vand.u32 2147483647, %v2048
        %v2051 = vcvt.s32.f32 %v2044
        %v2052 = vmul.f32 %v2051, %v2049
        %v2053 = vxor.u32 %v2052, 2147483648
        %v2054 = vsel %vm1971, %v2053, %v2052
        %v2055 = vsub.s32 4, %v2031
        %v2056 = vsel %vm1971, %v2055, %v2031
        %v2057 = vsel %vm1970, %v402, %v2054
        %v2058 = vsel %vm1970, 0, %v2056
        %v2059 = vcosq.f32.pop %v2057
        %v2060 = vsinq.f32.pop %v2057
        %vm2061 = vweird.f32 %v402
        %v2062 = vadd.s32 %v2058, 3
        %v2063 = vand.u32 %v2062, 3
        %vm2064 = vcmp.lt.s32.totalorder %v2063, 2
        %vm2065 = vcmp.eq.s32.totalorder %v2063, 0
        %v2066 = vxor.u32 %v2060, 2147483648
        %v2067 = vsel %vm2065, %v2059, %v2066
        %vm2068 = vcmp.eq.s32.totalorder %v2063, 2
        %v2069 = vxor.u32 %v2059, 2147483648
        %v2070 = vsel %vm2068, %v2069, %v2060
        %v2071 = vsel %vm2064, %v2067, %v2070
        %v2072 = vsel %vm2061, nan, %v2071
        %v2073 = vand.u32 2147483647, %v403
        %vm2074 = vcmp.le.f32.partialorder %v2073, 0.7853982
        %vm2075 = vcmp.lt.s32.totalorder %v403, 0
        %v2076 = vand.u32 %v403, 2139095040
        %v2077 = vshrl.u32 %v2076, 23
        %v2078 = vsub.s32 %v2077, 127
        %v2079 = vand.u32 2147483647, %v403
        %v2080 = vand.u32 %v2079, 8388607
        %v2081 = vor.u32 %v2080, 8388608
        %v2082 = vsub.s32 0, %v2081
        %v2083 = vadd.s32 %v2078, 1
        %vm2084 = vcmp.gt.s32.totalorder %v2083, 0
        %v2085 = vsel %vm2084, %v2083, 0
        %v2086 = vshrl.u32 %v2085, 5
        %v2087 = vand.u32 %v2085, 31
        %v2088 = vsub.s32 32, %v2087
        %v2089 = vshrl.u32 683565275, %v2088
        %v2090 = vshll.u32 683565275, %v2087
        %v2091 = vshrl.u32 2475754826, %v2088
        %v2092 = vor.u32 %v2090, %v2091
        %v2093 = vshll.u32 2475754826, %v2087
        %v2094 = vshrl.u32 2131351028, %v2088
        %v2095 = vor.u32 %v2093, %v2094
        %v2096 = vshll.u32 2131351028, %v2087
        %v2097 = vshrl.u32 2102212464, %v2088
        %v2098 = vor.u32 %v2096, %v2097
        %v2099 = vshll.u32 2102212464, %v2087
        %v2100 = vshrl.u32 920167782, %v2088
        %v2101 = vor.u32 %v2099, %v2100
        %v2102 = vshll.u32 920167782, %v2087
        %v2103 = vshrl.u32 1326507024, %v2088
        %v2104 = vor.u32 %v2102, %v2103
        %vm2105 = vcmp.lt.s32.totalorder %v2086, 1
        %vm2106 = vcmp.lt.s32.totalorder %v2086, 2
        %vm2107 = vcmp.lt.s32.totalorder %v2086, 3
        %vm2108 = vcmp.lt.s32.totalorder %v2086, 4
        %v2109 = vsel %vm2105, %v2089, %v2092
        %v2110 = vsel %vm2108, %v2098, 2102212464
        %v2111 = vsel %vm2107, %v2095, %v2110
        %v2112 = vsel %vm2106, %v2109, %v2111
        %v2113 = vsel %vm2105, %v2092, %v2095
        %v2114 = vsel %vm2108, %v2101, 920167782
        %v2115 = vsel %vm2107, %v2098, %v2114
        %v2116 = vsel %vm2106, %v2113, %v2115
        %v2117 = vsel %vm2105, %v2095, %v2098
        %v2118 = vsel %vm2108, %v2104, 1326507024
        %v2119 = vsel %vm2107, %v2101, %v2118
        %v2120 = vsel %vm2106, %v2117, %v2119
        %v2121 = vshll.u32 %v2081, 8
        %v2122 = vmul.u32.u64.compose %v2121, %v2120
        %v2123 = vextract.low.u32 %v2122
        %v2124 = vextract.high.u32 %v2122
        %v2125 = vmul.u32.u64.compose %v2121, %v2116
        %v2126 = vextract.low.u32 %v2125
        %v2127 = vextract.high.u32 %v2125
        %v2128 = vmul.u32 %v2121, %v2112
        %v2129 = vadd.s32 %v2124, %v2126
        %vm2130 = vc.u32 %v2124, %v2126
        %v2131 = vadd.s32 %v2127, 1
        %v2132 = vsel %vm2130, %v2131, %v2127
        %v2133 = vadd.s32 %v2128, %v2132
        %v2134 = vadd.s32 %v2133, 536870912
        %v2135 = vshrl.u32 %v2134, 30
        %v2136 = vshll.u32 %v2135, 30
        %v2137 = vsub.s32 %v2133, %v2136
        %vm2138 = vcmp.lt.s32.totalorder %v2137, 0
        %v2139 = vsub.s32 0, %v2137
        %v2140 = vsel %vm2138, %v2139, %v2137
        %v2141 = vclz %v2140
        %v2142 = vsub.s32 %v2141, 2
        %vm2143 = vcmp.gt.s32.totalorder 0, %v2142
        %v2144 = vsel %vm2143, 0, %v2142
        %v2145 = vsub.s32 32, %v2144
        %v2146 = vshll.u32 %v2137, %v2144
        %v2147 = vshrl.u32 %v2129, %v2145
        %v2148 = vor.u32 %v2146, %v2147
        %v2149 = vsub.s32 4294967266, %v2144
        %v2150 = vadd.s32 %v2149, 127
        %v2151 = vshll.u32 %v2150, 23
        %v2152 = vor.u32 4788187, %v2151
        %v2153 = vand.u32 2147483647, %v2152
        %v2155 = vcvt.s32.f32 %v2148
        %v2156 = vmul.f32 %v2155, %v2153
        %v2157 = vxor.u32 %v2156, 2147483648
        %v2158 = vsel %vm2075, %v2157, %v2156
        %v2159 = vsub.s32 4, %v2135
        %v2160 = vsel %vm2075, %v2159, %v2135
        %v2161 = vsel %vm2074, %v403, %v2158
        %v2162 = vsel %vm2074, 0, %v2160
        %v2163 = vcosq.f32.pop %v2161
        %v2164 = vsinq.f32.pop %v2161
        %vm2165 = vweird.f32 %v403
        %v2166 = vadd.s32 %v2162, 3
        %v2167 = vand.u32 %v2166, 3
        %vm2168 = vcmp.lt.s32.totalorder %v2167, 2
        %vm2169 = vcmp.eq.s32.totalorder %v2167, 0
        %v2170 = vxor.u32 %v2164, 2147483648
        %v2171 = vsel %vm2169, %v2163, %v2170
        %vm2172 = vcmp.eq.s32.totalorder %v2167, 2
        %v2173 = vxor.u32 %v2163, 2147483648
        %v2174 = vsel %vm2172, %v2173, %v2164
        %v2175 = vsel %vm2168, %v2171, %v2174
        %v2176 = vsel %vm2165, nan, %v2175
        %v2177 = vand.u32 2147483647, %v404
        %vm2178 = vcmp.le.f32.partialorder %v2177, 0.7853982
        %vm2179 = vcmp.lt.s32.totalorder %v404, 0
        %v2180 = vand.u32 %v404, 2139095040
        %v2181 = vshrl.u32 %v2180, 23
        %v2182 = vsub.s32 %v2181, 127
        %v2183 = vand.u32 2147483647, %v404
        %v2184 = vand.u32 %v2183, 8388607
        %v2185 = vor.u32 %v2184, 8388608
        %v2186 = vsub.s32 0, %v2185
        %v2187 = vadd.s32 %v2182, 1
        %vm2188 = vcmp.gt.s32.totalorder %v2187, 0
        %v2189 = vsel %vm2188, %v2187, 0
        %v2190 = vshrl.u32 %v2189, 5
        %v2191 = vand.u32 %v2189, 31
        %v2192 = vsub.s32 32, %v2191
        %v2193 = vshrl.u32 683565275, %v2192
        %v2194 = vshll.u32 683565275, %v2191
        %v2195 = vshrl.u32 2475754826, %v2192
        %v2196 = vor.u32 %v2194, %v2195
        %v2197 = vshll.u32 2475754826, %v2191
        %v2198 = vshrl.u32 2131351028, %v2192
        %v2199 = vor.u32 %v2197, %v2198
        %v2200 = vshll.u32 2131351028, %v2191
        %v2201 = vshrl.u32 2102212464, %v2192
        %v2202 = vor.u32 %v2200, %v2201
        %v2203 = vshll.u32 2102212464, %v2191
        %v2204 = vshrl.u32 920167782, %v2192
        %v2205 = vor.u32 %v2203, %v2204
        %v2206 = vshll.u32 920167782, %v2191
        %v2207 = vshrl.u32 1326507024, %v2192
        %v2208 = vor.u32 %v2206, %v2207
        %vm2209 = vcmp.lt.s32.totalorder %v2190, 1
        %vm2210 = vcmp.lt.s32.totalorder %v2190, 2
        %vm2211 = vcmp.lt.s32.totalorder %v2190, 3
        %vm2212 = vcmp.lt.s32.totalorder %v2190, 4
        %v2213 = vsel %vm2209, %v2193, %v2196
        %v2214 = vsel %vm2212, %v2202, 2102212464
        %v2215 = vsel %vm2211, %v2199, %v2214
        %v2216 = vsel %vm2210, %v2213, %v2215
        %v2217 = vsel %vm2209, %v2196, %v2199
        %v2218 = vsel %vm2212, %v2205, 920167782
        %v2219 = vsel %vm2211, %v2202, %v2218
        %v2220 = vsel %vm2210, %v2217, %v2219
        %v2221 = vsel %vm2209, %v2199, %v2202
        %v2222 = vsel %vm2212, %v2208, 1326507024
        %v2223 = vsel %vm2211, %v2205, %v2222
        %v2224 = vsel %vm2210, %v2221, %v2223
        %v2225 = vshll.u32 %v2185, 8
        %v2226 = vmul.u32.u64.compose %v2225, %v2224
        %v2227 = vextract.low.u32 %v2226
        %v2228 = vextract.high.u32 %v2226
        %v2229 = vmul.u32.u64.compose %v2225, %v2220
        %v2230 = vextract.low.u32 %v2229
        %v2231 = vextract.high.u32 %v2229
        %v2232 = vmul.u32 %v2225, %v2216
        %v2233 = vadd.s32 %v2228, %v2230
        %vm2234 = vc.u32 %v2228, %v2230
        %v2235 = vadd.s32 %v2231, 1
        %v2236 = vsel %vm2234, %v2235, %v2231
        %v2237 = vadd.s32 %v2232, %v2236
        %v2238 = vadd.s32 %v2237, 536870912
        %v2239 = vshrl.u32 %v2238, 30
        %v2240 = vshll.u32 %v2239, 30
        %v2241 = vsub.s32 %v2237, %v2240
        %vm2242 = vcmp.lt.s32.totalorder %v2241, 0
        %v2243 = vsub.s32 0, %v2241
        %v2244 = vsel %vm2242, %v2243, %v2241
        %v2245 = vclz %v2244
        %v2246 = vsub.s32 %v2245, 2
        %vm2247 = vcmp.gt.s32.totalorder 0, %v2246
        %v2248 = vsel %vm2247, 0, %v2246
        %v2249 = vsub.s32 32, %v2248
        %v2250 = vshll.u32 %v2241, %v2248
        %v2251 = vshrl.u32 %v2233, %v2249
        %v2252 = vor.u32 %v2250, %v2251
        %v2253 = vsub.s32 4294967266, %v2248
        %v2254 = vadd.s32 %v2253, 127
        %v2255 = vshll.u32 %v2254, 23
        %v2256 = vor.u32 4788187, %v2255
        %v2257 = vand.u32 2147483647, %v2256
        %v2259 = vcvt.s32.f32 %v2252
        %v2260 = vmul.f32 %v2259, %v2257
        %v2261 = vxor.u32 %v2260, 2147483648
        %v2262 = vsel %vm2179, %v2261, %v2260
        %v2263 = vsub.s32 4, %v2239
        %v2264 = vsel %vm2179, %v2263, %v2239
        %v2265 = vsel %vm2178, %v404, %v2262
        %v2266 = vsel %vm2178, 0, %v2264
        %v2267 = vcosq.f32.pop %v2265
        %v2268 = vsinq.f32.pop %v2265
        %vm2269 = vweird.f32 %v404
        %v2270 = vadd.s32 %v2266, 3
        %v2271 = vand.u32 %v2270, 3
        %vm2272 = vcmp.lt.s32.totalorder %v2271, 2
        %vm2273 = vcmp.eq.s32.totalorder %v2271, 0
        %v2274 = vxor.u32 %v2268, 2147483648
        %v2275 = vsel %vm2273, %v2267, %v2274
        %vm2276 = vcmp.eq.s32.totalorder %v2271, 2
        %v2277 = vxor.u32 %v2267, 2147483648
        %v2278 = vsel %vm2276, %v2277, %v2268
        %v2279 = vsel %vm2272, %v2275, %v2278
        %v2280 = vsel %vm2269, nan, %v2279
        %v2281 = vand.u32 2147483647, %v405
        %vm2282 = vcmp.le.f32.partialorder %v2281, 0.7853982
        %vm2283 = vcmp.lt.s32.totalorder %v405, 0
        %v2284 = vand.u32 %v405, 2139095040
        %v2285 = vshrl.u32 %v2284, 23
        %v2286 = vsub.s32 %v2285, 127
        %v2287 = vand.u32 2147483647, %v405
        %v2288 = vand.u32 %v2287, 8388607
        %v2289 = vor.u32 %v2288, 8388608
        %v2290 = vsub.s32 0, %v2289
        %v2291 = vadd.s32 %v2286, 1
        %vm2292 = vcmp.gt.s32.totalorder %v2291, 0
        %v2293 = vsel %vm2292, %v2291, 0
        %v2294 = vshrl.u32 %v2293, 5
        %v2295 = vand.u32 %v2293, 31
        %v2296 = vsub.s32 32, %v2295
        %v2297 = vshrl.u32 683565275, %v2296
        %v2298 = vshll.u32 683565275, %v2295
        %v2299 = vshrl.u32 2475754826, %v2296
        %v2300 = vor.u32 %v2298, %v2299
        %v2301 = vshll.u32 2475754826, %v2295
        %v2302 = vshrl.u32 2131351028, %v2296
        %v2303 = vor.u32 %v2301, %v2302
        %v2304 = vshll.u32 2131351028, %v2295
        %v2305 = vshrl.u32 2102212464, %v2296
        %v2306 = vor.u32 %v2304, %v2305
        %v2307 = vshll.u32 2102212464, %v2295
        %v2308 = vshrl.u32 920167782, %v2296
        %v2309 = vor.u32 %v2307, %v2308
        %v2310 = vshll.u32 920167782, %v2295
        %v2311 = vshrl.u32 1326507024, %v2296
        %v2312 = vor.u32 %v2310, %v2311
        %vm2313 = vcmp.lt.s32.totalorder %v2294, 1
        %vm2314 = vcmp.lt.s32.totalorder %v2294, 2
        %vm2315 = vcmp.lt.s32.totalorder %v2294, 3
        %vm2316 = vcmp.lt.s32.totalorder %v2294, 4
        %v2317 = vsel %vm2313, %v2297, %v2300
        %v2318 = vsel %vm2316, %v2306, 2102212464
        %v2319 = vsel %vm2315, %v2303, %v2318
        %v2320 = vsel %vm2314, %v2317, %v2319
        %v2321 = vsel %vm2313, %v2300, %v2303
        %v2322 = vsel %vm2316, %v2309, 920167782
        %v2323 = vsel %vm2315, %v2306, %v2322
        %v2324 = vsel %vm2314, %v2321, %v2323
        %v2325 = vsel %vm2313, %v2303, %v2306
        %v2326 = vsel %vm2316, %v2312, 1326507024
        %v2327 = vsel %vm2315, %v2309, %v2326
        %v2328 = vsel %vm2314, %v2325, %v2327
        %v2329 = vshll.u32 %v2289, 8
        %v2330 = vmul.u32.u64.compose %v2329, %v2328
        %v2331 = vextract.low.u32 %v2330
        %v2332 = vextract.high.u32 %v2330
        %v2333 = vmul.u32.u64.compose %v2329, %v2324
        %v2334 = vextract.low.u32 %v2333
        %v2335 = vextract.high.u32 %v2333
        %v2336 = vmul.u32 %v2329, %v2320
        %v2337 = vadd.s32 %v2332, %v2334
        %vm2338 = vc.u32 %v2332, %v2334
        %v2339 = vadd.s32 %v2335, 1
        %v2340 = vsel %vm2338, %v2339, %v2335
        %v2341 = vadd.s32 %v2336, %v2340
        %v2342 = vadd.s32 %v2341, 536870912
        %v2343 = vshrl.u32 %v2342, 30
        %v2344 = vshll.u32 %v2343, 30
        %v2345 = vsub.s32 %v2341, %v2344
        %vm2346 = vcmp.lt.s32.totalorder %v2345, 0
        %v2347 = vsub.s32 0, %v2345
        %v2348 = vsel %vm2346, %v2347, %v2345
        %v2349 = vclz %v2348
        %v2350 = vsub.s32 %v2349, 2
        %vm2351 = vcmp.gt.s32.totalorder 0, %v2350
        %v2352 = vsel %vm2351, 0, %v2350
        %v2353 = vsub.s32 32, %v2352
        %v2354 = vshll.u32 %v2345, %v2352
        %v2355 = vshrl.u32 %v2337, %v2353
        %v2356 = vor.u32 %v2354, %v2355
        %v2357 = vsub.s32 4294967266, %v2352
        %v2358 = vadd.s32 %v2357, 127
        %v2359 = vshll.u32 %v2358, 23
        %v2360 = vor.u32 4788187, %v2359
        %v2361 = vand.u32 2147483647, %v2360
        %v2363 = vcvt.s32.f32 %v2356
        %v2364 = vmul.f32 %v2363, %v2361
        %v2365 = vxor.u32 %v2364, 2147483648
        %v2366 = vsel %vm2283, %v2365, %v2364
        %v2367 = vsub.s32 4, %v2343
        %v2368 = vsel %vm2283, %v2367, %v2343
        %v2369 = vsel %vm2282, %v405, %v2366
        %v2370 = vsel %vm2282, 0, %v2368
        %v2371 = vcosq.f32.pop %v2369
        %v2372 = vsinq.f32.pop %v2369
        %vm2373 = vweird.f32 %v405
        %v2374 = vadd.s32 %v2370, 3
        %v2375 = vand.u32 %v2374, 3
        %vm2376 = vcmp.lt.s32.totalorder %v2375, 2
        %vm2377 = vcmp.eq.s32.totalorder %v2375, 0
        %v2378 = vxor.u32 %v2372, 2147483648
        %v2379 = vsel %vm2377, %v2371, %v2378
        %vm2380 = vcmp.eq.s32.totalorder %v2375, 2
        %v2381 = vxor.u32 %v2371, 2147483648
        %v2382 = vsel %vm2380, %v2381, %v2372
        %v2383 = vsel %vm2376, %v2379, %v2382
        %v2384 = vsel %vm2373, nan, %v2383
        %v2385 = vand.u32 2147483647, %v406
        %vm2386 = vcmp.le.f32.partialorder %v2385, 0.7853982
        %vm2387 = vcmp.lt.s32.totalorder %v406, 0
        %v2388 = vand.u32 %v406, 2139095040
        %v2389 = vshrl.u32 %v2388, 23
        %v2390 = vsub.s32 %v2389, 127
        %v2391 = vand.u32 2147483647, %v406
        %v2392 = vand.u32 %v2391, 8388607
        %v2393 = vor.u32 %v2392, 8388608
        %v2394 = vsub.s32 0, %v2393
        %v2395 = vadd.s32 %v2390, 1
        %vm2396 = vcmp.gt.s32.totalorder %v2395, 0
        %v2397 = vsel %vm2396, %v2395, 0
        %v2398 = vshrl.u32 %v2397, 5
        %v2399 = vand.u32 %v2397, 31
        %v2400 = vsub.s32 32, %v2399
        %v2401 = vshrl.u32 683565275, %v2400
        %v2402 = vshll.u32 683565275, %v2399
        %v2403 = vshrl.u32 2475754826, %v2400
        %v2404 = vor.u32 %v2402, %v2403
        %v2405 = vshll.u32 2475754826, %v2399
        %v2406 = vshrl.u32 2131351028, %v2400
        %v2407 = vor.u32 %v2405, %v2406
        %v2408 = vshll.u32 2131351028, %v2399
        %v2409 = vshrl.u32 2102212464, %v2400
        %v2410 = vor.u32 %v2408, %v2409
        %v2411 = vshll.u32 2102212464, %v2399
        %v2412 = vshrl.u32 920167782, %v2400
        %v2413 = vor.u32 %v2411, %v2412
        %v2414 = vshll.u32 920167782, %v2399
        %v2415 = vshrl.u32 1326507024, %v2400
        %v2416 = vor.u32 %v2414, %v2415
        %vm2417 = vcmp.lt.s32.totalorder %v2398, 1
        %vm2418 = vcmp.lt.s32.totalorder %v2398, 2
        %vm2419 = vcmp.lt.s32.totalorder %v2398, 3
        %vm2420 = vcmp.lt.s32.totalorder %v2398, 4
        %v2421 = vsel %vm2417, %v2401, %v2404
        %v2422 = vsel %vm2420, %v2410, 2102212464
        %v2423 = vsel %vm2419, %v2407, %v2422
        %v2424 = vsel %vm2418, %v2421, %v2423
        %v2425 = vsel %vm2417, %v2404, %v2407
        %v2426 = vsel %vm2420, %v2413, 920167782
        %v2427 = vsel %vm2419, %v2410, %v2426
        %v2428 = vsel %vm2418, %v2425, %v2427
        %v2429 = vsel %vm2417, %v2407, %v2410
        %v2430 = vsel %vm2420, %v2416, 1326507024
        %v2431 = vsel %vm2419, %v2413, %v2430
        %v2432 = vsel %vm2418, %v2429, %v2431
        %v2433 = vshll.u32 %v2393, 8
        %v2434 = vmul.u32.u64.compose %v2433, %v2432
        %v2435 = vextract.low.u32 %v2434
        %v2436 = vextract.high.u32 %v2434
        %v2437 = vmul.u32.u64.compose %v2433, %v2428
        %v2438 = vextract.low.u32 %v2437
        %v2439 = vextract.high.u32 %v2437
        %v2440 = vmul.u32 %v2433, %v2424
        %v2441 = vadd.s32 %v2436, %v2438
        %vm2442 = vc.u32 %v2436, %v2438
        %v2443 = vadd.s32 %v2439, 1
        %v2444 = vsel %vm2442, %v2443, %v2439
        %v2445 = vadd.s32 %v2440, %v2444
        %v2446 = vadd.s32 %v2445, 536870912
        %v2447 = vshrl.u32 %v2446, 30
        %v2448 = vshll.u32 %v2447, 30
        %v2449 = vsub.s32 %v2445, %v2448
        %vm2450 = vcmp.lt.s32.totalorder %v2449, 0
        %v2451 = vsub.s32 0, %v2449
        %v2452 = vsel %vm2450, %v2451, %v2449
        %v2453 = vclz %v2452
        %v2454 = vsub.s32 %v2453, 2
        %vm2455 = vcmp.gt.s32.totalorder 0, %v2454
        %v2456 = vsel %vm2455, 0, %v2454
        %v2457 = vsub.s32 32, %v2456
        %v2458 = vshll.u32 %v2449, %v2456
        %v2459 = vshrl.u32 %v2441, %v2457
        %v2460 = vor.u32 %v2458, %v2459
        %v2461 = vsub.s32 4294967266, %v2456
        %v2462 = vadd.s32 %v2461, 127
        %v2463 = vshll.u32 %v2462, 23
        %v2464 = vor.u32 4788187, %v2463
        %v2465 = vand.u32 2147483647, %v2464
        %v2467 = vcvt.s32.f32 %v2460
        %v2468 = vmul.f32 %v2467, %v2465
        %v2469 = vxor.u32 %v2468, 2147483648
        %v2470 = vsel %vm2387, %v2469, %v2468
        %v2471 = vsub.s32 4, %v2447
        %v2472 = vsel %vm2387, %v2471, %v2447
        %v2473 = vsel %vm2386, %v406, %v2470
        %v2474 = vsel %vm2386, 0, %v2472
        %v2475 = vcosq.f32.pop %v2473
        %v2476 = vsinq.f32.pop %v2473
        %vm2477 = vweird.f32 %v406
        %v2478 = vadd.s32 %v2474, 3
        %v2479 = vand.u32 %v2478, 3
        %vm2480 = vcmp.lt.s32.totalorder %v2479, 2
        %vm2481 = vcmp.eq.s32.totalorder %v2479, 0
        %v2482 = vxor.u32 %v2476, 2147483648
        %v2483 = vsel %vm2481, %v2475, %v2482
        %vm2484 = vcmp.eq.s32.totalorder %v2479, 2
        %v2485 = vxor.u32 %v2475, 2147483648
        %v2486 = vsel %vm2484, %v2485, %v2476
        %v2487 = vsel %vm2480, %v2483, %v2486
        %v2488 = vsel %vm2477, nan, %v2487
        %v2489 = vand.u32 2147483647, %v407
        %vm2490 = vcmp.le.f32.partialorder %v2489, 0.7853982
        %vm2491 = vcmp.lt.s32.totalorder %v407, 0
        %v2492 = vand.u32 %v407, 2139095040
        %v2493 = vshrl.u32 %v2492, 23
        %v2494 = vsub.s32 %v2493, 127
        %v2495 = vand.u32 2147483647, %v407
        %v2496 = vand.u32 %v2495, 8388607
        %v2497 = vor.u32 %v2496, 8388608
        %v2498 = vsub.s32 0, %v2497
        %v2499 = vadd.s32 %v2494, 1
        %vm2500 = vcmp.gt.s32.totalorder %v2499, 0
        %v2501 = vsel %vm2500, %v2499, 0
        %v2502 = vshrl.u32 %v2501, 5
        %v2503 = vand.u32 %v2501, 31
        %v2504 = vsub.s32 32, %v2503
        %v2505 = vshrl.u32 683565275, %v2504
        %v2506 = vshll.u32 683565275, %v2503
        %v2507 = vshrl.u32 2475754826, %v2504
        %v2508 = vor.u32 %v2506, %v2507
        %v2509 = vshll.u32 2475754826, %v2503
        %v2510 = vshrl.u32 2131351028, %v2504
        %v2511 = vor.u32 %v2509, %v2510
        %v2512 = vshll.u32 2131351028, %v2503
        %v2513 = vshrl.u32 2102212464, %v2504
        %v2514 = vor.u32 %v2512, %v2513
        %v2515 = vshll.u32 2102212464, %v2503
        %v2516 = vshrl.u32 920167782, %v2504
        %v2517 = vor.u32 %v2515, %v2516
        %v2518 = vshll.u32 920167782, %v2503
        %v2519 = vshrl.u32 1326507024, %v2504
        %v2520 = vor.u32 %v2518, %v2519
        %vm2521 = vcmp.lt.s32.totalorder %v2502, 1
        %vm2522 = vcmp.lt.s32.totalorder %v2502, 2
        %vm2523 = vcmp.lt.s32.totalorder %v2502, 3
        %vm2524 = vcmp.lt.s32.totalorder %v2502, 4
        %v2525 = vsel %vm2521, %v2505, %v2508
        %v2526 = vsel %vm2524, %v2514, 2102212464
        %v2527 = vsel %vm2523, %v2511, %v2526
        %v2528 = vsel %vm2522, %v2525, %v2527
        %v2529 = vsel %vm2521, %v2508, %v2511
        %v2530 = vsel %vm2524, %v2517, 920167782
        %v2531 = vsel %vm2523, %v2514, %v2530
        %v2532 = vsel %vm2522, %v2529, %v2531
        %v2533 = vsel %vm2521, %v2511, %v2514
        %v2534 = vsel %vm2524, %v2520, 1326507024
        %v2535 = vsel %vm2523, %v2517, %v2534
        %v2536 = vsel %vm2522, %v2533, %v2535
        %v2537 = vshll.u32 %v2497, 8
        %v2538 = vmul.u32.u64.compose %v2537, %v2536
        %v2539 = vextract.low.u32 %v2538
        %v2540 = vextract.high.u32 %v2538
        %v2541 = vmul.u32.u64.compose %v2537, %v2532
        %v2542 = vextract.low.u32 %v2541
        %v2543 = vextract.high.u32 %v2541
        %v2544 = vmul.u32 %v2537, %v2528
        %v2545 = vadd.s32 %v2540, %v2542
        %vm2546 = vc.u32 %v2540, %v2542
        %v2547 = vadd.s32 %v2543, 1
        %v2548 = vsel %vm2546, %v2547, %v2543
        %v2549 = vadd.s32 %v2544, %v2548
        %v2550 = vadd.s32 %v2549, 536870912
        %v2551 = vshrl.u32 %v2550, 30
        %v2552 = vshll.u32 %v2551, 30
        %v2553 = vsub.s32 %v2549, %v2552
        %vm2554 = vcmp.lt.s32.totalorder %v2553, 0
        %v2555 = vsub.s32 0, %v2553
        %v2556 = vsel %vm2554, %v2555, %v2553
        %v2557 = vclz %v2556
        %v2558 = vsub.s32 %v2557, 2
        %vm2559 = vcmp.gt.s32.totalorder 0, %v2558
        %v2560 = vsel %vm2559, 0, %v2558
        %v2561 = vsub.s32 32, %v2560
        %v2562 = vshll.u32 %v2553, %v2560
        %v2563 = vshrl.u32 %v2545, %v2561
        %v2564 = vor.u32 %v2562, %v2563
        %v2565 = vsub.s32 4294967266, %v2560
        %v2566 = vadd.s32 %v2565, 127
        %v2567 = vshll.u32 %v2566, 23
        %v2568 = vor.u32 4788187, %v2567
        %v2569 = vand.u32 2147483647, %v2568
        %v2571 = vcvt.s32.f32 %v2564
        %v2572 = vmul.f32 %v2571, %v2569
        %v2573 = vxor.u32 %v2572, 2147483648
        %v2574 = vsel %vm2491, %v2573, %v2572
        %v2575 = vsub.s32 4, %v2551
        %v2576 = vsel %vm2491, %v2575, %v2551
        %v2577 = vsel %vm2490, %v407, %v2574
        %v2578 = vsel %vm2490, 0, %v2576
        %v2579 = vcosq.f32.pop %v2577
        %v2580 = vsinq.f32.pop %v2577
        %vm2581 = vweird.f32 %v407
        %v2582 = vadd.s32 %v2578, 3
        %v2583 = vand.u32 %v2582, 3
        %vm2584 = vcmp.lt.s32.totalorder %v2583, 2
        %vm2585 = vcmp.eq.s32.totalorder %v2583, 0
        %v2586 = vxor.u32 %v2580, 2147483648
        %v2587 = vsel %vm2585, %v2579, %v2586
        %vm2588 = vcmp.eq.s32.totalorder %v2583, 2
        %v2589 = vxor.u32 %v2579, 2147483648
        %v2590 = vsel %vm2588, %v2589, %v2580
        %v2591 = vsel %vm2584, %v2587, %v2590
        %v2592 = vsel %vm2581, nan, %v2591
        %v2593 = vand.u32 2147483647, %v408
        %vm2594 = vcmp.le.f32.partialorder %v2593, 0.7853982
        %vm2595 = vcmp.lt.s32.totalorder %v408, 0
        %v2596 = vand.u32 %v408, 2139095040
        %v2597 = vshrl.u32 %v2596, 23
        %v2598 = vsub.s32 %v2597, 127
        %v2599 = vand.u32 2147483647, %v408
        %v2600 = vand.u32 %v2599, 8388607
        %v2601 = vor.u32 %v2600, 8388608
        %v2602 = vsub.s32 0, %v2601
        %v2603 = vadd.s32 %v2598, 1
        %vm2604 = vcmp.gt.s32.totalorder %v2603, 0
        %v2605 = vsel %vm2604, %v2603, 0
        %v2606 = vshrl.u32 %v2605, 5
        %v2607 = vand.u32 %v2605, 31
        %v2608 = vsub.s32 32, %v2607
        %v2609 = vshrl.u32 683565275, %v2608
        %v2610 = vshll.u32 683565275, %v2607
        %v2611 = vshrl.u32 2475754826, %v2608
        %v2612 = vor.u32 %v2610, %v2611
        %v2613 = vshll.u32 2475754826, %v2607
        %v2614 = vshrl.u32 2131351028, %v2608
        %v2615 = vor.u32 %v2613, %v2614
        %v2616 = vshll.u32 2131351028, %v2607
        %v2617 = vshrl.u32 2102212464, %v2608
        %v2618 = vor.u32 %v2616, %v2617
        %v2619 = vshll.u32 2102212464, %v2607
        %v2620 = vshrl.u32 920167782, %v2608
        %v2621 = vor.u32 %v2619, %v2620
        %v2622 = vshll.u32 920167782, %v2607
        %v2623 = vshrl.u32 1326507024, %v2608
        %v2624 = vor.u32 %v2622, %v2623
        %vm2625 = vcmp.lt.s32.totalorder %v2606, 1
        %vm2626 = vcmp.lt.s32.totalorder %v2606, 2
        %vm2627 = vcmp.lt.s32.totalorder %v2606, 3
        %vm2628 = vcmp.lt.s32.totalorder %v2606, 4
        %v2629 = vsel %vm2625, %v2609, %v2612
        %v2630 = vsel %vm2628, %v2618, 2102212464
        %v2631 = vsel %vm2627, %v2615, %v2630
        %v2632 = vsel %vm2626, %v2629, %v2631
        %v2633 = vsel %vm2625, %v2612, %v2615
        %v2634 = vsel %vm2628, %v2621, 920167782
        %v2635 = vsel %vm2627, %v2618, %v2634
        %v2636 = vsel %vm2626, %v2633, %v2635
        %v2637 = vsel %vm2625, %v2615, %v2618
        %v2638 = vsel %vm2628, %v2624, 1326507024
        %v2639 = vsel %vm2627, %v2621, %v2638
        %v2640 = vsel %vm2626, %v2637, %v2639
        %v2641 = vshll.u32 %v2601, 8
        %v2642 = vmul.u32.u64.compose %v2641, %v2640
        %v2643 = vextract.low.u32 %v2642
        %v2644 = vextract.high.u32 %v2642
        %v2645 = vmul.u32.u64.compose %v2641, %v2636
        %v2646 = vextract.low.u32 %v2645
        %v2647 = vextract.high.u32 %v2645
        %v2648 = vmul.u32 %v2641, %v2632
        %v2649 = vadd.s32 %v2644, %v2646
        %vm2650 = vc.u32 %v2644, %v2646
        %v2651 = vadd.s32 %v2647, 1
        %v2652 = vsel %vm2650, %v2651, %v2647
        %v2653 = vadd.s32 %v2648, %v2652
        %v2654 = vadd.s32 %v2653, 536870912
        %v2655 = vshrl.u32 %v2654, 30
        %v2656 = vshll.u32 %v2655, 30
        %v2657 = vsub.s32 %v2653, %v2656
        %vm2658 = vcmp.lt.s32.totalorder %v2657, 0
        %v2659 = vsub.s32 0, %v2657
        %v2660 = vsel %vm2658, %v2659, %v2657
        %v2661 = vclz %v2660
        %v2662 = vsub.s32 %v2661, 2
        %vm2663 = vcmp.gt.s32.totalorder 0, %v2662
        %v2664 = vsel %vm2663, 0, %v2662
        %v2665 = vsub.s32 32, %v2664
        %v2666 = vshll.u32 %v2657, %v2664
        %v2667 = vshrl.u32 %v2649, %v2665
        %v2668 = vor.u32 %v2666, %v2667
        %v2669 = vsub.s32 4294967266, %v2664
        %v2670 = vadd.s32 %v2669, 127
        %v2671 = vshll.u32 %v2670, 23
        %v2672 = vor.u32 4788187, %v2671
        %v2673 = vand.u32 2147483647, %v2672
        %v2675 = vcvt.s32.f32 %v2668
        %v2676 = vmul.f32 %v2675, %v2673
        %v2677 = vxor.u32 %v2676, 2147483648
        %v2678 = vsel %vm2595, %v2677, %v2676
        %v2679 = vsub.s32 4, %v2655
        %v2680 = vsel %vm2595, %v2679, %v2655
        %v2681 = vsel %vm2594, %v408, %v2678
        %v2682 = vsel %vm2594, 0, %v2680
        %v2683 = vcosq.f32.pop %v2681
        %v2684 = vsinq.f32.pop %v2681
        %vm2685 = vweird.f32 %v408
        %v2686 = vadd.s32 %v2682, 3
        %v2687 = vand.u32 %v2686, 3
        %vm2688 = vcmp.lt.s32.totalorder %v2687, 2
        %vm2689 = vcmp.eq.s32.totalorder %v2687, 0
        %v2690 = vxor.u32 %v2684, 2147483648
        %v2691 = vsel %vm2689, %v2683, %v2690
        %vm2692 = vcmp.eq.s32.totalorder %v2687, 2
        %v2693 = vxor.u32 %v2683, 2147483648
        %v2694 = vsel %vm2692, %v2693, %v2684
        %v2695 = vsel %vm2688, %v2691, %v2694
        %v2696 = vsel %vm2685, nan, %v2695
        %v2697 = vand.u32 2147483647, %v387
        %vm2698 = vcmp.le.f32.partialorder %v2697, 0.7853982
        %vm2699 = vcmp.lt.s32.totalorder %v387, 0
        %v2700 = vand.u32 %v387, 2139095040
        %v2701 = vshrl.u32 %v2700, 23
        %v2702 = vsub.s32 %v2701, 127
        %v2703 = vand.u32 2147483647, %v387
        %v2704 = vand.u32 %v2703, 8388607
        %v2705 = vor.u32 %v2704, 8388608
        %v2706 = vsub.s32 0, %v2705
        %v2707 = vadd.s32 %v2702, 1
        %vm2708 = vcmp.gt.s32.totalorder %v2707, 0
        %v2709 = vsel %vm2708, %v2707, 0
        %v2710 = vshrl.u32 %v2709, 5
        %v2711 = vand.u32 %v2709, 31
        %v2712 = vsub.s32 32, %v2711
        %v2713 = vshrl.u32 683565275, %v2712
        %v2714 = vshll.u32 683565275, %v2711
        %v2715 = vshrl.u32 2475754826, %v2712
        %v2716 = vor.u32 %v2714, %v2715
        %v2717 = vshll.u32 2475754826, %v2711
        %v2718 = vshrl.u32 2131351028, %v2712
        %v2719 = vor.u32 %v2717, %v2718
        %v2720 = vshll.u32 2131351028, %v2711
        %v2721 = vshrl.u32 2102212464, %v2712
        %v2722 = vor.u32 %v2720, %v2721
        %v2723 = vshll.u32 2102212464, %v2711
        %v2724 = vshrl.u32 920167782, %v2712
        %v2725 = vor.u32 %v2723, %v2724
        %v2726 = vshll.u32 920167782, %v2711
        %v2727 = vshrl.u32 1326507024, %v2712
        %v2728 = vor.u32 %v2726, %v2727
        %vm2729 = vcmp.lt.s32.totalorder %v2710, 1
        %vm2730 = vcmp.lt.s32.totalorder %v2710, 2
        %vm2731 = vcmp.lt.s32.totalorder %v2710, 3
        %vm2732 = vcmp.lt.s32.totalorder %v2710, 4
        %v2733 = vsel %vm2729, %v2713, %v2716
        %v2734 = vsel %vm2732, %v2722, 2102212464
        %v2735 = vsel %vm2731, %v2719, %v2734
        %v2736 = vsel %vm2730, %v2733, %v2735
        %v2737 = vsel %vm2729, %v2716, %v2719
        %v2738 = vsel %vm2732, %v2725, 920167782
        %v2739 = vsel %vm2731, %v2722, %v2738
        %v2740 = vsel %vm2730, %v2737, %v2739
        %v2741 = vsel %vm2729, %v2719, %v2722
        %v2742 = vsel %vm2732, %v2728, 1326507024
        %v2743 = vsel %vm2731, %v2725, %v2742
        %v2744 = vsel %vm2730, %v2741, %v2743
        %v2745 = vshll.u32 %v2705, 8
        %v2746 = vmul.u32.u64.compose %v2745, %v2744
        %v2747 = vextract.low.u32 %v2746
        %v2748 = vextract.high.u32 %v2746
        %v2749 = vmul.u32.u64.compose %v2745, %v2740
        %v2750 = vextract.low.u32 %v2749
        %v2751 = vextract.high.u32 %v2749
        %v2752 = vmul.u32 %v2745, %v2736
        %v2753 = vadd.s32 %v2748, %v2750
        %vm2754 = vc.u32 %v2748, %v2750
        %v2755 = vadd.s32 %v2751, 1
        %v2756 = vsel %vm2754, %v2755, %v2751
        %v2757 = vadd.s32 %v2752, %v2756
        %v2758 = vadd.s32 %v2757, 536870912
        %v2759 = vshrl.u32 %v2758, 30
        %v2760 = vshll.u32 %v2759, 30
        %v2761 = vsub.s32 %v2757, %v2760
        %vm2762 = vcmp.lt.s32.totalorder %v2761, 0
        %v2763 = vsub.s32 0, %v2761
        %v2764 = vsel %vm2762, %v2763, %v2761
        %v2765 = vclz %v2764
        %v2766 = vsub.s32 %v2765, 2
        %vm2767 = vcmp.gt.s32.totalorder 0, %v2766
        %v2768 = vsel %vm2767, 0, %v2766
        %v2769 = vsub.s32 32, %v2768
        %v2770 = vshll.u32 %v2761, %v2768
        %v2771 = vshrl.u32 %v2753, %v2769
        %v2772 = vor.u32 %v2770, %v2771
        %v2773 = vsub.s32 4294967266, %v2768
        %v2774 = vadd.s32 %v2773, 127
        %v2775 = vshll.u32 %v2774, 23
        %v2776 = vor.u32 4788187, %v2775
        %v2777 = vand.u32 2147483647, %v2776
        %v2779 = vcvt.s32.f32 %v2772
        %v2780 = vmul.f32 %v2779, %v2777
        %v2781 = vxor.u32 %v2780, 2147483648
        %v2782 = vsel %vm2699, %v2781, %v2780
        %v2783 = vsub.s32 4, %v2759
        %v2784 = vsel %vm2699, %v2783, %v2759
        %v2785 = vsel %vm2698, %v387, %v2782
        %v2786 = vsel %vm2698, 0, %v2784
        %v2787 = vcosq.f32.pop %v2785
        %v2788 = vsinq.f32.pop %v2785
        %vm2789 = vweird.f32 %v387
        %v2790 = vand.u32 %v2786, 3
        %vm2791 = vcmp.lt.s32.totalorder %v2790, 2
        %vm2792 = vcmp.eq.s32.totalorder %v2790, 0
        %v2793 = vxor.u32 %v2788, 2147483648
        %v2794 = vsel %vm2792, %v2787, %v2793
        %vm2795 = vcmp.eq.s32.totalorder %v2790, 2
        %v2796 = vxor.u32 %v2787, 2147483648
        %v2797 = vsel %vm2795, %v2796, %v2788
        %v2798 = vsel %vm2791, %v2794, %v2797
        %v2799 = vsel %vm2789, nan, %v2798
        %v2800 = vand.u32 2147483647, %v388
        %vm2801 = vcmp.le.f32.partialorder %v2800, 0.7853982
        %vm2802 = vcmp.lt.s32.totalorder %v388, 0
        %v2803 = vand.u32 %v388, 2139095040
        %v2804 = vshrl.u32 %v2803, 23
        %v2805 = vsub.s32 %v2804, 127
        %v2806 = vand.u32 2147483647, %v388
        %v2807 = vand.u32 %v2806, 8388607
        %v2808 = vor.u32 %v2807, 8388608
        %v2809 = vsub.s32 0, %v2808
        %v2810 = vadd.s32 %v2805, 1
        %vm2811 = vcmp.gt.s32.totalorder %v2810, 0
        %v2812 = vsel %vm2811, %v2810, 0
        %v2813 = vshrl.u32 %v2812, 5
        %v2814 = vand.u32 %v2812, 31
        %v2815 = vsub.s32 32, %v2814
        %v2816 = vshrl.u32 683565275, %v2815
        %v2817 = vshll.u32 683565275, %v2814
        %v2818 = vshrl.u32 2475754826, %v2815
        %v2819 = vor.u32 %v2817, %v2818
        %v2820 = vshll.u32 2475754826, %v2814
        %v2821 = vshrl.u32 2131351028, %v2815
        %v2822 = vor.u32 %v2820, %v2821
        %v2823 = vshll.u32 2131351028, %v2814
        %v2824 = vshrl.u32 2102212464, %v2815
        %v2825 = vor.u32 %v2823, %v2824
        %v2826 = vshll.u32 2102212464, %v2814
        %v2827 = vshrl.u32 920167782, %v2815
        %v2828 = vor.u32 %v2826, %v2827
        %v2829 = vshll.u32 920167782, %v2814
        %v2830 = vshrl.u32 1326507024, %v2815
        %v2831 = vor.u32 %v2829, %v2830
        %vm2832 = vcmp.lt.s32.totalorder %v2813, 1
        %vm2833 = vcmp.lt.s32.totalorder %v2813, 2
        %vm2834 = vcmp.lt.s32.totalorder %v2813, 3
        %vm2835 = vcmp.lt.s32.totalorder %v2813, 4
        %v2836 = vsel %vm2832, %v2816, %v2819
        %v2837 = vsel %vm2835, %v2825, 2102212464
        %v2838 = vsel %vm2834, %v2822, %v2837
        %v2839 = vsel %vm2833, %v2836, %v2838
        %v2840 = vsel %vm2832, %v2819, %v2822
        %v2841 = vsel %vm2835, %v2828, 920167782
        %v2842 = vsel %vm2834, %v2825, %v2841
        %v2843 = vsel %vm2833, %v2840, %v2842
        %v2844 = vsel %vm2832, %v2822, %v2825
        %v2845 = vsel %vm2835, %v2831, 1326507024
        %v2846 = vsel %vm2834, %v2828, %v2845
        %v2847 = vsel %vm2833, %v2844, %v2846
        %v2848 = vshll.u32 %v2808, 8
        %v2849 = vmul.u32.u64.compose %v2848, %v2847
        %v2850 = vextract.low.u32 %v2849
        %v2851 = vextract.high.u32 %v2849
        %v2852 = vmul.u32.u64.compose %v2848, %v2843
        %v2853 = vextract.low.u32 %v2852
        %v2854 = vextract.high.u32 %v2852
        %v2855 = vmul.u32 %v2848, %v2839
        %v2856 = vadd.s32 %v2851, %v2853
        %vm2857 = vc.u32 %v2851, %v2853
        %v2858 = vadd.s32 %v2854, 1
        %v2859 = vsel %vm2857, %v2858, %v2854
        %v2860 = vadd.s32 %v2855, %v2859
        %v2861 = vadd.s32 %v2860, 536870912
        %v2862 = vshrl.u32 %v2861, 30
        %v2863 = vshll.u32 %v2862, 30
        %v2864 = vsub.s32 %v2860, %v2863
        %vm2865 = vcmp.lt.s32.totalorder %v2864, 0
        %v2866 = vsub.s32 0, %v2864
        %v2867 = vsel %vm2865, %v2866, %v2864
        %v2868 = vclz %v2867
        %v2869 = vsub.s32 %v2868, 2
        %vm2870 = vcmp.gt.s32.totalorder 0, %v2869
        %v2871 = vsel %vm2870, 0, %v2869
        %v2872 = vsub.s32 32, %v2871
        %v2873 = vshll.u32 %v2864, %v2871
        %v2874 = vshrl.u32 %v2856, %v2872
        %v2875 = vor.u32 %v2873, %v2874
        %v2876 = vsub.s32 4294967266, %v2871
        %v2877 = vadd.s32 %v2876, 127
        %v2878 = vshll.u32 %v2877, 23
        %v2879 = vor.u32 4788187, %v2878
        %v2880 = vand.u32 2147483647, %v2879
        %v2882 = vcvt.s32.f32 %v2875
        %v2883 = vmul.f32 %v2882, %v2880
        %v2884 = vxor.u32 %v2883, 2147483648
        %v2885 = vsel %vm2802, %v2884, %v2883
        %v2886 = vsub.s32 4, %v2862
        %v2887 = vsel %vm2802, %v2886, %v2862
        %v2888 = vsel %vm2801, %v388, %v2885
        %v2889 = vsel %vm2801, 0, %v2887
        %v2890 = vcosq.f32.pop %v2888
        %v2891 = vsinq.f32.pop %v2888
        %vm2892 = vweird.f32 %v388
        %v2893 = vand.u32 %v2889, 3
        %vm2894 = vcmp.lt.s32.totalorder %v2893, 2
        %vm2895 = vcmp.eq.s32.totalorder %v2893, 0
        %v2896 = vxor.u32 %v2891, 2147483648
        %v2897 = vsel %vm2895, %v2890, %v2896
        %vm2898 = vcmp.eq.s32.totalorder %v2893, 2
        %v2899 = vxor.u32 %v2890, 2147483648
        %v2900 = vsel %vm2898, %v2899, %v2891
        %v2901 = vsel %vm2894, %v2897, %v2900
        %v2902 = vsel %vm2892, nan, %v2901
        %v2903 = vand.u32 2147483647, %v389
        %vm2904 = vcmp.le.f32.partialorder %v2903, 0.7853982
        %vm2905 = vcmp.lt.s32.totalorder %v389, 0
        %v2906 = vand.u32 %v389, 2139095040
        %v2907 = vshrl.u32 %v2906, 23
        %v2908 = vsub.s32 %v2907, 127
        %v2909 = vand.u32 2147483647, %v389
        %v2910 = vand.u32 %v2909, 8388607
        %v2911 = vor.u32 %v2910, 8388608
        %v2912 = vsub.s32 0, %v2911
        %v2913 = vadd.s32 %v2908, 1
        %vm2914 = vcmp.gt.s32.totalorder %v2913, 0
        %v2915 = vsel %vm2914, %v2913, 0
        %v2916 = vshrl.u32 %v2915, 5
        %v2917 = vand.u32 %v2915, 31
        %v2918 = vsub.s32 32, %v2917
        %v2919 = vshrl.u32 683565275, %v2918
        %v2920 = vshll.u32 683565275, %v2917
        %v2921 = vshrl.u32 2475754826, %v2918
        %v2922 = vor.u32 %v2920, %v2921
        %v2923 = vshll.u32 2475754826, %v2917
        %v2924 = vshrl.u32 2131351028, %v2918
        %v2925 = vor.u32 %v2923, %v2924
        %v2926 = vshll.u32 2131351028, %v2917
        %v2927 = vshrl.u32 2102212464, %v2918
        %v2928 = vor.u32 %v2926, %v2927
        %v2929 = vshll.u32 2102212464, %v2917
        %v2930 = vshrl.u32 920167782, %v2918
        %v2931 = vor.u32 %v2929, %v2930
        %v2932 = vshll.u32 920167782, %v2917
        %v2933 = vshrl.u32 1326507024, %v2918
        %v2934 = vor.u32 %v2932, %v2933
        %vm2935 = vcmp.lt.s32.totalorder %v2916, 1
        %vm2936 = vcmp.lt.s32.totalorder %v2916, 2
        %vm2937 = vcmp.lt.s32.totalorder %v2916, 3
        %vm2938 = vcmp.lt.s32.totalorder %v2916, 4
        %v2939 = vsel %vm2935, %v2919, %v2922
        %v2940 = vsel %vm2938, %v2928, 2102212464
        %v2941 = vsel %vm2937, %v2925, %v2940
        %v2942 = vsel %vm2936, %v2939, %v2941
        %v2943 = vsel %vm2935, %v2922, %v2925
        %v2944 = vsel %vm2938, %v2931, 920167782
        %v2945 = vsel %vm2937, %v2928, %v2944
        %v2946 = vsel %vm2936, %v2943, %v2945
        %v2947 = vsel %vm2935, %v2925, %v2928
        %v2948 = vsel %vm2938, %v2934, 1326507024
        %v2949 = vsel %vm2937, %v2931, %v2948
        %v2950 = vsel %vm2936, %v2947, %v2949
        %v2951 = vshll.u32 %v2911, 8
        %v2952 = vmul.u32.u64.compose %v2951, %v2950
        %v2953 = vextract.low.u32 %v2952
        %v2954 = vextract.high.u32 %v2952
        %v2955 = vmul.u32.u64.compose %v2951, %v2946
        %v2956 = vextract.low.u32 %v2955
        %v2957 = vextract.high.u32 %v2955
        %v2958 = vmul.u32 %v2951, %v2942
        %v2959 = vadd.s32 %v2954, %v2956
        %vm2960 = vc.u32 %v2954, %v2956
        %v2961 = vadd.s32 %v2957, 1
        %v2962 = vsel %vm2960, %v2961, %v2957
        %v2963 = vadd.s32 %v2958, %v2962
        %v2964 = vadd.s32 %v2963, 536870912
        %v2965 = vshrl.u32 %v2964, 30
        %v2966 = vshll.u32 %v2965, 30
        %v2967 = vsub.s32 %v2963, %v2966
        %vm2968 = vcmp.lt.s32.totalorder %v2967, 0
        %v2969 = vsub.s32 0, %v2967
        %v2970 = vsel %vm2968, %v2969, %v2967
        %v2971 = vclz %v2970
        %v2972 = vsub.s32 %v2971, 2
        %vm2973 = vcmp.gt.s32.totalorder 0, %v2972
        %v2974 = vsel %vm2973, 0, %v2972
        %v2975 = vsub.s32 32, %v2974
        %v2976 = vshll.u32 %v2967, %v2974
        %v2977 = vshrl.u32 %v2959, %v2975
        %v2978 = vor.u32 %v2976, %v2977
        %v2979 = vsub.s32 4294967266, %v2974
        %v2980 = vadd.s32 %v2979, 127
        %v2981 = vshll.u32 %v2980, 23
        %v2982 = vor.u32 4788187, %v2981
        %v2983 = vand.u32 2147483647, %v2982
        %v2985 = vcvt.s32.f32 %v2978
        %v2986 = vmul.f32 %v2985, %v2983
        %v2987 = vxor.u32 %v2986, 2147483648
        %v2988 = vsel %vm2905, %v2987, %v2986
        %v2989 = vsub.s32 4, %v2965
        %v2990 = vsel %vm2905, %v2989, %v2965
        %v2991 = vsel %vm2904, %v389, %v2988
        %v2992 = vsel %vm2904, 0, %v2990
        %v2993 = vcosq.f32.pop %v2991
        %v2994 = vsinq.f32.pop %v2991
        %vm2995 = vweird.f32 %v389
        %v2996 = vand.u32 %v2992, 3
        %vm2997 = vcmp.lt.s32.totalorder %v2996, 2
        %vm2998 = vcmp.eq.s32.totalorder %v2996, 0
        %v2999 = vxor.u32 %v2994, 2147483648
        %v3000 = vsel %vm2998, %v2993, %v2999
        %vm3001 = vcmp.eq.s32.totalorder %v2996, 2
        %v3002 = vxor.u32 %v2993, 2147483648
        %v3003 = vsel %vm3001, %v3002, %v2994
        %v3004 = vsel %vm2997, %v3000, %v3003
        %v3005 = vsel %vm2995, nan, %v3004
        %v3006 = vand.u32 2147483647, %v390
        %vm3007 = vcmp.le.f32.partialorder %v3006, 0.7853982
        %vm3008 = vcmp.lt.s32.totalorder %v390, 0
        %v3009 = vand.u32 %v390, 2139095040
        %v3010 = vshrl.u32 %v3009, 23
        %v3011 = vsub.s32 %v3010, 127
        %v3012 = vand.u32 2147483647, %v390
        %v3013 = vand.u32 %v3012, 8388607
        %v3014 = vor.u32 %v3013, 8388608
        %v3015 = vsub.s32 0, %v3014
        %v3016 = vadd.s32 %v3011, 1
        %vm3017 = vcmp.gt.s32.totalorder %v3016, 0
        %v3018 = vsel %vm3017, %v3016, 0
        %v3019 = vshrl.u32 %v3018, 5
        %v3020 = vand.u32 %v3018, 31
        %v3021 = vsub.s32 32, %v3020
        %v3022 = vshrl.u32 683565275, %v3021
        %v3023 = vshll.u32 683565275, %v3020
        %v3024 = vshrl.u32 2475754826, %v3021
        %v3025 = vor.u32 %v3023, %v3024
        %v3026 = vshll.u32 2475754826, %v3020
        %v3027 = vshrl.u32 2131351028, %v3021
        %v3028 = vor.u32 %v3026, %v3027
        %v3029 = vshll.u32 2131351028, %v3020
        %v3030 = vshrl.u32 2102212464, %v3021
        %v3031 = vor.u32 %v3029, %v3030
        %v3032 = vshll.u32 2102212464, %v3020
        %v3033 = vshrl.u32 920167782, %v3021
        %v3034 = vor.u32 %v3032, %v3033
        %v3035 = vshll.u32 920167782, %v3020
        %v3036 = vshrl.u32 1326507024, %v3021
        %v3037 = vor.u32 %v3035, %v3036
        %vm3038 = vcmp.lt.s32.totalorder %v3019, 1
        %vm3039 = vcmp.lt.s32.totalorder %v3019, 2
        %vm3040 = vcmp.lt.s32.totalorder %v3019, 3
        %vm3041 = vcmp.lt.s32.totalorder %v3019, 4
        %v3042 = vsel %vm3038, %v3022, %v3025
        %v3043 = vsel %vm3041, %v3031, 2102212464
        %v3044 = vsel %vm3040, %v3028, %v3043
        %v3045 = vsel %vm3039, %v3042, %v3044
        %v3046 = vsel %vm3038, %v3025, %v3028
        %v3047 = vsel %vm3041, %v3034, 920167782
        %v3048 = vsel %vm3040, %v3031, %v3047
        %v3049 = vsel %vm3039, %v3046, %v3048
        %v3050 = vsel %vm3038, %v3028, %v3031
        %v3051 = vsel %vm3041, %v3037, 1326507024
        %v3052 = vsel %vm3040, %v3034, %v3051
        %v3053 = vsel %vm3039, %v3050, %v3052
        %v3054 = vshll.u32 %v3014, 8
        %v3055 = vmul.u32.u64.compose %v3054, %v3053
        %v3056 = vextract.low.u32 %v3055
        %v3057 = vextract.high.u32 %v3055
        %v3058 = vmul.u32.u64.compose %v3054, %v3049
        %v3059 = vextract.low.u32 %v3058
        %v3060 = vextract.high.u32 %v3058
        %v3061 = vmul.u32 %v3054, %v3045
        %v3062 = vadd.s32 %v3057, %v3059
        %vm3063 = vc.u32 %v3057, %v3059
        %v3064 = vadd.s32 %v3060, 1
        %v3065 = vsel %vm3063, %v3064, %v3060
        %v3066 = vadd.s32 %v3061, %v3065
        %v3067 = vadd.s32 %v3066, 536870912
        %v3068 = vshrl.u32 %v3067, 30
        %v3069 = vshll.u32 %v3068, 30
        %v3070 = vsub.s32 %v3066, %v3069
        %vm3071 = vcmp.lt.s32.totalorder %v3070, 0
        %v3072 = vsub.s32 0, %v3070
        %v3073 = vsel %vm3071, %v3072, %v3070
        %v3074 = vclz %v3073
        %v3075 = vsub.s32 %v3074, 2
        %vm3076 = vcmp.gt.s32.totalorder 0, %v3075
        %v3077 = vsel %vm3076, 0, %v3075
        %v3078 = vsub.s32 32, %v3077
        %v3079 = vshll.u32 %v3070, %v3077
        %v3080 = vshrl.u32 %v3062, %v3078
        %v3081 = vor.u32 %v3079, %v3080
        %v3082 = vsub.s32 4294967266, %v3077
        %v3083 = vadd.s32 %v3082, 127
        %v3084 = vshll.u32 %v3083, 23
        %v3085 = vor.u32 4788187, %v3084
        %v3086 = vand.u32 2147483647, %v3085
        %v3088 = vcvt.s32.f32 %v3081
        %v3089 = vmul.f32 %v3088, %v3086
        %v3090 = vxor.u32 %v3089, 2147483648
        %v3091 = vsel %vm3008, %v3090, %v3089
        %v3092 = vsub.s32 4, %v3068
        %v3093 = vsel %vm3008, %v3092, %v3068
        %v3094 = vsel %vm3007, %v390, %v3091
        %v3095 = vsel %vm3007, 0, %v3093
        %v3096 = vcosq.f32.pop %v3094
        %v3097 = vsinq.f32.pop %v3094
        %vm3098 = vweird.f32 %v390
        %v3099 = vand.u32 %v3095, 3
        %vm3100 = vcmp.lt.s32.totalorder %v3099, 2
        %vm3101 = vcmp.eq.s32.totalorder %v3099, 0
        %v3102 = vxor.u32 %v3097, 2147483648
        %v3103 = vsel %vm3101, %v3096, %v3102
        %vm3104 = vcmp.eq.s32.totalorder %v3099, 2
        %v3105 = vxor.u32 %v3096, 2147483648
        %v3106 = vsel %vm3104, %v3105, %v3097
        %v3107 = vsel %vm3100, %v3103, %v3106
        %v3108 = vsel %vm3098, nan, %v3107
        %v3109 = vand.u32 2147483647, %v391
        %vm3110 = vcmp.le.f32.partialorder %v3109, 0.7853982
        %vm3111 = vcmp.lt.s32.totalorder %v391, 0
        %v3112 = vand.u32 %v391, 2139095040
        %v3113 = vshrl.u32 %v3112, 23
        %v3114 = vsub.s32 %v3113, 127
        %v3115 = vand.u32 2147483647, %v391
        %v3116 = vand.u32 %v3115, 8388607
        %v3117 = vor.u32 %v3116, 8388608
        %v3118 = vsub.s32 0, %v3117
        %v3119 = vadd.s32 %v3114, 1
        %vm3120 = vcmp.gt.s32.totalorder %v3119, 0
        %v3121 = vsel %vm3120, %v3119, 0
        %v3122 = vshrl.u32 %v3121, 5
        %v3123 = vand.u32 %v3121, 31
        %v3124 = vsub.s32 32, %v3123
        %v3125 = vshrl.u32 683565275, %v3124
        %v3126 = vshll.u32 683565275, %v3123
        %v3127 = vshrl.u32 2475754826, %v3124
        %v3128 = vor.u32 %v3126, %v3127
        %v3129 = vshll.u32 2475754826, %v3123
        %v3130 = vshrl.u32 2131351028, %v3124
        %v3131 = vor.u32 %v3129, %v3130
        %v3132 = vshll.u32 2131351028, %v3123
        %v3133 = vshrl.u32 2102212464, %v3124
        %v3134 = vor.u32 %v3132, %v3133
        %v3135 = vshll.u32 2102212464, %v3123
        %v3136 = vshrl.u32 920167782, %v3124
        %v3137 = vor.u32 %v3135, %v3136
        %v3138 = vshll.u32 920167782, %v3123
        %v3139 = vshrl.u32 1326507024, %v3124
        %v3140 = vor.u32 %v3138, %v3139
        %vm3141 = vcmp.lt.s32.totalorder %v3122, 1
        %vm3142 = vcmp.lt.s32.totalorder %v3122, 2
        %vm3143 = vcmp.lt.s32.totalorder %v3122, 3
        %vm3144 = vcmp.lt.s32.totalorder %v3122, 4
        %v3145 = vsel %vm3141, %v3125, %v3128
        %v3146 = vsel %vm3144, %v3134, 2102212464
        %v3147 = vsel %vm3143, %v3131, %v3146
        %v3148 = vsel %vm3142, %v3145, %v3147
        %v3149 = vsel %vm3141, %v3128, %v3131
        %v3150 = vsel %vm3144, %v3137, 920167782
        %v3151 = vsel %vm3143, %v3134, %v3150
        %v3152 = vsel %vm3142, %v3149, %v3151
        %v3153 = vsel %vm3141, %v3131, %v3134
        %v3154 = vsel %vm3144, %v3140, 1326507024
        %v3155 = vsel %vm3143, %v3137, %v3154
        %v3156 = vsel %vm3142, %v3153, %v3155
        %v3157 = vshll.u32 %v3117, 8
        %v3158 = vmul.u32.u64.compose %v3157, %v3156
        %v3159 = vextract.low.u32 %v3158
        %v3160 = vextract.high.u32 %v3158
        %v3161 = vmul.u32.u64.compose %v3157, %v3152
        %v3162 = vextract.low.u32 %v3161
        %v3163 = vextract.high.u32 %v3161
        %v3164 = vmul.u32 %v3157, %v3148
        %v3165 = vadd.s32 %v3160, %v3162
        %vm3166 = vc.u32 %v3160, %v3162
        %v3167 = vadd.s32 %v3163, 1
        %v3168 = vsel %vm3166, %v3167, %v3163
        %v3169 = vadd.s32 %v3164, %v3168
        %v3170 = vadd.s32 %v3169, 536870912
        %v3171 = vshrl.u32 %v3170, 30
        %v3172 = vshll.u32 %v3171, 30
        %v3173 = vsub.s32 %v3169, %v3172
        %vm3174 = vcmp.lt.s32.totalorder %v3173, 0
        %v3175 = vsub.s32 0, %v3173
        %v3176 = vsel %vm3174, %v3175, %v3173
        %v3177 = vclz %v3176
        %v3178 = vsub.s32 %v3177, 2
        %vm3179 = vcmp.gt.s32.totalorder 0, %v3178
        %v3180 = vsel %vm3179, 0, %v3178
        %v3181 = vsub.s32 32, %v3180
        %v3182 = vshll.u32 %v3173, %v3180
        %v3183 = vshrl.u32 %v3165, %v3181
        %v3184 = vor.u32 %v3182, %v3183
        %v3185 = vsub.s32 4294967266, %v3180
        %v3186 = vadd.s32 %v3185, 127
        %v3187 = vshll.u32 %v3186, 23
        %v3188 = vor.u32 4788187, %v3187
        %v3189 = vand.u32 2147483647, %v3188
        %v3191 = vcvt.s32.f32 %v3184
        %v3192 = vmul.f32 %v3191, %v3189
        %v3193 = vxor.u32 %v3192, 2147483648
        %v3194 = vsel %vm3111, %v3193, %v3192
        %v3195 = vsub.s32 4, %v3171
        %v3196 = vsel %vm3111, %v3195, %v3171
        %v3197 = vsel %vm3110, %v391, %v3194
        %v3198 = vsel %vm3110, 0, %v3196
        %v3199 = vcosq.f32.pop %v3197
        %v3200 = vsinq.f32.pop %v3197
        %vm3201 = vweird.f32 %v391
        %v3202 = vand.u32 %v3198, 3
        %vm3203 = vcmp.lt.s32.totalorder %v3202, 2
        %vm3204 = vcmp.eq.s32.totalorder %v3202, 0
        %v3205 = vxor.u32 %v3200, 2147483648
        %v3206 = vsel %vm3204, %v3199, %v3205
        %vm3207 = vcmp.eq.s32.totalorder %v3202, 2
        %v3208 = vxor.u32 %v3199, 2147483648
        %v3209 = vsel %vm3207, %v3208, %v3200
        %v3210 = vsel %vm3203, %v3206, %v3209
        %v3211 = vsel %vm3201, nan, %v3210
        %v3212 = vand.u32 2147483647, %v392
        %vm3213 = vcmp.le.f32.partialorder %v3212, 0.7853982
        %vm3214 = vcmp.lt.s32.totalorder %v392, 0
        %v3215 = vand.u32 %v392, 2139095040
        %v3216 = vshrl.u32 %v3215, 23
        %v3217 = vsub.s32 %v3216, 127
        %v3218 = vand.u32 2147483647, %v392
        %v3219 = vand.u32 %v3218, 8388607
        %v3220 = vor.u32 %v3219, 8388608
        %v3221 = vsub.s32 0, %v3220
        %v3222 = vadd.s32 %v3217, 1
        %vm3223 = vcmp.gt.s32.totalorder %v3222, 0
        %v3224 = vsel %vm3223, %v3222, 0
        %v3225 = vshrl.u32 %v3224, 5
        %v3226 = vand.u32 %v3224, 31
        %v3227 = vsub.s32 32, %v3226
        %v3228 = vshrl.u32 683565275, %v3227
        %v3229 = vshll.u32 683565275, %v3226
        %v3230 = vshrl.u32 2475754826, %v3227
        %v3231 = vor.u32 %v3229, %v3230
        %v3232 = vshll.u32 2475754826, %v3226
        %v3233 = vshrl.u32 2131351028, %v3227
        %v3234 = vor.u32 %v3232, %v3233
        %v3235 = vshll.u32 2131351028, %v3226
        %v3236 = vshrl.u32 2102212464, %v3227
        %v3237 = vor.u32 %v3235, %v3236
        %v3238 = vshll.u32 2102212464, %v3226
        %v3239 = vshrl.u32 920167782, %v3227
        %v3240 = vor.u32 %v3238, %v3239
        %v3241 = vshll.u32 920167782, %v3226
        %v3242 = vshrl.u32 1326507024, %v3227
        %v3243 = vor.u32 %v3241, %v3242
        %vm3244 = vcmp.lt.s32.totalorder %v3225, 1
        %vm3245 = vcmp.lt.s32.totalorder %v3225, 2
        %vm3246 = vcmp.lt.s32.totalorder %v3225, 3
        %vm3247 = vcmp.lt.s32.totalorder %v3225, 4
        %v3248 = vsel %vm3244, %v3228, %v3231
        %v3249 = vsel %vm3247, %v3237, 2102212464
        %v3250 = vsel %vm3246, %v3234, %v3249
        %v3251 = vsel %vm3245, %v3248, %v3250
        %v3252 = vsel %vm3244, %v3231, %v3234
        %v3253 = vsel %vm3247, %v3240, 920167782
        %v3254 = vsel %vm3246, %v3237, %v3253
        %v3255 = vsel %vm3245, %v3252, %v3254
        %v3256 = vsel %vm3244, %v3234, %v3237
        %v3257 = vsel %vm3247, %v3243, 1326507024
        %v3258 = vsel %vm3246, %v3240, %v3257
        %v3259 = vsel %vm3245, %v3256, %v3258
        %v3260 = vshll.u32 %v3220, 8
        %v3261 = vmul.u32.u64.compose %v3260, %v3259
        %v3262 = vextract.low.u32 %v3261
        %v3263 = vextract.high.u32 %v3261
        %v3264 = vmul.u32.u64.compose %v3260, %v3255
        %v3265 = vextract.low.u32 %v3264
        %v3266 = vextract.high.u32 %v3264
        %v3267 = vmul.u32 %v3260, %v3251
        %v3268 = vadd.s32 %v3263, %v3265
        %vm3269 = vc.u32 %v3263, %v3265
        %v3270 = vadd.s32 %v3266, 1
        %v3271 = vsel %vm3269, %v3270, %v3266
        %v3272 = vadd.s32 %v3267, %v3271
        %v3273 = vadd.s32 %v3272, 536870912
        %v3274 = vshrl.u32 %v3273, 30
        %v3275 = vshll.u32 %v3274, 30
        %v3276 = vsub.s32 %v3272, %v3275
        %vm3277 = vcmp.lt.s32.totalorder %v3276, 0
        %v3278 = vsub.s32 0, %v3276
        %v3279 = vsel %vm3277, %v3278, %v3276
        %v3280 = vclz %v3279
        %v3281 = vsub.s32 %v3280, 2
        %vm3282 = vcmp.gt.s32.totalorder 0, %v3281
        %v3283 = vsel %vm3282, 0, %v3281
        %v3284 = vsub.s32 32, %v3283
        %v3285 = vshll.u32 %v3276, %v3283
        %v3286 = vshrl.u32 %v3268, %v3284
        %v3287 = vor.u32 %v3285, %v3286
        %v3288 = vsub.s32 4294967266, %v3283
        %v3289 = vadd.s32 %v3288, 127
        %v3290 = vshll.u32 %v3289, 23
        %v3291 = vor.u32 4788187, %v3290
        %v3292 = vand.u32 2147483647, %v3291
        %v3294 = vcvt.s32.f32 %v3287
        %v3295 = vmul.f32 %v3294, %v3292
        %v3296 = vxor.u32 %v3295, 2147483648
        %v3297 = vsel %vm3214, %v3296, %v3295
        %v3298 = vsub.s32 4, %v3274
        %v3299 = vsel %vm3214, %v3298, %v3274
        %v3300 = vsel %vm3213, %v392, %v3297
        %v3301 = vsel %vm3213, 0, %v3299
        %v3302 = vcosq.f32.pop %v3300
        %v3303 = vsinq.f32.pop %v3300
        %vm3304 = vweird.f32 %v392
        %v3305 = vand.u32 %v3301, 3
        %vm3306 = vcmp.lt.s32.totalorder %v3305, 2
        %vm3307 = vcmp.eq.s32.totalorder %v3305, 0
        %v3308 = vxor.u32 %v3303, 2147483648
        %v3309 = vsel %vm3307, %v3302, %v3308
        %vm3310 = vcmp.eq.s32.totalorder %v3305, 2
        %v3311 = vxor.u32 %v3302, 2147483648
        %v3312 = vsel %vm3310, %v3311, %v3303
        %v3313 = vsel %vm3306, %v3309, %v3312
        %v3314 = vsel %vm3304, nan, %v3313
        %v3315 = vand.u32 2147483647, %v393
        %vm3316 = vcmp.le.f32.partialorder %v3315, 0.7853982
        %vm3317 = vcmp.lt.s32.totalorder %v393, 0
        %v3318 = vand.u32 %v393, 2139095040
        %v3319 = vshrl.u32 %v3318, 23
        %v3320 = vsub.s32 %v3319, 127
        %v3321 = vand.u32 2147483647, %v393
        %v3322 = vand.u32 %v3321, 8388607
        %v3323 = vor.u32 %v3322, 8388608
        %v3324 = vsub.s32 0, %v3323
        %v3325 = vadd.s32 %v3320, 1
        %vm3326 = vcmp.gt.s32.totalorder %v3325, 0
        %v3327 = vsel %vm3326, %v3325, 0
        %v3328 = vshrl.u32 %v3327, 5
        %v3329 = vand.u32 %v3327, 31
        %v3330 = vsub.s32 32, %v3329
        %v3331 = vshrl.u32 683565275, %v3330
        %v3332 = vshll.u32 683565275, %v3329
        %v3333 = vshrl.u32 2475754826, %v3330
        %v3334 = vor.u32 %v3332, %v3333
        %v3335 = vshll.u32 2475754826, %v3329
        %v3336 = vshrl.u32 2131351028, %v3330
        %v3337 = vor.u32 %v3335, %v3336
        %v3338 = vshll.u32 2131351028, %v3329
        %v3339 = vshrl.u32 2102212464, %v3330
        %v3340 = vor.u32 %v3338, %v3339
        %v3341 = vshll.u32 2102212464, %v3329
        %v3342 = vshrl.u32 920167782, %v3330
        %v3343 = vor.u32 %v3341, %v3342
        %v3344 = vshll.u32 920167782, %v3329
        %v3345 = vshrl.u32 1326507024, %v3330
        %v3346 = vor.u32 %v3344, %v3345
        %vm3347 = vcmp.lt.s32.totalorder %v3328, 1
        %vm3348 = vcmp.lt.s32.totalorder %v3328, 2
        %vm3349 = vcmp.lt.s32.totalorder %v3328, 3
        %vm3350 = vcmp.lt.s32.totalorder %v3328, 4
        %v3351 = vsel %vm3347, %v3331, %v3334
        %v3352 = vsel %vm3350, %v3340, 2102212464
        %v3353 = vsel %vm3349, %v3337, %v3352
        %v3354 = vsel %vm3348, %v3351, %v3353
        %v3355 = vsel %vm3347, %v3334, %v3337
        %v3356 = vsel %vm3350, %v3343, 920167782
        %v3357 = vsel %vm3349, %v3340, %v3356
        %v3358 = vsel %vm3348, %v3355, %v3357
        %v3359 = vsel %vm3347, %v3337, %v3340
        %v3360 = vsel %vm3350, %v3346, 1326507024
        %v3361 = vsel %vm3349, %v3343, %v3360
        %v3362 = vsel %vm3348, %v3359, %v3361
        %v3363 = vshll.u32 %v3323, 8
        %v3364 = vmul.u32.u64.compose %v3363, %v3362
        %v3365 = vextract.low.u32 %v3364
        %v3366 = vextract.high.u32 %v3364
        %v3367 = vmul.u32.u64.compose %v3363, %v3358
        %v3368 = vextract.low.u32 %v3367
        %v3369 = vextract.high.u32 %v3367
        %v3370 = vmul.u32 %v3363, %v3354
        %v3371 = vadd.s32 %v3366, %v3368
        %vm3372 = vc.u32 %v3366, %v3368
        %v3373 = vadd.s32 %v3369, 1
        %v3374 = vsel %vm3372, %v3373, %v3369
        %v3375 = vadd.s32 %v3370, %v3374
        %v3376 = vadd.s32 %v3375, 536870912
        %v3377 = vshrl.u32 %v3376, 30
        %v3378 = vshll.u32 %v3377, 30
        %v3379 = vsub.s32 %v3375, %v3378
        %vm3380 = vcmp.lt.s32.totalorder %v3379, 0
        %v3381 = vsub.s32 0, %v3379
        %v3382 = vsel %vm3380, %v3381, %v3379
        %v3383 = vclz %v3382
        %v3384 = vsub.s32 %v3383, 2
        %vm3385 = vcmp.gt.s32.totalorder 0, %v3384
        %v3386 = vsel %vm3385, 0, %v3384
        %v3387 = vsub.s32 32, %v3386
        %v3388 = vshll.u32 %v3379, %v3386
        %v3389 = vshrl.u32 %v3371, %v3387
        %v3390 = vor.u32 %v3388, %v3389
        %v3391 = vsub.s32 4294967266, %v3386
        %v3392 = vadd.s32 %v3391, 127
        %v3393 = vshll.u32 %v3392, 23
        %v3394 = vor.u32 4788187, %v3393
        %v3395 = vand.u32 2147483647, %v3394
        %v3397 = vcvt.s32.f32 %v3390
        %v3398 = vmul.f32 %v3397, %v3395
        %v3399 = vxor.u32 %v3398, 2147483648
        %v3400 = vsel %vm3317, %v3399, %v3398
        %v3401 = vsub.s32 4, %v3377
        %v3402 = vsel %vm3317, %v3401, %v3377
        %v3403 = vsel %vm3316, %v393, %v3400
        %v3404 = vsel %vm3316, 0, %v3402
        %v3405 = vcosq.f32.pop %v3403
        %v3406 = vsinq.f32.pop %v3403
        %vm3407 = vweird.f32 %v393
        %v3408 = vand.u32 %v3404, 3
        %vm3409 = vcmp.lt.s32.totalorder %v3408, 2
        %vm3410 = vcmp.eq.s32.totalorder %v3408, 0
        %v3411 = vxor.u32 %v3406, 2147483648
        %v3412 = vsel %vm3410, %v3405, %v3411
        %vm3413 = vcmp.eq.s32.totalorder %v3408, 2
        %v3414 = vxor.u32 %v3405, 2147483648
        %v3415 = vsel %vm3413, %v3414, %v3406
        %v3416 = vsel %vm3409, %v3412, %v3415
        %v3417 = vsel %vm3407, nan, %v3416
        %v3418 = vand.u32 2147483647, %v394
        %vm3419 = vcmp.le.f32.partialorder %v3418, 0.7853982
        %vm3420 = vcmp.lt.s32.totalorder %v394, 0
        %v3421 = vand.u32 %v394, 2139095040
        %v3422 = vshrl.u32 %v3421, 23
        %v3423 = vsub.s32 %v3422, 127
        %v3424 = vand.u32 2147483647, %v394
        %v3425 = vand.u32 %v3424, 8388607
        %v3426 = vor.u32 %v3425, 8388608
        %v3427 = vsub.s32 0, %v3426
        %v3428 = vadd.s32 %v3423, 1
        %vm3429 = vcmp.gt.s32.totalorder %v3428, 0
        %v3430 = vsel %vm3429, %v3428, 0
        %v3431 = vshrl.u32 %v3430, 5
        %v3432 = vand.u32 %v3430, 31
        %v3433 = vsub.s32 32, %v3432
        %v3434 = vshrl.u32 683565275, %v3433
        %v3435 = vshll.u32 683565275, %v3432
        %v3436 = vshrl.u32 2475754826, %v3433
        %v3437 = vor.u32 %v3435, %v3436
        %v3438 = vshll.u32 2475754826, %v3432
        %v3439 = vshrl.u32 2131351028, %v3433
        %v3440 = vor.u32 %v3438, %v3439
        %v3441 = vshll.u32 2131351028, %v3432
        %v3442 = vshrl.u32 2102212464, %v3433
        %v3443 = vor.u32 %v3441, %v3442
        %v3444 = vshll.u32 2102212464, %v3432
        %v3445 = vshrl.u32 920167782, %v3433
        %v3446 = vor.u32 %v3444, %v3445
        %v3447 = vshll.u32 920167782, %v3432
        %v3448 = vshrl.u32 1326507024, %v3433
        %v3449 = vor.u32 %v3447, %v3448
        %vm3450 = vcmp.lt.s32.totalorder %v3431, 1
        %vm3451 = vcmp.lt.s32.totalorder %v3431, 2
        %vm3452 = vcmp.lt.s32.totalorder %v3431, 3
        %vm3453 = vcmp.lt.s32.totalorder %v3431, 4
        %v3454 = vsel %vm3450, %v3434, %v3437
        %v3455 = vsel %vm3453, %v3443, 2102212464
        %v3456 = vsel %vm3452, %v3440, %v3455
        %v3457 = vsel %vm3451, %v3454, %v3456
        %v3458 = vsel %vm3450, %v3437, %v3440
        %v3459 = vsel %vm3453, %v3446, 920167782
        %v3460 = vsel %vm3452, %v3443, %v3459
        %v3461 = vsel %vm3451, %v3458, %v3460
        %v3462 = vsel %vm3450, %v3440, %v3443
        %v3463 = vsel %vm3453, %v3449, 1326507024
        %v3464 = vsel %vm3452, %v3446, %v3463
        %v3465 = vsel %vm3451, %v3462, %v3464
        %v3466 = vshll.u32 %v3426, 8
        %v3467 = vmul.u32.u64.compose %v3466, %v3465
        %v3468 = vextract.low.u32 %v3467
        %v3469 = vextract.high.u32 %v3467
        %v3470 = vmul.u32.u64.compose %v3466, %v3461
        %v3471 = vextract.low.u32 %v3470
        %v3472 = vextract.high.u32 %v3470
        %v3473 = vmul.u32 %v3466, %v3457
        %v3474 = vadd.s32 %v3469, %v3471
        %vm3475 = vc.u32 %v3469, %v3471
        %v3476 = vadd.s32 %v3472, 1
        %v3477 = vsel %vm3475, %v3476, %v3472
        %v3478 = vadd.s32 %v3473, %v3477
        %v3479 = vadd.s32 %v3478, 536870912
        %v3480 = vshrl.u32 %v3479, 30
        %v3481 = vshll.u32 %v3480, 30
        %v3482 = vsub.s32 %v3478, %v3481
        %vm3483 = vcmp.lt.s32.totalorder %v3482, 0
        %v3484 = vsub.s32 0, %v3482
        %v3485 = vsel %vm3483, %v3484, %v3482
        %v3486 = vclz %v3485
        %v3487 = vsub.s32 %v3486, 2
        %vm3488 = vcmp.gt.s32.totalorder 0, %v3487
        %v3489 = vsel %vm3488, 0, %v3487
        %v3490 = vsub.s32 32, %v3489
        %v3491 = vshll.u32 %v3482, %v3489
        %v3492 = vshrl.u32 %v3474, %v3490
        %v3493 = vor.u32 %v3491, %v3492
        %v3494 = vsub.s32 4294967266, %v3489
        %v3495 = vadd.s32 %v3494, 127
        %v3496 = vshll.u32 %v3495, 23
        %v3497 = vor.u32 4788187, %v3496
        %v3498 = vand.u32 2147483647, %v3497
        %v3500 = vcvt.s32.f32 %v3493
        %v3501 = vmul.f32 %v3500, %v3498
        %v3502 = vxor.u32 %v3501, 2147483648
        %v3503 = vsel %vm3420, %v3502, %v3501
        %v3504 = vsub.s32 4, %v3480
        %v3505 = vsel %vm3420, %v3504, %v3480
        %v3506 = vsel %vm3419, %v394, %v3503
        %v3507 = vsel %vm3419, 0, %v3505
        %v3508 = vcosq.f32.pop %v3506
        %v3509 = vsinq.f32.pop %v3506
        %vm3510 = vweird.f32 %v394
        %v3511 = vand.u32 %v3507, 3
        %vm3512 = vcmp.lt.s32.totalorder %v3511, 2
        %vm3513 = vcmp.eq.s32.totalorder %v3511, 0
        %v3514 = vxor.u32 %v3509, 2147483648
        %v3515 = vsel %vm3513, %v3508, %v3514
        %vm3516 = vcmp.eq.s32.totalorder %v3511, 2
        %v3517 = vxor.u32 %v3508, 2147483648
        %v3518 = vsel %vm3516, %v3517, %v3509
        %v3519 = vsel %vm3512, %v3515, %v3518
        %v3520 = vsel %vm3510, nan, %v3519
        %v3521 = vand.u32 2147483647, %v395
        %vm3522 = vcmp.le.f32.partialorder %v3521, 0.7853982
        %vm3523 = vcmp.lt.s32.totalorder %v395, 0
        %v3524 = vand.u32 %v395, 2139095040
        %v3525 = vshrl.u32 %v3524, 23
        %v3526 = vsub.s32 %v3525, 127
        %v3527 = vand.u32 2147483647, %v395
        %v3528 = vand.u32 %v3527, 8388607
        %v3529 = vor.u32 %v3528, 8388608
        %v3530 = vsub.s32 0, %v3529
        %v3531 = vadd.s32 %v3526, 1
        %vm3532 = vcmp.gt.s32.totalorder %v3531, 0
        %v3533 = vsel %vm3532, %v3531, 0
        %v3534 = vshrl.u32 %v3533, 5
        %v3535 = vand.u32 %v3533, 31
        %v3536 = vsub.s32 32, %v3535
        %v3537 = vshrl.u32 683565275, %v3536
        %v3538 = vshll.u32 683565275, %v3535
        %v3539 = vshrl.u32 2475754826, %v3536
        %v3540 = vor.u32 %v3538, %v3539
        %v3541 = vshll.u32 2475754826, %v3535
        %v3542 = vshrl.u32 2131351028, %v3536
        %v3543 = vor.u32 %v3541, %v3542
        %v3544 = vshll.u32 2131351028, %v3535
        %v3545 = vshrl.u32 2102212464, %v3536
        %v3546 = vor.u32 %v3544, %v3545
        %v3547 = vshll.u32 2102212464, %v3535
        %v3548 = vshrl.u32 920167782, %v3536
        %v3549 = vor.u32 %v3547, %v3548
        %v3550 = vshll.u32 920167782, %v3535
        %v3551 = vshrl.u32 1326507024, %v3536
        %v3552 = vor.u32 %v3550, %v3551
        %vm3553 = vcmp.lt.s32.totalorder %v3534, 1
        %vm3554 = vcmp.lt.s32.totalorder %v3534, 2
        %vm3555 = vcmp.lt.s32.totalorder %v3534, 3
        %vm3556 = vcmp.lt.s32.totalorder %v3534, 4
        %v3557 = vsel %vm3553, %v3537, %v3540
        %v3558 = vsel %vm3556, %v3546, 2102212464
        %v3559 = vsel %vm3555, %v3543, %v3558
        %v3560 = vsel %vm3554, %v3557, %v3559
        %v3561 = vsel %vm3553, %v3540, %v3543
        %v3562 = vsel %vm3556, %v3549, 920167782
        %v3563 = vsel %vm3555, %v3546, %v3562
        %v3564 = vsel %vm3554, %v3561, %v3563
        %v3565 = vsel %vm3553, %v3543, %v3546
        %v3566 = vsel %vm3556, %v3552, 1326507024
        %v3567 = vsel %vm3555, %v3549, %v3566
        %v3568 = vsel %vm3554, %v3565, %v3567
        %v3569 = vshll.u32 %v3529, 8
        %v3570 = vmul.u32.u64.compose %v3569, %v3568
        %v3571 = vextract.low.u32 %v3570
        %v3572 = vextract.high.u32 %v3570
        %v3573 = vmul.u32.u64.compose %v3569, %v3564
        %v3574 = vextract.low.u32 %v3573
        %v3575 = vextract.high.u32 %v3573
        %v3576 = vmul.u32 %v3569, %v3560
        %v3577 = vadd.s32 %v3572, %v3574
        %vm3578 = vc.u32 %v3572, %v3574
        %v3579 = vadd.s32 %v3575, 1
        %v3580 = vsel %vm3578, %v3579, %v3575
        %v3581 = vadd.s32 %v3576, %v3580
        %v3582 = vadd.s32 %v3581, 536870912
        %v3583 = vshrl.u32 %v3582, 30
        %v3584 = vshll.u32 %v3583, 30
        %v3585 = vsub.s32 %v3581, %v3584
        %vm3586 = vcmp.lt.s32.totalorder %v3585, 0
        %v3587 = vsub.s32 0, %v3585
        %v3588 = vsel %vm3586, %v3587, %v3585
        %v3589 = vclz %v3588
        %v3590 = vsub.s32 %v3589, 2
        %vm3591 = vcmp.gt.s32.totalorder 0, %v3590
        %v3592 = vsel %vm3591, 0, %v3590
        %v3593 = vsub.s32 32, %v3592
        %v3594 = vshll.u32 %v3585, %v3592
        %v3595 = vshrl.u32 %v3577, %v3593
        %v3596 = vor.u32 %v3594, %v3595
        %v3597 = vsub.s32 4294967266, %v3592
        %v3598 = vadd.s32 %v3597, 127
        %v3599 = vshll.u32 %v3598, 23
        %v3600 = vor.u32 4788187, %v3599
        %v3601 = vand.u32 2147483647, %v3600
        %v3603 = vcvt.s32.f32 %v3596
        %v3604 = vmul.f32 %v3603, %v3601
        %v3605 = vxor.u32 %v3604, 2147483648
        %v3606 = vsel %vm3523, %v3605, %v3604
        %v3607 = vsub.s32 4, %v3583
        %v3608 = vsel %vm3523, %v3607, %v3583
        %v3609 = vsel %vm3522, %v395, %v3606
        %v3610 = vsel %vm3522, 0, %v3608
        %v3611 = vcosq.f32.pop %v3609
        %v3612 = vsinq.f32.pop %v3609
        %vm3613 = vweird.f32 %v395
        %v3614 = vand.u32 %v3610, 3
        %vm3615 = vcmp.lt.s32.totalorder %v3614, 2
        %vm3616 = vcmp.eq.s32.totalorder %v3614, 0
        %v3617 = vxor.u32 %v3612, 2147483648
        %v3618 = vsel %vm3616, %v3611, %v3617
        %vm3619 = vcmp.eq.s32.totalorder %v3614, 2
        %v3620 = vxor.u32 %v3611, 2147483648
        %v3621 = vsel %vm3619, %v3620, %v3612
        %v3622 = vsel %vm3615, %v3618, %v3621
        %v3623 = vsel %vm3613, nan, %v3622
        %v3624 = vand.u32 2147483647, %v396
        %vm3625 = vcmp.le.f32.partialorder %v3624, 0.7853982
        %vm3626 = vcmp.lt.s32.totalorder %v396, 0
        %v3627 = vand.u32 %v396, 2139095040
        %v3628 = vshrl.u32 %v3627, 23
        %v3629 = vsub.s32 %v3628, 127
        %v3630 = vand.u32 2147483647, %v396
        %v3631 = vand.u32 %v3630, 8388607
        %v3632 = vor.u32 %v3631, 8388608
        %v3633 = vsub.s32 0, %v3632
        %v3634 = vadd.s32 %v3629, 1
        %vm3635 = vcmp.gt.s32.totalorder %v3634, 0
        %v3636 = vsel %vm3635, %v3634, 0
        %v3637 = vshrl.u32 %v3636, 5
        %v3638 = vand.u32 %v3636, 31
        %v3639 = vsub.s32 32, %v3638
        %v3640 = vshrl.u32 683565275, %v3639
        %v3641 = vshll.u32 683565275, %v3638
        %v3642 = vshrl.u32 2475754826, %v3639
        %v3643 = vor.u32 %v3641, %v3642
        %v3644 = vshll.u32 2475754826, %v3638
        %v3645 = vshrl.u32 2131351028, %v3639
        %v3646 = vor.u32 %v3644, %v3645
        %v3647 = vshll.u32 2131351028, %v3638
        %v3648 = vshrl.u32 2102212464, %v3639
        %v3649 = vor.u32 %v3647, %v3648
        %v3650 = vshll.u32 2102212464, %v3638
        %v3651 = vshrl.u32 920167782, %v3639
        %v3652 = vor.u32 %v3650, %v3651
        %v3653 = vshll.u32 920167782, %v3638
        %v3654 = vshrl.u32 1326507024, %v3639
        %v3655 = vor.u32 %v3653, %v3654
        %vm3656 = vcmp.lt.s32.totalorder %v3637, 1
        %vm3657 = vcmp.lt.s32.totalorder %v3637, 2
        %vm3658 = vcmp.lt.s32.totalorder %v3637, 3
        %vm3659 = vcmp.lt.s32.totalorder %v3637, 4
        %v3660 = vsel %vm3656, %v3640, %v3643
        %v3661 = vsel %vm3659, %v3649, 2102212464
        %v3662 = vsel %vm3658, %v3646, %v3661
        %v3663 = vsel %vm3657, %v3660, %v3662
        %v3664 = vsel %vm3656, %v3643, %v3646
        %v3665 = vsel %vm3659, %v3652, 920167782
        %v3666 = vsel %vm3658, %v3649, %v3665
        %v3667 = vsel %vm3657, %v3664, %v3666
        %v3668 = vsel %vm3656, %v3646, %v3649
        %v3669 = vsel %vm3659, %v3655, 1326507024
        %v3670 = vsel %vm3658, %v3652, %v3669
        %v3671 = vsel %vm3657, %v3668, %v3670
        %v3672 = vshll.u32 %v3632, 8
        %v3673 = vmul.u32.u64.compose %v3672, %v3671
        %v3674 = vextract.low.u32 %v3673
        %v3675 = vextract.high.u32 %v3673
        %v3676 = vmul.u32.u64.compose %v3672, %v3667
        %v3677 = vextract.low.u32 %v3676
        %v3678 = vextract.high.u32 %v3676
        %v3679 = vmul.u32 %v3672, %v3663
        %v3680 = vadd.s32 %v3675, %v3677
        %vm3681 = vc.u32 %v3675, %v3677
        %v3682 = vadd.s32 %v3678, 1
        %v3683 = vsel %vm3681, %v3682, %v3678
        %v3684 = vadd.s32 %v3679, %v3683
        %v3685 = vadd.s32 %v3684, 536870912
        %v3686 = vshrl.u32 %v3685, 30
        %v3687 = vshll.u32 %v3686, 30
        %v3688 = vsub.s32 %v3684, %v3687
        %vm3689 = vcmp.lt.s32.totalorder %v3688, 0
        %v3690 = vsub.s32 0, %v3688
        %v3691 = vsel %vm3689, %v3690, %v3688
        %v3692 = vclz %v3691
        %v3693 = vsub.s32 %v3692, 2
        %vm3694 = vcmp.gt.s32.totalorder 0, %v3693
        %v3695 = vsel %vm3694, 0, %v3693
        %v3696 = vsub.s32 32, %v3695
        %v3697 = vshll.u32 %v3688, %v3695
        %v3698 = vshrl.u32 %v3680, %v3696
        %v3699 = vor.u32 %v3697, %v3698
        %v3700 = vsub.s32 4294967266, %v3695
        %v3701 = vadd.s32 %v3700, 127
        %v3702 = vshll.u32 %v3701, 23
        %v3703 = vor.u32 4788187, %v3702
        %v3704 = vand.u32 2147483647, %v3703
        %v3706 = vcvt.s32.f32 %v3699
        %v3707 = vmul.f32 %v3706, %v3704
        %v3708 = vxor.u32 %v3707, 2147483648
        %v3709 = vsel %vm3626, %v3708, %v3707
        %v3710 = vsub.s32 4, %v3686
        %v3711 = vsel %vm3626, %v3710, %v3686
        %v3712 = vsel %vm3625, %v396, %v3709
        %v3713 = vsel %vm3625, 0, %v3711
        %v3714 = vcosq.f32.pop %v3712
        %v3715 = vsinq.f32.pop %v3712
        %vm3716 = vweird.f32 %v396
        %v3717 = vand.u32 %v3713, 3
        %vm3718 = vcmp.lt.s32.totalorder %v3717, 2
        %vm3719 = vcmp.eq.s32.totalorder %v3717, 0
        %v3720 = vxor.u32 %v3715, 2147483648
        %v3721 = vsel %vm3719, %v3714, %v3720
        %vm3722 = vcmp.eq.s32.totalorder %v3717, 2
        %v3723 = vxor.u32 %v3714, 2147483648
        %v3724 = vsel %vm3722, %v3723, %v3715
        %v3725 = vsel %vm3718, %v3721, %v3724
        %v3726 = vsel %vm3716, nan, %v3725
        %v3727 = vand.u32 2147483647, %v397
        %vm3728 = vcmp.le.f32.partialorder %v3727, 0.7853982
        %vm3729 = vcmp.lt.s32.totalorder %v397, 0
        %v3730 = vand.u32 %v397, 2139095040
        %v3731 = vshrl.u32 %v3730, 23
        %v3732 = vsub.s32 %v3731, 127
        %v3733 = vand.u32 2147483647, %v397
        %v3734 = vand.u32 %v3733, 8388607
        %v3735 = vor.u32 %v3734, 8388608
        %v3736 = vsub.s32 0, %v3735
        %v3737 = vadd.s32 %v3732, 1
        %vm3738 = vcmp.gt.s32.totalorder %v3737, 0
        %v3739 = vsel %vm3738, %v3737, 0
        %v3740 = vshrl.u32 %v3739, 5
        %v3741 = vand.u32 %v3739, 31
        %v3742 = vsub.s32 32, %v3741
        %v3743 = vshrl.u32 683565275, %v3742
        %v3744 = vshll.u32 683565275, %v3741
        %v3745 = vshrl.u32 2475754826, %v3742
        %v3746 = vor.u32 %v3744, %v3745
        %v3747 = vshll.u32 2475754826, %v3741
        %v3748 = vshrl.u32 2131351028, %v3742
        %v3749 = vor.u32 %v3747, %v3748
        %v3750 = vshll.u32 2131351028, %v3741
        %v3751 = vshrl.u32 2102212464, %v3742
        %v3752 = vor.u32 %v3750, %v3751
        %v3753 = vshll.u32 2102212464, %v3741
        %v3754 = vshrl.u32 920167782, %v3742
        %v3755 = vor.u32 %v3753, %v3754
        %v3756 = vshll.u32 920167782, %v3741
        %v3757 = vshrl.u32 1326507024, %v3742
        %v3758 = vor.u32 %v3756, %v3757
        %vm3759 = vcmp.lt.s32.totalorder %v3740, 1
        %vm3760 = vcmp.lt.s32.totalorder %v3740, 2
        %vm3761 = vcmp.lt.s32.totalorder %v3740, 3
        %vm3762 = vcmp.lt.s32.totalorder %v3740, 4
        %v3763 = vsel %vm3759, %v3743, %v3746
        %v3764 = vsel %vm3762, %v3752, 2102212464
        %v3765 = vsel %vm3761, %v3749, %v3764
        %v3766 = vsel %vm3760, %v3763, %v3765
        %v3767 = vsel %vm3759, %v3746, %v3749
        %v3768 = vsel %vm3762, %v3755, 920167782
        %v3769 = vsel %vm3761, %v3752, %v3768
        %v3770 = vsel %vm3760, %v3767, %v3769
        %v3771 = vsel %vm3759, %v3749, %v3752
        %v3772 = vsel %vm3762, %v3758, 1326507024
        %v3773 = vsel %vm3761, %v3755, %v3772
        %v3774 = vsel %vm3760, %v3771, %v3773
        %v3775 = vshll.u32 %v3735, 8
        %v3776 = vmul.u32.u64.compose %v3775, %v3774
        %v3777 = vextract.low.u32 %v3776
        %v3778 = vextract.high.u32 %v3776
        %v3779 = vmul.u32.u64.compose %v3775, %v3770
        %v3780 = vextract.low.u32 %v3779
        %v3781 = vextract.high.u32 %v3779
        %v3782 = vmul.u32 %v3775, %v3766
        %v3783 = vadd.s32 %v3778, %v3780
        %vm3784 = vc.u32 %v3778, %v3780
        %v3785 = vadd.s32 %v3781, 1
        %v3786 = vsel %vm3784, %v3785, %v3781
        %v3787 = vadd.s32 %v3782, %v3786
        %v3788 = vadd.s32 %v3787, 536870912
        %v3789 = vshrl.u32 %v3788, 30
        %v3790 = vshll.u32 %v3789, 30
        %v3791 = vsub.s32 %v3787, %v3790
        %vm3792 = vcmp.lt.s32.totalorder %v3791, 0
        %v3793 = vsub.s32 0, %v3791
        %v3794 = vsel %vm3792, %v3793, %v3791
        %v3795 = vclz %v3794
        %v3796 = vsub.s32 %v3795, 2
        %vm3797 = vcmp.gt.s32.totalorder 0, %v3796
        %v3798 = vsel %vm3797, 0, %v3796
        %v3799 = vsub.s32 32, %v3798
        %v3800 = vshll.u32 %v3791, %v3798
        %v3801 = vshrl.u32 %v3783, %v3799
        %v3802 = vor.u32 %v3800, %v3801
        %v3803 = vsub.s32 4294967266, %v3798
        %v3804 = vadd.s32 %v3803, 127
        %v3805 = vshll.u32 %v3804, 23
        %v3806 = vor.u32 4788187, %v3805
        %v3807 = vand.u32 2147483647, %v3806
        %v3809 = vcvt.s32.f32 %v3802
        %v3810 = vmul.f32 %v3809, %v3807
        %v3811 = vxor.u32 %v3810, 2147483648
        %v3812 = vsel %vm3729, %v3811, %v3810
        %v3813 = vsub.s32 4, %v3789
        %v3814 = vsel %vm3729, %v3813, %v3789
        %v3815 = vsel %vm3728, %v397, %v3812
        %v3816 = vsel %vm3728, 0, %v3814
        %v3817 = vcosq.f32.pop %v3815
        %v3818 = vsinq.f32.pop %v3815
        %vm3819 = vweird.f32 %v397
        %v3820 = vand.u32 %v3816, 3
        %vm3821 = vcmp.lt.s32.totalorder %v3820, 2
        %vm3822 = vcmp.eq.s32.totalorder %v3820, 0
        %v3823 = vxor.u32 %v3818, 2147483648
        %v3824 = vsel %vm3822, %v3817, %v3823
        %vm3825 = vcmp.eq.s32.totalorder %v3820, 2
        %v3826 = vxor.u32 %v3817, 2147483648
        %v3827 = vsel %vm3825, %v3826, %v3818
        %v3828 = vsel %vm3821, %v3824, %v3827
        %v3829 = vsel %vm3819, nan, %v3828
        %v3830 = vand.u32 2147483647, %v398
        %vm3831 = vcmp.le.f32.partialorder %v3830, 0.7853982
        %vm3832 = vcmp.lt.s32.totalorder %v398, 0
        %v3833 = vand.u32 %v398, 2139095040
        %v3834 = vshrl.u32 %v3833, 23
        %v3835 = vsub.s32 %v3834, 127
        %v3836 = vand.u32 2147483647, %v398
        %v3837 = vand.u32 %v3836, 8388607
        %v3838 = vor.u32 %v3837, 8388608
        %v3839 = vsub.s32 0, %v3838
        %v3840 = vadd.s32 %v3835, 1
        %vm3841 = vcmp.gt.s32.totalorder %v3840, 0
        %v3842 = vsel %vm3841, %v3840, 0
        %v3843 = vshrl.u32 %v3842, 5
        %v3844 = vand.u32 %v3842, 31
        %v3845 = vsub.s32 32, %v3844
        %v3846 = vshrl.u32 683565275, %v3845
        %v3847 = vshll.u32 683565275, %v3844
        %v3848 = vshrl.u32 2475754826, %v3845
        %v3849 = vor.u32 %v3847, %v3848
        %v3850 = vshll.u32 2475754826, %v3844
        %v3851 = vshrl.u32 2131351028, %v3845
        %v3852 = vor.u32 %v3850, %v3851
        %v3853 = vshll.u32 2131351028, %v3844
        %v3854 = vshrl.u32 2102212464, %v3845
        %v3855 = vor.u32 %v3853, %v3854
        %v3856 = vshll.u32 2102212464, %v3844
        %v3857 = vshrl.u32 920167782, %v3845
        %v3858 = vor.u32 %v3856, %v3857
        %v3859 = vshll.u32 920167782, %v3844
        %v3860 = vshrl.u32 1326507024, %v3845
        %v3861 = vor.u32 %v3859, %v3860
        %vm3862 = vcmp.lt.s32.totalorder %v3843, 1
        %vm3863 = vcmp.lt.s32.totalorder %v3843, 2
        %vm3864 = vcmp.lt.s32.totalorder %v3843, 3
        %vm3865 = vcmp.lt.s32.totalorder %v3843, 4
        %v3866 = vsel %vm3862, %v3846, %v3849
        %v3867 = vsel %vm3865, %v3855, 2102212464
        %v3868 = vsel %vm3864, %v3852, %v3867
        %v3869 = vsel %vm3863, %v3866, %v3868
        %v3870 = vsel %vm3862, %v3849, %v3852
        %v3871 = vsel %vm3865, %v3858, 920167782
        %v3872 = vsel %vm3864, %v3855, %v3871
        %v3873 = vsel %vm3863, %v3870, %v3872
        %v3874 = vsel %vm3862, %v3852, %v3855
        %v3875 = vsel %vm3865, %v3861, 1326507024
        %v3876 = vsel %vm3864, %v3858, %v3875
        %v3877 = vsel %vm3863, %v3874, %v3876
        %v3878 = vshll.u32 %v3838, 8
        %v3879 = vmul.u32.u64.compose %v3878, %v3877
        %v3880 = vextract.low.u32 %v3879
        %v3881 = vextract.high.u32 %v3879
        %v3882 = vmul.u32.u64.compose %v3878, %v3873
        %v3883 = vextract.low.u32 %v3882
        %v3884 = vextract.high.u32 %v3882
        %v3885 = vmul.u32 %v3878, %v3869
        %v3886 = vadd.s32 %v3881, %v3883
        %vm3887 = vc.u32 %v3881, %v3883
        %v3888 = vadd.s32 %v3884, 1
        %v3889 = vsel %vm3887, %v3888, %v3884
        %v3890 = vadd.s32 %v3885, %v3889
        %v3891 = vadd.s32 %v3890, 536870912
        %v3892 = vshrl.u32 %v3891, 30
        %v3893 = vshll.u32 %v3892, 30
        %v3894 = vsub.s32 %v3890, %v3893
        %vm3895 = vcmp.lt.s32.totalorder %v3894, 0
        %v3896 = vsub.s32 0, %v3894
        %v3897 = vsel %vm3895, %v3896, %v3894
        %v3898 = vclz %v3897
        %v3899 = vsub.s32 %v3898, 2
        %vm3900 = vcmp.gt.s32.totalorder 0, %v3899
        %v3901 = vsel %vm3900, 0, %v3899
        %v3902 = vsub.s32 32, %v3901
        %v3903 = vshll.u32 %v3894, %v3901
        %v3904 = vshrl.u32 %v3886, %v3902
        %v3905 = vor.u32 %v3903, %v3904
        %v3906 = vsub.s32 4294967266, %v3901
        %v3907 = vadd.s32 %v3906, 127
        %v3908 = vshll.u32 %v3907, 23
        %v3909 = vor.u32 4788187, %v3908
        %v3910 = vand.u32 2147483647, %v3909
        %v3912 = vcvt.s32.f32 %v3905
        %v3913 = vmul.f32 %v3912, %v3910
        %v3914 = vxor.u32 %v3913, 2147483648
        %v3915 = vsel %vm3832, %v3914, %v3913
        %v3916 = vsub.s32 4, %v3892
        %v3917 = vsel %vm3832, %v3916, %v3892
        %v3918 = vsel %vm3831, %v398, %v3915
        %v3919 = vsel %vm3831, 0, %v3917
        %v3920 = vcosq.f32.pop %v3918
        %v3921 = vsinq.f32.pop %v3918
        %vm3922 = vweird.f32 %v398
        %v3923 = vand.u32 %v3919, 3
        %vm3924 = vcmp.lt.s32.totalorder %v3923, 2
        %vm3925 = vcmp.eq.s32.totalorder %v3923, 0
        %v3926 = vxor.u32 %v3921, 2147483648
        %v3927 = vsel %vm3925, %v3920, %v3926
        %vm3928 = vcmp.eq.s32.totalorder %v3923, 2
        %v3929 = vxor.u32 %v3920, 2147483648
        %v3930 = vsel %vm3928, %v3929, %v3921
        %v3931 = vsel %vm3924, %v3927, %v3930
        %v3932 = vsel %vm3922, nan, %v3931
        %v3933 = vand.u32 2147483647, %v399
        %vm3934 = vcmp.le.f32.partialorder %v3933, 0.7853982
        %vm3935 = vcmp.lt.s32.totalorder %v399, 0
        %v3936 = vand.u32 %v399, 2139095040
        %v3937 = vshrl.u32 %v3936, 23
        %v3938 = vsub.s32 %v3937, 127
        %v3939 = vand.u32 2147483647, %v399
        %v3940 = vand.u32 %v3939, 8388607
        %v3941 = vor.u32 %v3940, 8388608
        %v3942 = vsub.s32 0, %v3941
        %v3943 = vadd.s32 %v3938, 1
        %vm3944 = vcmp.gt.s32.totalorder %v3943, 0
        %v3945 = vsel %vm3944, %v3943, 0
        %v3946 = vshrl.u32 %v3945, 5
        %v3947 = vand.u32 %v3945, 31
        %v3948 = vsub.s32 32, %v3947
        %v3949 = vshrl.u32 683565275, %v3948
        %v3950 = vshll.u32 683565275, %v3947
        %v3951 = vshrl.u32 2475754826, %v3948
        %v3952 = vor.u32 %v3950, %v3951
        %v3953 = vshll.u32 2475754826, %v3947
        %v3954 = vshrl.u32 2131351028, %v3948
        %v3955 = vor.u32 %v3953, %v3954
        %v3956 = vshll.u32 2131351028, %v3947
        %v3957 = vshrl.u32 2102212464, %v3948
        %v3958 = vor.u32 %v3956, %v3957
        %v3959 = vshll.u32 2102212464, %v3947
        %v3960 = vshrl.u32 920167782, %v3948
        %v3961 = vor.u32 %v3959, %v3960
        %v3962 = vshll.u32 920167782, %v3947
        %v3963 = vshrl.u32 1326507024, %v3948
        %v3964 = vor.u32 %v3962, %v3963
        %vm3965 = vcmp.lt.s32.totalorder %v3946, 1
        %vm3966 = vcmp.lt.s32.totalorder %v3946, 2
        %vm3967 = vcmp.lt.s32.totalorder %v3946, 3
        %vm3968 = vcmp.lt.s32.totalorder %v3946, 4
        %v3969 = vsel %vm3965, %v3949, %v3952
        %v3970 = vsel %vm3968, %v3958, 2102212464
        %v3971 = vsel %vm3967, %v3955, %v3970
        %v3972 = vsel %vm3966, %v3969, %v3971
        %v3973 = vsel %vm3965, %v3952, %v3955
        %v3974 = vsel %vm3968, %v3961, 920167782
        %v3975 = vsel %vm3967, %v3958, %v3974
        %v3976 = vsel %vm3966, %v3973, %v3975
        %v3977 = vsel %vm3965, %v3955, %v3958
        %v3978 = vsel %vm3968, %v3964, 1326507024
        %v3979 = vsel %vm3967, %v3961, %v3978
        %v3980 = vsel %vm3966, %v3977, %v3979
        %v3981 = vshll.u32 %v3941, 8
        %v3982 = vmul.u32.u64.compose %v3981, %v3980
        %v3983 = vextract.low.u32 %v3982
        %v3984 = vextract.high.u32 %v3982
        %v3985 = vmul.u32.u64.compose %v3981, %v3976
        %v3986 = vextract.low.u32 %v3985
        %v3987 = vextract.high.u32 %v3985
        %v3988 = vmul.u32 %v3981, %v3972
        %v3989 = vadd.s32 %v3984, %v3986
        %vm3990 = vc.u32 %v3984, %v3986
        %v3991 = vadd.s32 %v3987, 1
        %v3992 = vsel %vm3990, %v3991, %v3987
        %v3993 = vadd.s32 %v3988, %v3992
        %v3994 = vadd.s32 %v3993, 536870912
        %v3995 = vshrl.u32 %v3994, 30
        %v3996 = vshll.u32 %v3995, 30
        %v3997 = vsub.s32 %v3993, %v3996
        %vm3998 = vcmp.lt.s32.totalorder %v3997, 0
        %v3999 = vsub.s32 0, %v3997
        %v4000 = vsel %vm3998, %v3999, %v3997
        %v4001 = vclz %v4000
        %v4002 = vsub.s32 %v4001, 2
        %vm4003 = vcmp.gt.s32.totalorder 0, %v4002
        %v4004 = vsel %vm4003, 0, %v4002
        %v4005 = vsub.s32 32, %v4004
        %v4006 = vshll.u32 %v3997, %v4004
        %v4007 = vshrl.u32 %v3989, %v4005
        %v4008 = vor.u32 %v4006, %v4007
        %v4009 = vsub.s32 4294967266, %v4004
        %v4010 = vadd.s32 %v4009, 127
        %v4011 = vshll.u32 %v4010, 23
        %v4012 = vor.u32 4788187, %v4011
        %v4013 = vand.u32 2147483647, %v4012
        %v4015 = vcvt.s32.f32 %v4008
        %v4016 = vmul.f32 %v4015, %v4013
        %v4017 = vxor.u32 %v4016, 2147483648
        %v4018 = vsel %vm3935, %v4017, %v4016
        %v4019 = vsub.s32 4, %v3995
        %v4020 = vsel %vm3935, %v4019, %v3995
        %v4021 = vsel %vm3934, %v399, %v4018
        %v4022 = vsel %vm3934, 0, %v4020
        %v4023 = vcosq.f32.pop %v4021
        %v4024 = vsinq.f32.pop %v4021
        %vm4025 = vweird.f32 %v399
        %v4026 = vand.u32 %v4022, 3
        %vm4027 = vcmp.lt.s32.totalorder %v4026, 2
        %vm4028 = vcmp.eq.s32.totalorder %v4026, 0
        %v4029 = vxor.u32 %v4024, 2147483648
        %v4030 = vsel %vm4028, %v4023, %v4029
        %vm4031 = vcmp.eq.s32.totalorder %v4026, 2
        %v4032 = vxor.u32 %v4023, 2147483648
        %v4033 = vsel %vm4031, %v4032, %v4024
        %v4034 = vsel %vm4027, %v4030, %v4033
        %v4035 = vsel %vm4025, nan, %v4034
        %v4036 = vand.u32 2147483647, %v400
        %vm4037 = vcmp.le.f32.partialorder %v4036, 0.7853982
        %vm4038 = vcmp.lt.s32.totalorder %v400, 0
        %v4039 = vand.u32 %v400, 2139095040
        %v4040 = vshrl.u32 %v4039, 23
        %v4041 = vsub.s32 %v4040, 127
        %v4042 = vand.u32 2147483647, %v400
        %v4043 = vand.u32 %v4042, 8388607
        %v4044 = vor.u32 %v4043, 8388608
        %v4045 = vsub.s32 0, %v4044
        %v4046 = vadd.s32 %v4041, 1
        %vm4047 = vcmp.gt.s32.totalorder %v4046, 0
        %v4048 = vsel %vm4047, %v4046, 0
        %v4049 = vshrl.u32 %v4048, 5
        %v4050 = vand.u32 %v4048, 31
        %v4051 = vsub.s32 32, %v4050
        %v4052 = vshrl.u32 683565275, %v4051
        %v4053 = vshll.u32 683565275, %v4050
        %v4054 = vshrl.u32 2475754826, %v4051
        %v4055 = vor.u32 %v4053, %v4054
        %v4056 = vshll.u32 2475754826, %v4050
        %v4057 = vshrl.u32 2131351028, %v4051
        %v4058 = vor.u32 %v4056, %v4057
        %v4059 = vshll.u32 2131351028, %v4050
        %v4060 = vshrl.u32 2102212464, %v4051
        %v4061 = vor.u32 %v4059, %v4060
        %v4062 = vshll.u32 2102212464, %v4050
        %v4063 = vshrl.u32 920167782, %v4051
        %v4064 = vor.u32 %v4062, %v4063
        %v4065 = vshll.u32 920167782, %v4050
        %v4066 = vshrl.u32 1326507024, %v4051
        %v4067 = vor.u32 %v4065, %v4066
        %vm4068 = vcmp.lt.s32.totalorder %v4049, 1
        %vm4069 = vcmp.lt.s32.totalorder %v4049, 2
        %vm4070 = vcmp.lt.s32.totalorder %v4049, 3
        %vm4071 = vcmp.lt.s32.totalorder %v4049, 4
        %v4072 = vsel %vm4068, %v4052, %v4055
        %v4073 = vsel %vm4071, %v4061, 2102212464
        %v4074 = vsel %vm4070, %v4058, %v4073
        %v4075 = vsel %vm4069, %v4072, %v4074
        %v4076 = vsel %vm4068, %v4055, %v4058
        %v4077 = vsel %vm4071, %v4064, 920167782
        %v4078 = vsel %vm4070, %v4061, %v4077
        %v4079 = vsel %vm4069, %v4076, %v4078
        %v4080 = vsel %vm4068, %v4058, %v4061
        %v4081 = vsel %vm4071, %v4067, 1326507024
        %v4082 = vsel %vm4070, %v4064, %v4081
        %v4083 = vsel %vm4069, %v4080, %v4082
        %v4084 = vshll.u32 %v4044, 8
        %v4085 = vmul.u32.u64.compose %v4084, %v4083
        %v4086 = vextract.low.u32 %v4085
        %v4087 = vextract.high.u32 %v4085
        %v4088 = vmul.u32.u64.compose %v4084, %v4079
        %v4089 = vextract.low.u32 %v4088
        %v4090 = vextract.high.u32 %v4088
        %v4091 = vmul.u32 %v4084, %v4075
        %v4092 = vadd.s32 %v4087, %v4089
        %vm4093 = vc.u32 %v4087, %v4089
        %v4094 = vadd.s32 %v4090, 1
        %v4095 = vsel %vm4093, %v4094, %v4090
        %v4096 = vadd.s32 %v4091, %v4095
        %v4097 = vadd.s32 %v4096, 536870912
        %v4098 = vshrl.u32 %v4097, 30
        %v4099 = vshll.u32 %v4098, 30
        %v4100 = vsub.s32 %v4096, %v4099
        %vm4101 = vcmp.lt.s32.totalorder %v4100, 0
        %v4102 = vsub.s32 0, %v4100
        %v4103 = vsel %vm4101, %v4102, %v4100
        %v4104 = vclz %v4103
        %v4105 = vsub.s32 %v4104, 2
        %vm4106 = vcmp.gt.s32.totalorder 0, %v4105
        %v4107 = vsel %vm4106, 0, %v4105
        %v4108 = vsub.s32 32, %v4107
        %v4109 = vshll.u32 %v4100, %v4107
        %v4110 = vshrl.u32 %v4092, %v4108
        %v4111 = vor.u32 %v4109, %v4110
        %v4112 = vsub.s32 4294967266, %v4107
        %v4113 = vadd.s32 %v4112, 127
        %v4114 = vshll.u32 %v4113, 23
        %v4115 = vor.u32 4788187, %v4114
        %v4116 = vand.u32 2147483647, %v4115
        %v4118 = vcvt.s32.f32 %v4111
        %v4119 = vmul.f32 %v4118, %v4116
        %v4120 = vxor.u32 %v4119, 2147483648
        %v4121 = vsel %vm4038, %v4120, %v4119
        %v4122 = vsub.s32 4, %v4098
        %v4123 = vsel %vm4038, %v4122, %v4098
        %v4124 = vsel %vm4037, %v400, %v4121
        %v4125 = vsel %vm4037, 0, %v4123
        %v4126 = vcosq.f32.pop %v4124
        %v4127 = vsinq.f32.pop %v4124
        %vm4128 = vweird.f32 %v400
        %v4129 = vand.u32 %v4125, 3
        %vm4130 = vcmp.lt.s32.totalorder %v4129, 2
        %vm4131 = vcmp.eq.s32.totalorder %v4129, 0
        %v4132 = vxor.u32 %v4127, 2147483648
        %v4133 = vsel %vm4131, %v4126, %v4132
        %vm4134 = vcmp.eq.s32.totalorder %v4129, 2
        %v4135 = vxor.u32 %v4126, 2147483648
        %v4136 = vsel %vm4134, %v4135, %v4127
        %v4137 = vsel %vm4130, %v4133, %v4136
        %v4138 = vsel %vm4128, nan, %v4137
        %v4139 = vand.u32 2147483647, %v401
        %vm4140 = vcmp.le.f32.partialorder %v4139, 0.7853982
        %vm4141 = vcmp.lt.s32.totalorder %v401, 0
        %v4142 = vand.u32 %v401, 2139095040
        %v4143 = vshrl.u32 %v4142, 23
        %v4144 = vsub.s32 %v4143, 127
        %v4145 = vand.u32 2147483647, %v401
        %v4146 = vand.u32 %v4145, 8388607
        %v4147 = vor.u32 %v4146, 8388608
        %v4148 = vsub.s32 0, %v4147
        %v4149 = vadd.s32 %v4144, 1
        %vm4150 = vcmp.gt.s32.totalorder %v4149, 0
        %v4151 = vsel %vm4150, %v4149, 0
        %v4152 = vshrl.u32 %v4151, 5
        %v4153 = vand.u32 %v4151, 31
        %v4154 = vsub.s32 32, %v4153
        %v4155 = vshrl.u32 683565275, %v4154
        %v4156 = vshll.u32 683565275, %v4153
        %v4157 = vshrl.u32 2475754826, %v4154
        %v4158 = vor.u32 %v4156, %v4157
        %v4159 = vshll.u32 2475754826, %v4153
        %v4160 = vshrl.u32 2131351028, %v4154
        %v4161 = vor.u32 %v4159, %v4160
        %v4162 = vshll.u32 2131351028, %v4153
        %v4163 = vshrl.u32 2102212464, %v4154
        %v4164 = vor.u32 %v4162, %v4163
        %v4165 = vshll.u32 2102212464, %v4153
        %v4166 = vshrl.u32 920167782, %v4154
        %v4167 = vor.u32 %v4165, %v4166
        %v4168 = vshll.u32 920167782, %v4153
        %v4169 = vshrl.u32 1326507024, %v4154
        %v4170 = vor.u32 %v4168, %v4169
        %vm4171 = vcmp.lt.s32.totalorder %v4152, 1
        %vm4172 = vcmp.lt.s32.totalorder %v4152, 2
        %vm4173 = vcmp.lt.s32.totalorder %v4152, 3
        %vm4174 = vcmp.lt.s32.totalorder %v4152, 4
        %v4175 = vsel %vm4171, %v4155, %v4158
        %v4176 = vsel %vm4174, %v4164, 2102212464
        %v4177 = vsel %vm4173, %v4161, %v4176
        %v4178 = vsel %vm4172, %v4175, %v4177
        %v4179 = vsel %vm4171, %v4158, %v4161
        %v4180 = vsel %vm4174, %v4167, 920167782
        %v4181 = vsel %vm4173, %v4164, %v4180
        %v4182 = vsel %vm4172, %v4179, %v4181
        %v4183 = vsel %vm4171, %v4161, %v4164
        %v4184 = vsel %vm4174, %v4170, 1326507024
        %v4185 = vsel %vm4173, %v4167, %v4184
        %v4186 = vsel %vm4172, %v4183, %v4185
        %v4187 = vshll.u32 %v4147, 8
        %v4188 = vmul.u32.u64.compose %v4187, %v4186
        %v4189 = vextract.low.u32 %v4188
        %v4190 = vextract.high.u32 %v4188
        %v4191 = vmul.u32.u64.compose %v4187, %v4182
        %v4192 = vextract.low.u32 %v4191
        %v4193 = vextract.high.u32 %v4191
        %v4194 = vmul.u32 %v4187, %v4178
        %v4195 = vadd.s32 %v4190, %v4192
        %vm4196 = vc.u32 %v4190, %v4192
        %v4197 = vadd.s32 %v4193, 1
        %v4198 = vsel %vm4196, %v4197, %v4193
        %v4199 = vadd.s32 %v4194, %v4198
        %v4200 = vadd.s32 %v4199, 536870912
        %v4201 = vshrl.u32 %v4200, 30
        %v4202 = vshll.u32 %v4201, 30
        %v4203 = vsub.s32 %v4199, %v4202
        %vm4204 = vcmp.lt.s32.totalorder %v4203, 0
        %v4205 = vsub.s32 0, %v4203
        %v4206 = vsel %vm4204, %v4205, %v4203
        %v4207 = vclz %v4206
        %v4208 = vsub.s32 %v4207, 2
        %vm4209 = vcmp.gt.s32.totalorder 0, %v4208
        %v4210 = vsel %vm4209, 0, %v4208
        %v4211 = vsub.s32 32, %v4210
        %v4212 = vshll.u32 %v4203, %v4210
        %v4213 = vshrl.u32 %v4195, %v4211
        %v4214 = vor.u32 %v4212, %v4213
        %v4215 = vsub.s32 4294967266, %v4210
        %v4216 = vadd.s32 %v4215, 127
        %v4217 = vshll.u32 %v4216, 23
        %v4218 = vor.u32 4788187, %v4217
        %v4219 = vand.u32 2147483647, %v4218
        %v4221 = vcvt.s32.f32 %v4214
        %v4222 = vmul.f32 %v4221, %v4219
        %v4223 = vxor.u32 %v4222, 2147483648
        %v4224 = vsel %vm4141, %v4223, %v4222
        %v4225 = vsub.s32 4, %v4201
        %v4226 = vsel %vm4141, %v4225, %v4201
        %v4227 = vsel %vm4140, %v401, %v4224
        %v4228 = vsel %vm4140, 0, %v4226
        %v4229 = vcosq.f32.pop %v4227
        %v4230 = vsinq.f32.pop %v4227
        %vm4231 = vweird.f32 %v401
        %v4232 = vand.u32 %v4228, 3
        %vm4233 = vcmp.lt.s32.totalorder %v4232, 2
        %vm4234 = vcmp.eq.s32.totalorder %v4232, 0
        %v4235 = vxor.u32 %v4230, 2147483648
        %v4236 = vsel %vm4234, %v4229, %v4235
        %vm4237 = vcmp.eq.s32.totalorder %v4232, 2
        %v4238 = vxor.u32 %v4229, 2147483648
        %v4239 = vsel %vm4237, %v4238, %v4230
        %v4240 = vsel %vm4233, %v4236, %v4239
        %v4241 = vsel %vm4231, nan, %v4240
        %v4242 = vand.u32 2147483647, %v402
        %vm4243 = vcmp.le.f32.partialorder %v4242, 0.7853982
        %vm4244 = vcmp.lt.s32.totalorder %v402, 0
        %v4245 = vand.u32 %v402, 2139095040
        %v4246 = vshrl.u32 %v4245, 23
        %v4247 = vsub.s32 %v4246, 127
        %v4248 = vand.u32 2147483647, %v402
        %v4249 = vand.u32 %v4248, 8388607
        %v4250 = vor.u32 %v4249, 8388608
        %v4251 = vsub.s32 0, %v4250
        %v4252 = vadd.s32 %v4247, 1
        %vm4253 = vcmp.gt.s32.totalorder %v4252, 0
        %v4254 = vsel %vm4253, %v4252, 0
        %v4255 = vshrl.u32 %v4254, 5
        %v4256 = vand.u32 %v4254, 31
        %v4257 = vsub.s32 32, %v4256
        %v4258 = vshrl.u32 683565275, %v4257
        %v4259 = vshll.u32 683565275, %v4256
        %v4260 = vshrl.u32 2475754826, %v4257
        %v4261 = vor.u32 %v4259, %v4260
        %v4262 = vshll.u32 2475754826, %v4256
        %v4263 = vshrl.u32 2131351028, %v4257
        %v4264 = vor.u32 %v4262, %v4263
        %v4265 = vshll.u32 2131351028, %v4256
        %v4266 = vshrl.u32 2102212464, %v4257
        %v4267 = vor.u32 %v4265, %v4266
        %v4268 = vshll.u32 2102212464, %v4256
        %v4269 = vshrl.u32 920167782, %v4257
        %v4270 = vor.u32 %v4268, %v4269
        %v4271 = vshll.u32 920167782, %v4256
        %v4272 = vshrl.u32 1326507024, %v4257
        %v4273 = vor.u32 %v4271, %v4272
        %vm4274 = vcmp.lt.s32.totalorder %v4255, 1
        %vm4275 = vcmp.lt.s32.totalorder %v4255, 2
        %vm4276 = vcmp.lt.s32.totalorder %v4255, 3
        %vm4277 = vcmp.lt.s32.totalorder %v4255, 4
        %v4278 = vsel %vm4274, %v4258, %v4261
        %v4279 = vsel %vm4277, %v4267, 2102212464
        %v4280 = vsel %vm4276, %v4264, %v4279
        %v4281 = vsel %vm4275, %v4278, %v4280
        %v4282 = vsel %vm4274, %v4261, %v4264
        %v4283 = vsel %vm4277, %v4270, 920167782
        %v4284 = vsel %vm4276, %v4267, %v4283
        %v4285 = vsel %vm4275, %v4282, %v4284
        %v4286 = vsel %vm4274, %v4264, %v4267
        %v4287 = vsel %vm4277, %v4273, 1326507024
        %v4288 = vsel %vm4276, %v4270, %v4287
        %v4289 = vsel %vm4275, %v4286, %v4288
        %v4290 = vshll.u32 %v4250, 8
        %v4291 = vmul.u32.u64.compose %v4290, %v4289
        %v4292 = vextract.low.u32 %v4291
        %v4293 = vextract.high.u32 %v4291
        %v4294 = vmul.u32.u64.compose %v4290, %v4285
        %v4295 = vextract.low.u32 %v4294
        %v4296 = vextract.high.u32 %v4294
        %v4297 = vmul.u32 %v4290, %v4281
        %v4298 = vadd.s32 %v4293, %v4295
        %vm4299 = vc.u32 %v4293, %v4295
        %v4300 = vadd.s32 %v4296, 1
        %v4301 = vsel %vm4299, %v4300, %v4296
        %v4302 = vadd.s32 %v4297, %v4301
        %v4303 = vadd.s32 %v4302, 536870912
        %v4304 = vshrl.u32 %v4303, 30
        %v4305 = vshll.u32 %v4304, 30
        %v4306 = vsub.s32 %v4302, %v4305
        %vm4307 = vcmp.lt.s32.totalorder %v4306, 0
        %v4308 = vsub.s32 0, %v4306
        %v4309 = vsel %vm4307, %v4308, %v4306
        %v4310 = vclz %v4309
        %v4311 = vsub.s32 %v4310, 2
        %vm4312 = vcmp.gt.s32.totalorder 0, %v4311
        %v4313 = vsel %vm4312, 0, %v4311
        %v4314 = vsub.s32 32, %v4313
        %v4315 = vshll.u32 %v4306, %v4313
        %v4316 = vshrl.u32 %v4298, %v4314
        %v4317 = vor.u32 %v4315, %v4316
        %v4318 = vsub.s32 4294967266, %v4313
        %v4319 = vadd.s32 %v4318, 127
        %v4320 = vshll.u32 %v4319, 23
        %v4321 = vor.u32 4788187, %v4320
        %v4322 = vand.u32 2147483647, %v4321
        %v4324 = vcvt.s32.f32 %v4317
        %v4325 = vmul.f32 %v4324, %v4322
        %v4326 = vxor.u32 %v4325, 2147483648
        %v4327 = vsel %vm4244, %v4326, %v4325
        %v4328 = vsub.s32 4, %v4304
        %v4329 = vsel %vm4244, %v4328, %v4304
        %v4330 = vsel %vm4243, %v402, %v4327
        %v4331 = vsel %vm4243, 0, %v4329
        %v4332 = vcosq.f32.pop %v4330
        %v4333 = vsinq.f32.pop %v4330
        %vm4334 = vweird.f32 %v402
        %v4335 = vand.u32 %v4331, 3
        %vm4336 = vcmp.lt.s32.totalorder %v4335, 2
        %vm4337 = vcmp.eq.s32.totalorder %v4335, 0
        %v4338 = vxor.u32 %v4333, 2147483648
        %v4339 = vsel %vm4337, %v4332, %v4338
        %vm4340 = vcmp.eq.s32.totalorder %v4335, 2
        %v4341 = vxor.u32 %v4332, 2147483648
        %v4342 = vsel %vm4340, %v4341, %v4333
        %v4343 = vsel %vm4336, %v4339, %v4342
        %v4344 = vsel %vm4334, nan, %v4343
        %v4345 = vand.u32 2147483647, %v403
        %vm4346 = vcmp.le.f32.partialorder %v4345, 0.7853982
        %vm4347 = vcmp.lt.s32.totalorder %v403, 0
        %v4348 = vand.u32 %v403, 2139095040
        %v4349 = vshrl.u32 %v4348, 23
        %v4350 = vsub.s32 %v4349, 127
        %v4351 = vand.u32 2147483647, %v403
        %v4352 = vand.u32 %v4351, 8388607
        %v4353 = vor.u32 %v4352, 8388608
        %v4354 = vsub.s32 0, %v4353
        %v4355 = vadd.s32 %v4350, 1
        %vm4356 = vcmp.gt.s32.totalorder %v4355, 0
        %v4357 = vsel %vm4356, %v4355, 0
        %v4358 = vshrl.u32 %v4357, 5
        %v4359 = vand.u32 %v4357, 31
        %v4360 = vsub.s32 32, %v4359
        %v4361 = vshrl.u32 683565275, %v4360
        %v4362 = vshll.u32 683565275, %v4359
        %v4363 = vshrl.u32 2475754826, %v4360
        %v4364 = vor.u32 %v4362, %v4363
        %v4365 = vshll.u32 2475754826, %v4359
        %v4366 = vshrl.u32 2131351028, %v4360
        %v4367 = vor.u32 %v4365, %v4366
        %v4368 = vshll.u32 2131351028, %v4359
        %v4369 = vshrl.u32 2102212464, %v4360
        %v4370 = vor.u32 %v4368, %v4369
        %v4371 = vshll.u32 2102212464, %v4359
        %v4372 = vshrl.u32 920167782, %v4360
        %v4373 = vor.u32 %v4371, %v4372
        %v4374 = vshll.u32 920167782, %v4359
        %v4375 = vshrl.u32 1326507024, %v4360
        %v4376 = vor.u32 %v4374, %v4375
        %vm4377 = vcmp.lt.s32.totalorder %v4358, 1
        %vm4378 = vcmp.lt.s32.totalorder %v4358, 2
        %vm4379 = vcmp.lt.s32.totalorder %v4358, 3
        %vm4380 = vcmp.lt.s32.totalorder %v4358, 4
        %v4381 = vsel %vm4377, %v4361, %v4364
        %v4382 = vsel %vm4380, %v4370, 2102212464
        %v4383 = vsel %vm4379, %v4367, %v4382
        %v4384 = vsel %vm4378, %v4381, %v4383
        %v4385 = vsel %vm4377, %v4364, %v4367
        %v4386 = vsel %vm4380, %v4373, 920167782
        %v4387 = vsel %vm4379, %v4370, %v4386
        %v4388 = vsel %vm4378, %v4385, %v4387
        %v4389 = vsel %vm4377, %v4367, %v4370
        %v4390 = vsel %vm4380, %v4376, 1326507024
        %v4391 = vsel %vm4379, %v4373, %v4390
        %v4392 = vsel %vm4378, %v4389, %v4391
        %v4393 = vshll.u32 %v4353, 8
        %v4394 = vmul.u32.u64.compose %v4393, %v4392
        %v4395 = vextract.low.u32 %v4394
        %v4396 = vextract.high.u32 %v4394
        %v4397 = vmul.u32.u64.compose %v4393, %v4388
        %v4398 = vextract.low.u32 %v4397
        %v4399 = vextract.high.u32 %v4397
        %v4400 = vmul.u32 %v4393, %v4384
        %v4401 = vadd.s32 %v4396, %v4398
        %vm4402 = vc.u32 %v4396, %v4398
        %v4403 = vadd.s32 %v4399, 1
        %v4404 = vsel %vm4402, %v4403, %v4399
        %v4405 = vadd.s32 %v4400, %v4404
        %v4406 = vadd.s32 %v4405, 536870912
        %v4407 = vshrl.u32 %v4406, 30
        %v4408 = vshll.u32 %v4407, 30
        %v4409 = vsub.s32 %v4405, %v4408
        %vm4410 = vcmp.lt.s32.totalorder %v4409, 0
        %v4411 = vsub.s32 0, %v4409
        %v4412 = vsel %vm4410, %v4411, %v4409
        %v4413 = vclz %v4412
        %v4414 = vsub.s32 %v4413, 2
        %vm4415 = vcmp.gt.s32.totalorder 0, %v4414
        %v4416 = vsel %vm4415, 0, %v4414
        %v4417 = vsub.s32 32, %v4416
        %v4418 = vshll.u32 %v4409, %v4416
        %v4419 = vshrl.u32 %v4401, %v4417
        %v4420 = vor.u32 %v4418, %v4419
        %v4421 = vsub.s32 4294967266, %v4416
        %v4422 = vadd.s32 %v4421, 127
        %v4423 = vshll.u32 %v4422, 23
        %v4424 = vor.u32 4788187, %v4423
        %v4425 = vand.u32 2147483647, %v4424
        %v4427 = vcvt.s32.f32 %v4420
        %v4428 = vmul.f32 %v4427, %v4425
        %v4429 = vxor.u32 %v4428, 2147483648
        %v4430 = vsel %vm4347, %v4429, %v4428
        %v4431 = vsub.s32 4, %v4407
        %v4432 = vsel %vm4347, %v4431, %v4407
        %v4433 = vsel %vm4346, %v403, %v4430
        %v4434 = vsel %vm4346, 0, %v4432
        %v4435 = vcosq.f32.pop %v4433
        %v4436 = vsinq.f32.pop %v4433
        %vm4437 = vweird.f32 %v403
        %v4438 = vand.u32 %v4434, 3
        %vm4439 = vcmp.lt.s32.totalorder %v4438, 2
        %vm4440 = vcmp.eq.s32.totalorder %v4438, 0
        %v4441 = vxor.u32 %v4436, 2147483648
        %v4442 = vsel %vm4440, %v4435, %v4441
        %vm4443 = vcmp.eq.s32.totalorder %v4438, 2
        %v4444 = vxor.u32 %v4435, 2147483648
        %v4445 = vsel %vm4443, %v4444, %v4436
        %v4446 = vsel %vm4439, %v4442, %v4445
        %v4447 = vsel %vm4437, nan, %v4446
        %v4448 = vand.u32 2147483647, %v404
        %vm4449 = vcmp.le.f32.partialorder %v4448, 0.7853982
        %vm4450 = vcmp.lt.s32.totalorder %v404, 0
        %v4451 = vand.u32 %v404, 2139095040
        %v4452 = vshrl.u32 %v4451, 23
        %v4453 = vsub.s32 %v4452, 127
        %v4454 = vand.u32 2147483647, %v404
        %v4455 = vand.u32 %v4454, 8388607
        %v4456 = vor.u32 %v4455, 8388608
        %v4457 = vsub.s32 0, %v4456
        %v4458 = vadd.s32 %v4453, 1
        %vm4459 = vcmp.gt.s32.totalorder %v4458, 0
        %v4460 = vsel %vm4459, %v4458, 0
        %v4461 = vshrl.u32 %v4460, 5
        %v4462 = vand.u32 %v4460, 31
        %v4463 = vsub.s32 32, %v4462
        %v4464 = vshrl.u32 683565275, %v4463
        %v4465 = vshll.u32 683565275, %v4462
        %v4466 = vshrl.u32 2475754826, %v4463
        %v4467 = vor.u32 %v4465, %v4466
        %v4468 = vshll.u32 2475754826, %v4462
        %v4469 = vshrl.u32 2131351028, %v4463
        %v4470 = vor.u32 %v4468, %v4469
        %v4471 = vshll.u32 2131351028, %v4462
        %v4472 = vshrl.u32 2102212464, %v4463
        %v4473 = vor.u32 %v4471, %v4472
        %v4474 = vshll.u32 2102212464, %v4462
        %v4475 = vshrl.u32 920167782, %v4463
        %v4476 = vor.u32 %v4474, %v4475
        %v4477 = vshll.u32 920167782, %v4462
        %v4478 = vshrl.u32 1326507024, %v4463
        %v4479 = vor.u32 %v4477, %v4478
        %vm4480 = vcmp.lt.s32.totalorder %v4461, 1
        %vm4481 = vcmp.lt.s32.totalorder %v4461, 2
        %vm4482 = vcmp.lt.s32.totalorder %v4461, 3
        %vm4483 = vcmp.lt.s32.totalorder %v4461, 4
        %v4484 = vsel %vm4480, %v4464, %v4467
        %v4485 = vsel %vm4483, %v4473, 2102212464
        %v4486 = vsel %vm4482, %v4470, %v4485
        %v4487 = vsel %vm4481, %v4484, %v4486
        %v4488 = vsel %vm4480, %v4467, %v4470
        %v4489 = vsel %vm4483, %v4476, 920167782
        %v4490 = vsel %vm4482, %v4473, %v4489
        %v4491 = vsel %vm4481, %v4488, %v4490
        %v4492 = vsel %vm4480, %v4470, %v4473
        %v4493 = vsel %vm4483, %v4479, 1326507024
        %v4494 = vsel %vm4482, %v4476, %v4493
        %v4495 = vsel %vm4481, %v4492, %v4494
        %v4496 = vshll.u32 %v4456, 8
        %v4497 = vmul.u32.u64.compose %v4496, %v4495
        %v4498 = vextract.low.u32 %v4497
        %v4499 = vextract.high.u32 %v4497
        %v4500 = vmul.u32.u64.compose %v4496, %v4491
        %v4501 = vextract.low.u32 %v4500
        %v4502 = vextract.high.u32 %v4500
        %v4503 = vmul.u32 %v4496, %v4487
        %v4504 = vadd.s32 %v4499, %v4501
        %vm4505 = vc.u32 %v4499, %v4501
        %v4506 = vadd.s32 %v4502, 1
        %v4507 = vsel %vm4505, %v4506, %v4502
        %v4508 = vadd.s32 %v4503, %v4507
        %v4509 = vadd.s32 %v4508, 536870912
        %v4510 = vshrl.u32 %v4509, 30
        %v4511 = vshll.u32 %v4510, 30
        %v4512 = vsub.s32 %v4508, %v4511
        %vm4513 = vcmp.lt.s32.totalorder %v4512, 0
        %v4514 = vsub.s32 0, %v4512
        %v4515 = vsel %vm4513, %v4514, %v4512
        %v4516 = vclz %v4515
        %v4517 = vsub.s32 %v4516, 2
        %vm4518 = vcmp.gt.s32.totalorder 0, %v4517
        %v4519 = vsel %vm4518, 0, %v4517
        %v4520 = vsub.s32 32, %v4519
        %v4521 = vshll.u32 %v4512, %v4519
        %v4522 = vshrl.u32 %v4504, %v4520
        %v4523 = vor.u32 %v4521, %v4522
        %v4524 = vsub.s32 4294967266, %v4519
        %v4525 = vadd.s32 %v4524, 127
        %v4526 = vshll.u32 %v4525, 23
        %v4527 = vor.u32 4788187, %v4526
        %v4528 = vand.u32 2147483647, %v4527
        %v4530 = vcvt.s32.f32 %v4523
        %v4531 = vmul.f32 %v4530, %v4528
        %v4532 = vxor.u32 %v4531, 2147483648
        %v4533 = vsel %vm4450, %v4532, %v4531
        %v4534 = vsub.s32 4, %v4510
        %v4535 = vsel %vm4450, %v4534, %v4510
        %v4536 = vsel %vm4449, %v404, %v4533
        %v4537 = vsel %vm4449, 0, %v4535
        %v4538 = vcosq.f32.pop %v4536
        %v4539 = vsinq.f32.pop %v4536
        %vm4540 = vweird.f32 %v404
        %v4541 = vand.u32 %v4537, 3
        %vm4542 = vcmp.lt.s32.totalorder %v4541, 2
        %vm4543 = vcmp.eq.s32.totalorder %v4541, 0
        %v4544 = vxor.u32 %v4539, 2147483648
        %v4545 = vsel %vm4543, %v4538, %v4544
        %vm4546 = vcmp.eq.s32.totalorder %v4541, 2
        %v4547 = vxor.u32 %v4538, 2147483648
        %v4548 = vsel %vm4546, %v4547, %v4539
        %v4549 = vsel %vm4542, %v4545, %v4548
        %v4550 = vsel %vm4540, nan, %v4549
        %v4551 = vand.u32 2147483647, %v405
        %vm4552 = vcmp.le.f32.partialorder %v4551, 0.7853982
        %vm4553 = vcmp.lt.s32.totalorder %v405, 0
        %v4554 = vand.u32 %v405, 2139095040
        %v4555 = vshrl.u32 %v4554, 23
        %v4556 = vsub.s32 %v4555, 127
        %v4557 = vand.u32 2147483647, %v405
        %v4558 = vand.u32 %v4557, 8388607
        %v4559 = vor.u32 %v4558, 8388608
        %v4560 = vsub.s32 0, %v4559
        %v4561 = vadd.s32 %v4556, 1
        %vm4562 = vcmp.gt.s32.totalorder %v4561, 0
        %v4563 = vsel %vm4562, %v4561, 0
        %v4564 = vshrl.u32 %v4563, 5
        %v4565 = vand.u32 %v4563, 31
        %v4566 = vsub.s32 32, %v4565
        %v4567 = vshrl.u32 683565275, %v4566
        %v4568 = vshll.u32 683565275, %v4565
        %v4569 = vshrl.u32 2475754826, %v4566
        %v4570 = vor.u32 %v4568, %v4569
        %v4571 = vshll.u32 2475754826, %v4565
        %v4572 = vshrl.u32 2131351028, %v4566
        %v4573 = vor.u32 %v4571, %v4572
        %v4574 = vshll.u32 2131351028, %v4565
        %v4575 = vshrl.u32 2102212464, %v4566
        %v4576 = vor.u32 %v4574, %v4575
        %v4577 = vshll.u32 2102212464, %v4565
        %v4578 = vshrl.u32 920167782, %v4566
        %v4579 = vor.u32 %v4577, %v4578
        %v4580 = vshll.u32 920167782, %v4565
        %v4581 = vshrl.u32 1326507024, %v4566
        %v4582 = vor.u32 %v4580, %v4581
        %vm4583 = vcmp.lt.s32.totalorder %v4564, 1
        %vm4584 = vcmp.lt.s32.totalorder %v4564, 2
        %vm4585 = vcmp.lt.s32.totalorder %v4564, 3
        %vm4586 = vcmp.lt.s32.totalorder %v4564, 4
        %v4587 = vsel %vm4583, %v4567, %v4570
        %v4588 = vsel %vm4586, %v4576, 2102212464
        %v4589 = vsel %vm4585, %v4573, %v4588
        %v4590 = vsel %vm4584, %v4587, %v4589
        %v4591 = vsel %vm4583, %v4570, %v4573
        %v4592 = vsel %vm4586, %v4579, 920167782
        %v4593 = vsel %vm4585, %v4576, %v4592
        %v4594 = vsel %vm4584, %v4591, %v4593
        %v4595 = vsel %vm4583, %v4573, %v4576
        %v4596 = vsel %vm4586, %v4582, 1326507024
        %v4597 = vsel %vm4585, %v4579, %v4596
        %v4598 = vsel %vm4584, %v4595, %v4597
        %v4599 = vshll.u32 %v4559, 8
        %v4600 = vmul.u32.u64.compose %v4599, %v4598
        %v4601 = vextract.low.u32 %v4600
        %v4602 = vextract.high.u32 %v4600
        %v4603 = vmul.u32.u64.compose %v4599, %v4594
        %v4604 = vextract.low.u32 %v4603
        %v4605 = vextract.high.u32 %v4603
        %v4606 = vmul.u32 %v4599, %v4590
        %v4607 = vadd.s32 %v4602, %v4604
        %vm4608 = vc.u32 %v4602, %v4604
        %v4609 = vadd.s32 %v4605, 1
        %v4610 = vsel %vm4608, %v4609, %v4605
        %v4611 = vadd.s32 %v4606, %v4610
        %v4612 = vadd.s32 %v4611, 536870912
        %v4613 = vshrl.u32 %v4612, 30
        %v4614 = vshll.u32 %v4613, 30
        %v4615 = vsub.s32 %v4611, %v4614
        %vm4616 = vcmp.lt.s32.totalorder %v4615, 0
        %v4617 = vsub.s32 0, %v4615
        %v4618 = vsel %vm4616, %v4617, %v4615
        %v4619 = vclz %v4618
        %v4620 = vsub.s32 %v4619, 2
        %vm4621 = vcmp.gt.s32.totalorder 0, %v4620
        %v4622 = vsel %vm4621, 0, %v4620
        %v4623 = vsub.s32 32, %v4622
        %v4624 = vshll.u32 %v4615, %v4622
        %v4625 = vshrl.u32 %v4607, %v4623
        %v4626 = vor.u32 %v4624, %v4625
        %v4627 = vsub.s32 4294967266, %v4622
        %v4628 = vadd.s32 %v4627, 127
        %v4629 = vshll.u32 %v4628, 23
        %v4630 = vor.u32 4788187, %v4629
        %v4631 = vand.u32 2147483647, %v4630
        %v4633 = vcvt.s32.f32 %v4626
        %v4634 = vmul.f32 %v4633, %v4631
        %v4635 = vxor.u32 %v4634, 2147483648
        %v4636 = vsel %vm4553, %v4635, %v4634
        %v4637 = vsub.s32 4, %v4613
        %v4638 = vsel %vm4553, %v4637, %v4613
        %v4639 = vsel %vm4552, %v405, %v4636
        %v4640 = vsel %vm4552, 0, %v4638
        %v4641 = vcosq.f32.pop %v4639
        %v4642 = vsinq.f32.pop %v4639
        %vm4643 = vweird.f32 %v405
        %v4644 = vand.u32 %v4640, 3
        %vm4645 = vcmp.lt.s32.totalorder %v4644, 2
        %vm4646 = vcmp.eq.s32.totalorder %v4644, 0
        %v4647 = vxor.u32 %v4642, 2147483648
        %v4648 = vsel %vm4646, %v4641, %v4647
        %vm4649 = vcmp.eq.s32.totalorder %v4644, 2
        %v4650 = vxor.u32 %v4641, 2147483648
        %v4651 = vsel %vm4649, %v4650, %v4642
        %v4652 = vsel %vm4645, %v4648, %v4651
        %v4653 = vsel %vm4643, nan, %v4652
        %v4654 = vand.u32 2147483647, %v406
        %vm4655 = vcmp.le.f32.partialorder %v4654, 0.7853982
        %vm4656 = vcmp.lt.s32.totalorder %v406, 0
        %v4657 = vand.u32 %v406, 2139095040
        %v4658 = vshrl.u32 %v4657, 23
        %v4659 = vsub.s32 %v4658, 127
        %v4660 = vand.u32 2147483647, %v406
        %v4661 = vand.u32 %v4660, 8388607
        %v4662 = vor.u32 %v4661, 8388608
        %v4663 = vsub.s32 0, %v4662
        %v4664 = vadd.s32 %v4659, 1
        %vm4665 = vcmp.gt.s32.totalorder %v4664, 0
        %v4666 = vsel %vm4665, %v4664, 0
        %v4667 = vshrl.u32 %v4666, 5
        %v4668 = vand.u32 %v4666, 31
        %v4669 = vsub.s32 32, %v4668
        %v4670 = vshrl.u32 683565275, %v4669
        %v4671 = vshll.u32 683565275, %v4668
        %v4672 = vshrl.u32 2475754826, %v4669
        %v4673 = vor.u32 %v4671, %v4672
        %v4674 = vshll.u32 2475754826, %v4668
        %v4675 = vshrl.u32 2131351028, %v4669
        %v4676 = vor.u32 %v4674, %v4675
        %v4677 = vshll.u32 2131351028, %v4668
        %v4678 = vshrl.u32 2102212464, %v4669
        %v4679 = vor.u32 %v4677, %v4678
        %v4680 = vshll.u32 2102212464, %v4668
        %v4681 = vshrl.u32 920167782, %v4669
        %v4682 = vor.u32 %v4680, %v4681
        %v4683 = vshll.u32 920167782, %v4668
        %v4684 = vshrl.u32 1326507024, %v4669
        %v4685 = vor.u32 %v4683, %v4684
        %vm4686 = vcmp.lt.s32.totalorder %v4667, 1
        %vm4687 = vcmp.lt.s32.totalorder %v4667, 2
        %vm4688 = vcmp.lt.s32.totalorder %v4667, 3
        %vm4689 = vcmp.lt.s32.totalorder %v4667, 4
        %v4690 = vsel %vm4686, %v4670, %v4673
        %v4691 = vsel %vm4689, %v4679, 2102212464
        %v4692 = vsel %vm4688, %v4676, %v4691
        %v4693 = vsel %vm4687, %v4690, %v4692
        %v4694 = vsel %vm4686, %v4673, %v4676
        %v4695 = vsel %vm4689, %v4682, 920167782
        %v4696 = vsel %vm4688, %v4679, %v4695
        %v4697 = vsel %vm4687, %v4694, %v4696
        %v4698 = vsel %vm4686, %v4676, %v4679
        %v4699 = vsel %vm4689, %v4685, 1326507024
        %v4700 = vsel %vm4688, %v4682, %v4699
        %v4701 = vsel %vm4687, %v4698, %v4700
        %v4702 = vshll.u32 %v4662, 8
        %v4703 = vmul.u32.u64.compose %v4702, %v4701
        %v4704 = vextract.low.u32 %v4703
        %v4705 = vextract.high.u32 %v4703
        %v4706 = vmul.u32.u64.compose %v4702, %v4697
        %v4707 = vextract.low.u32 %v4706
        %v4708 = vextract.high.u32 %v4706
        %v4709 = vmul.u32 %v4702, %v4693
        %v4710 = vadd.s32 %v4705, %v4707
        %vm4711 = vc.u32 %v4705, %v4707
        %v4712 = vadd.s32 %v4708, 1
        %v4713 = vsel %vm4711, %v4712, %v4708
        %v4714 = vadd.s32 %v4709, %v4713
        %v4715 = vadd.s32 %v4714, 536870912
        %v4716 = vshrl.u32 %v4715, 30
        %v4717 = vshll.u32 %v4716, 30
        %v4718 = vsub.s32 %v4714, %v4717
        %vm4719 = vcmp.lt.s32.totalorder %v4718, 0
        %v4720 = vsub.s32 0, %v4718
        %v4721 = vsel %vm4719, %v4720, %v4718
        %v4722 = vclz %v4721
        %v4723 = vsub.s32 %v4722, 2
        %vm4724 = vcmp.gt.s32.totalorder 0, %v4723
        %v4725 = vsel %vm4724, 0, %v4723
        %v4726 = vsub.s32 32, %v4725
        %v4727 = vshll.u32 %v4718, %v4725
        %v4728 = vshrl.u32 %v4710, %v4726
        %v4729 = vor.u32 %v4727, %v4728
        %v4730 = vsub.s32 4294967266, %v4725
        %v4731 = vadd.s32 %v4730, 127
        %v4732 = vshll.u32 %v4731, 23
        %v4733 = vor.u32 4788187, %v4732
        %v4734 = vand.u32 2147483647, %v4733
        %v4736 = vcvt.s32.f32 %v4729
        %v4737 = vmul.f32 %v4736, %v4734
        %v4738 = vxor.u32 %v4737, 2147483648
        %v4739 = vsel %vm4656, %v4738, %v4737
        %v4740 = vsub.s32 4, %v4716
        %v4741 = vsel %vm4656, %v4740, %v4716
        %v4742 = vsel %vm4655, %v406, %v4739
        %v4743 = vsel %vm4655, 0, %v4741
        %v4744 = vcosq.f32.pop %v4742
        %v4745 = vsinq.f32.pop %v4742
        %vm4746 = vweird.f32 %v406
        %v4747 = vand.u32 %v4743, 3
        %vm4748 = vcmp.lt.s32.totalorder %v4747, 2
        %vm4749 = vcmp.eq.s32.totalorder %v4747, 0
        %v4750 = vxor.u32 %v4745, 2147483648
        %v4751 = vsel %vm4749, %v4744, %v4750
        %vm4752 = vcmp.eq.s32.totalorder %v4747, 2
        %v4753 = vxor.u32 %v4744, 2147483648
        %v4754 = vsel %vm4752, %v4753, %v4745
        %v4755 = vsel %vm4748, %v4751, %v4754
        %v4756 = vsel %vm4746, nan, %v4755
        %v4757 = vand.u32 2147483647, %v407
        %vm4758 = vcmp.le.f32.partialorder %v4757, 0.7853982
        %vm4759 = vcmp.lt.s32.totalorder %v407, 0
        %v4760 = vand.u32 %v407, 2139095040
        %v4761 = vshrl.u32 %v4760, 23
        %v4762 = vsub.s32 %v4761, 127
        %v4763 = vand.u32 2147483647, %v407
        %v4764 = vand.u32 %v4763, 8388607
        %v4765 = vor.u32 %v4764, 8388608
        %v4766 = vsub.s32 0, %v4765
        %v4767 = vadd.s32 %v4762, 1
        %vm4768 = vcmp.gt.s32.totalorder %v4767, 0
        %v4769 = vsel %vm4768, %v4767, 0
        %v4770 = vshrl.u32 %v4769, 5
        %v4771 = vand.u32 %v4769, 31
        %v4772 = vsub.s32 32, %v4771
        %v4773 = vshrl.u32 683565275, %v4772
        %v4774 = vshll.u32 683565275, %v4771
        %v4775 = vshrl.u32 2475754826, %v4772
        %v4776 = vor.u32 %v4774, %v4775
        %v4777 = vshll.u32 2475754826, %v4771
        %v4778 = vshrl.u32 2131351028, %v4772
        %v4779 = vor.u32 %v4777, %v4778
        %v4780 = vshll.u32 2131351028, %v4771
        %v4781 = vshrl.u32 2102212464, %v4772
        %v4782 = vor.u32 %v4780, %v4781
        %v4783 = vshll.u32 2102212464, %v4771
        %v4784 = vshrl.u32 920167782, %v4772
        %v4785 = vor.u32 %v4783, %v4784
        %v4786 = vshll.u32 920167782, %v4771
        %v4787 = vshrl.u32 1326507024, %v4772
        %v4788 = vor.u32 %v4786, %v4787
        %vm4789 = vcmp.lt.s32.totalorder %v4770, 1
        %vm4790 = vcmp.lt.s32.totalorder %v4770, 2
        %vm4791 = vcmp.lt.s32.totalorder %v4770, 3
        %vm4792 = vcmp.lt.s32.totalorder %v4770, 4
        %v4793 = vsel %vm4789, %v4773, %v4776
        %v4794 = vsel %vm4792, %v4782, 2102212464
        %v4795 = vsel %vm4791, %v4779, %v4794
        %v4796 = vsel %vm4790, %v4793, %v4795
        %v4797 = vsel %vm4789, %v4776, %v4779
        %v4798 = vsel %vm4792, %v4785, 920167782
        %v4799 = vsel %vm4791, %v4782, %v4798
        %v4800 = vsel %vm4790, %v4797, %v4799
        %v4801 = vsel %vm4789, %v4779, %v4782
        %v4802 = vsel %vm4792, %v4788, 1326507024
        %v4803 = vsel %vm4791, %v4785, %v4802
        %v4804 = vsel %vm4790, %v4801, %v4803
        %v4805 = vshll.u32 %v4765, 8
        %v4806 = vmul.u32.u64.compose %v4805, %v4804
        %v4807 = vextract.low.u32 %v4806
        %v4808 = vextract.high.u32 %v4806
        %v4809 = vmul.u32.u64.compose %v4805, %v4800
        %v4810 = vextract.low.u32 %v4809
        %v4811 = vextract.high.u32 %v4809
        %v4812 = vmul.u32 %v4805, %v4796
        %v4813 = vadd.s32 %v4808, %v4810
        %vm4814 = vc.u32 %v4808, %v4810
        %v4815 = vadd.s32 %v4811, 1
        %v4816 = vsel %vm4814, %v4815, %v4811
        %v4817 = vadd.s32 %v4812, %v4816
        %v4818 = vadd.s32 %v4817, 536870912
        %v4819 = vshrl.u32 %v4818, 30
        %v4820 = vshll.u32 %v4819, 30
        %v4821 = vsub.s32 %v4817, %v4820
        %vm4822 = vcmp.lt.s32.totalorder %v4821, 0
        %v4823 = vsub.s32 0, %v4821
        %v4824 = vsel %vm4822, %v4823, %v4821
        %v4825 = vclz %v4824
        %v4826 = vsub.s32 %v4825, 2
        %vm4827 = vcmp.gt.s32.totalorder 0, %v4826
        %v4828 = vsel %vm4827, 0, %v4826
        %v4829 = vsub.s32 32, %v4828
        %v4830 = vshll.u32 %v4821, %v4828
        %v4831 = vshrl.u32 %v4813, %v4829
        %v4832 = vor.u32 %v4830, %v4831
        %v4833 = vsub.s32 4294967266, %v4828
        %v4834 = vadd.s32 %v4833, 127
        %v4835 = vshll.u32 %v4834, 23
        %v4836 = vor.u32 4788187, %v4835
        %v4837 = vand.u32 2147483647, %v4836
        %v4839 = vcvt.s32.f32 %v4832
        %v4840 = vmul.f32 %v4839, %v4837
        %v4841 = vxor.u32 %v4840, 2147483648
        %v4842 = vsel %vm4759, %v4841, %v4840
        %v4843 = vsub.s32 4, %v4819
        %v4844 = vsel %vm4759, %v4843, %v4819
        %v4845 = vsel %vm4758, %v407, %v4842
        %v4846 = vsel %vm4758, 0, %v4844
        %v4847 = vcosq.f32.pop %v4845
        %v4848 = vsinq.f32.pop %v4845
        %vm4849 = vweird.f32 %v407
        %v4850 = vand.u32 %v4846, 3
        %vm4851 = vcmp.lt.s32.totalorder %v4850, 2
        %vm4852 = vcmp.eq.s32.totalorder %v4850, 0
        %v4853 = vxor.u32 %v4848, 2147483648
        %v4854 = vsel %vm4852, %v4847, %v4853
        %vm4855 = vcmp.eq.s32.totalorder %v4850, 2
        %v4856 = vxor.u32 %v4847, 2147483648
        %v4857 = vsel %vm4855, %v4856, %v4848
        %v4858 = vsel %vm4851, %v4854, %v4857
        %v4859 = vsel %vm4849, nan, %v4858
        %v4860 = vand.u32 2147483647, %v408
        %vm4861 = vcmp.le.f32.partialorder %v4860, 0.7853982
        %vm4862 = vcmp.lt.s32.totalorder %v408, 0
        %v4863 = vand.u32 %v408, 2139095040
        %v4864 = vshrl.u32 %v4863, 23
        %v4865 = vsub.s32 %v4864, 127
        %v4866 = vand.u32 2147483647, %v408
        %v4867 = vand.u32 %v4866, 8388607
        %v4868 = vor.u32 %v4867, 8388608
        %v4869 = vsub.s32 0, %v4868
        %v4870 = vadd.s32 %v4865, 1
        %vm4871 = vcmp.gt.s32.totalorder %v4870, 0
        %v4872 = vsel %vm4871, %v4870, 0
        %v4873 = vshrl.u32 %v4872, 5
        %v4874 = vand.u32 %v4872, 31
        %v4875 = vsub.s32 32, %v4874
        %v4876 = vshrl.u32 683565275, %v4875
        %v4877 = vshll.u32 683565275, %v4874
        %v4878 = vshrl.u32 2475754826, %v4875
        %v4879 = vor.u32 %v4877, %v4878
        %v4880 = vshll.u32 2475754826, %v4874
        %v4881 = vshrl.u32 2131351028, %v4875
        %v4882 = vor.u32 %v4880, %v4881
        %v4883 = vshll.u32 2131351028, %v4874
        %v4884 = vshrl.u32 2102212464, %v4875
        %v4885 = vor.u32 %v4883, %v4884
        %v4886 = vshll.u32 2102212464, %v4874
        %v4887 = vshrl.u32 920167782, %v4875
        %v4888 = vor.u32 %v4886, %v4887
        %v4889 = vshll.u32 920167782, %v4874
        %v4890 = vshrl.u32 1326507024, %v4875
        %v4891 = vor.u32 %v4889, %v4890
        %vm4892 = vcmp.lt.s32.totalorder %v4873, 1
        %vm4893 = vcmp.lt.s32.totalorder %v4873, 2
        %vm4894 = vcmp.lt.s32.totalorder %v4873, 3
        %vm4895 = vcmp.lt.s32.totalorder %v4873, 4
        %v4896 = vsel %vm4892, %v4876, %v4879
        %v4897 = vsel %vm4895, %v4885, 2102212464
        %v4898 = vsel %vm4894, %v4882, %v4897
        %v4899 = vsel %vm4893, %v4896, %v4898
        %v4900 = vsel %vm4892, %v4879, %v4882
        %v4901 = vsel %vm4895, %v4888, 920167782
        %v4902 = vsel %vm4894, %v4885, %v4901
        %v4903 = vsel %vm4893, %v4900, %v4902
        %v4904 = vsel %vm4892, %v4882, %v4885
        %v4905 = vsel %vm4895, %v4891, 1326507024
        %v4906 = vsel %vm4894, %v4888, %v4905
        %v4907 = vsel %vm4893, %v4904, %v4906
        %v4908 = vshll.u32 %v4868, 8
        %v4909 = vmul.u32.u64.compose %v4908, %v4907
        %v4910 = vextract.low.u32 %v4909
        %v4911 = vextract.high.u32 %v4909
        %v4912 = vmul.u32.u64.compose %v4908, %v4903
        %v4913 = vextract.low.u32 %v4912
        %v4914 = vextract.high.u32 %v4912
        %v4915 = vmul.u32 %v4908, %v4899
        %v4916 = vadd.s32 %v4911, %v4913
        %vm4917 = vc.u32 %v4911, %v4913
        %v4918 = vadd.s32 %v4914, 1
        %v4919 = vsel %vm4917, %v4918, %v4914
        %v4920 = vadd.s32 %v4915, %v4919
        %v4921 = vadd.s32 %v4920, 536870912
        %v4922 = vshrl.u32 %v4921, 30
        %v4923 = vshll.u32 %v4922, 30
        %v4924 = vsub.s32 %v4920, %v4923
        %vm4925 = vcmp.lt.s32.totalorder %v4924, 0
        %v4926 = vsub.s32 0, %v4924
        %v4927 = vsel %vm4925, %v4926, %v4924
        %v4928 = vclz %v4927
        %v4929 = vsub.s32 %v4928, 2
        %vm4930 = vcmp.gt.s32.totalorder 0, %v4929
        %v4931 = vsel %vm4930, 0, %v4929
        %v4932 = vsub.s32 32, %v4931
        %v4933 = vshll.u32 %v4924, %v4931
        %v4934 = vshrl.u32 %v4916, %v4932
        %v4935 = vor.u32 %v4933, %v4934
        %v4936 = vsub.s32 4294967266, %v4931
        %v4937 = vadd.s32 %v4936, 127
        %v4938 = vshll.u32 %v4937, 23
        %v4939 = vor.u32 4788187, %v4938
        %v4940 = vand.u32 2147483647, %v4939
        %v4942 = vcvt.s32.f32 %v4935
        %v4943 = vmul.f32 %v4942, %v4940
        %v4944 = vxor.u32 %v4943, 2147483648
        %v4945 = vsel %vm4862, %v4944, %v4943
        %v4946 = vsub.s32 4, %v4922
        %v4947 = vsel %vm4862, %v4946, %v4922
        %v4948 = vsel %vm4861, %v408, %v4945
        %v4949 = vsel %vm4861, 0, %v4947
        %v4950 = vcosq.f32.pop %v4948
        %v4951 = vsinq.f32.pop %v4948
        %vm4952 = vweird.f32 %v408
        %v4953 = vand.u32 %v4949, 3
        %vm4954 = vcmp.lt.s32.totalorder %v4953, 2
        %vm4955 = vcmp.eq.s32.totalorder %v4953, 0
        %v4956 = vxor.u32 %v4951, 2147483648
        %v4957 = vsel %vm4955, %v4950, %v4956
        %vm4958 = vcmp.eq.s32.totalorder %v4953, 2
        %v4959 = vxor.u32 %v4950, 2147483648
        %v4960 = vsel %vm4958, %v4959, %v4951
        %v4961 = vsel %vm4954, %v4957, %v4960
        %v4962 = vsel %vm4952, nan, %v4961
        %4985 = vrot.lane.b32.xlu0 %v2799, 52
        %v4986 = vpop.permute.xlu0 %4985
        %4987 = vrot.lane.b32.xlu0 %v2902, 52
        %v4988 = vpop.permute.xlu0 %4987
        %4989 = vrot.lane.b32.xlu0 %v3005, 52
        %v4990 = vpop.permute.xlu0 %4989
        %4991 = vrot.lane.b32.xlu0 %v3108, 52
        %v4992 = vpop.permute.xlu0 %4991
        %4993 = vrot.lane.b32.xlu0 %v3211, 52
        %v4994 = vpop.permute.xlu0 %4993
        %4995 = vrot.lane.b32.xlu0 %v3314, 52
        %v4996 = vpop.permute.xlu0 %4995
        %4997 = vrot.lane.b32.xlu0 %v3417, 52
        %v4998 = vpop.permute.xlu0 %4997
        %4999 = vrot.lane.b32.xlu0 %v3520, 52
        %v5000 = vpop.permute.xlu0 %4999
        %5001 = vrot.lane.b32.xlu0 %v3623, 52
        %v5002 = vpop.permute.xlu0 %5001
        %5003 = vrot.lane.b32.xlu0 %v3726, 52
        %v5004 = vpop.permute.xlu0 %5003
        %5005 = vrot.lane.b32.xlu0 %v3829, 52
        %v5006 = vpop.permute.xlu0 %5005
        %5007 = vrot.lane.b32.xlu0 %v3932, 52
        %v5008 = vpop.permute.xlu0 %5007
        %5009 = vrot.lane.b32.xlu0 %v4035, 52
        %v5010 = vpop.permute.xlu0 %5009
        %5011 = vrot.lane.b32.xlu0 %v4138, 52
        %v5012 = vpop.permute.xlu0 %5011
        %5013 = vrot.lane.b32.xlu0 %v4241, 52
        %v5014 = vpop.permute.xlu0 %5013
        %5015 = vrot.lane.b32.xlu0 %v4344, 52
        %v5016 = vpop.permute.xlu0 %5015
        %5017 = vrot.lane.b32.xlu0 %v4447, 52
        %v5018 = vpop.permute.xlu0 %5017
        %5019 = vrot.lane.b32.xlu0 %v4550, 52
        %v5020 = vpop.permute.xlu0 %5019
        %5021 = vrot.lane.b32.xlu0 %v4653, 52
        %v5022 = vpop.permute.xlu0 %5021
        %5023 = vrot.lane.b32.xlu0 %v4756, 52
        %v5024 = vpop.permute.xlu0 %5023
        %5025 = vrot.lane.b32.xlu0 %v4859, 52
        %v5026 = vpop.permute.xlu0 %5025
        %5027 = vrot.lane.b32.xlu0 %v4962, 52
        %v5028 = vpop.permute.xlu0 %5027
        %vm5029 = vcmask 424960
        %v5030 = vsel %vm5029, %v4986, %v4988
        %v5031 = vsel %vm5029, %v4990, %v4992
        %v5032 = vsel %vm5029, %v4994, %v4996
        %v5033 = vsel %vm5029, %v4998, %v5000
        %v5034 = vsel %vm5029, %v5002, %v5004
        %v5035 = vsel %vm5029, %v5006, %v5008
        %v5036 = vsel %vm5029, %v5010, %v5012
        %v5037 = vsel %vm5029, %v5014, %v5016
        %v5038 = vsel %vm5029, %v5018, %v5020
        %v5039 = vsel %vm5029, %v5022, %v5024
        %v5040 = vsel %vm5029, %v5026, %v5028
        %v5063 = vsel %vm5029, %v616, %v4986
        %v5064 = vsel %vm5029, %v824, %v4990
        %v5065 = vsel %vm5029, %v1032, %v4994
        %v5066 = vsel %vm5029, %v1240, %v4998
        %v5067 = vsel %vm5029, %v1448, %v5002
        %v5068 = vsel %vm5029, %v1656, %v5006
        %v5069 = vsel %vm5029, %v1864, %v5010
        %v5070 = vsel %vm5029, %v2072, %v5014
        %v5071 = vsel %vm5029, %v2280, %v5018
        %v5072 = vsel %vm5029, %v2488, %v5022
        %v5073 = vsel %vm5029, %v2696, %v5026
        %5074 = vst [vmem:[%s149] sm:$0xff] %v512
        %5075 = vst [vmem:[%s149 + $0x8] sm:$0xff] %v5063
        %vm5076 = vcmask 850944
        %5077 = vst.msk [vmem:[%s149 + $0x10] sm:$0xff] %vm5076, %v5030
        %5078 = vst [vmem:[%s149 + $0x18] sm:$0xff] %v720
        %5079 = vst [vmem:[%s149 + $0x20] sm:$0xff] %v5064
        %5080 = vst.msk [vmem:[%s149 + $0x28] sm:$0xff] %vm5076, %v5031
        %5081 = vst [vmem:[%s149 + $0x30] sm:$0xff] %v928
        %5082 = vst [vmem:[%s149 + $0x38] sm:$0xff] %v5065
        %5083 = vst.msk [vmem:[%s149 + $0x40] sm:$0xff] %vm5076, %v5032
        %5084 = vst [vmem:[%s149 + $0x48] sm:$0xff] %v1136
        %5085 = vst [vmem:[%s149 + $0x50] sm:$0xff] %v5066
        %5086 = vst.msk [vmem:[%s149 + $0x58] sm:$0xff] %vm5076, %v5033
        %5087 = vst [vmem:[%s149 + $0x60] sm:$0xff] %v1344
        %5088 = vst [vmem:[%s149 + $0x68] sm:$0xff] %v5067
        %5089 = vst.msk [vmem:[%s149 + $0x70] sm:$0xff] %vm5076, %v5034
        %5090 = vst [vmem:[%s149 + $0x78] sm:$0xff] %v1552
        %5091 = vst [vmem:[%s149 + $0x80] sm:$0xff] %v5068
        %5092 = vst.msk [vmem:[%s149 + $0x88] sm:$0xff] %vm5076, %v5035
        %5093 = vst [vmem:[%s149 + $0x90] sm:$0xff] %v1760
        %5094 = vst [vmem:[%s149 + $0x98] sm:$0xff] %v5069
        %5095 = vst.msk [vmem:[%s149 + $0xa0] sm:$0xff] %vm5076, %v5036
        %5096 = vst [vmem:[%s149 + $0xa8] sm:$0xff] %v1968
        %5097 = vst [vmem:[%s149 + $0xb0] sm:$0xff] %v5070
        %5098 = vst.msk [vmem:[%s149 + $0xb8] sm:$0xff] %vm5076, %v5037
        %5099 = vst [vmem:[%s149 + $0xc0] sm:$0xff] %v2176
        %5100 = vst [vmem:[%s149 + $0xc8] sm:$0xff] %v5071
        %5101 = vst.msk [vmem:[%s149 + $0xd0] sm:$0xff] %vm5076, %v5038
        %5102 = vst [vmem:[%s149 + $0xd8] sm:$0xff] %v2384
        %5103 = vst [vmem:[%s149 + $0xe0] sm:$0xff] %v5072
        %5104 = vst.msk [vmem:[%s149 + $0xe8] sm:$0xff] %vm5076, %v5039
        %5105 = vst [vmem:[%s149 + $0xf0] sm:$0xff] %v2592
        %5106 = vst [vmem:[%s149 + $0xf8] sm:$0xff] %v5073
        %5107 = vst.msk [vmem:[%s149 + $0x100] sm:$0xff] %vm5076, %v5040
        %s5108 = sand.u32 %s71, 1
        %s5109 = scalar_lea.sflag [#allocation3], %s5108
        %s5110 = sand.u32 %s71, 1
        %s5111 = smul.addr %s5110, 264
        %s5112 = scalar_lea.vmem [#allocation2], %s5111
        // Predicated region
        $region29: #{tpu_custom_call.1} parent=27 // pred_check
          %p5113 = pneg %p81
        $region30: #{tpu_custom_call.1} parent=27 // pred_check_branch
          %5115 = sbr.rel (%p5113) target = $region32
        $region31: #{tpu_custom_call.1} parent=27 // pred_region
          %s5116 = smul.u32 11, %s16
          %s5117 = ssub.s32 42, %s5116
          %p5118 = scmp.lt.s32.totalorder %s5117, 11
          %s5119 = scalar_select %p5118, %s5117, 11
          %s5120 = smul.u32 128, %s5119
          %s5121 = smul.u32 %s5120, 3
          %s5123 = ssub.s32 4224, %s5121
          %5124 = vsyncadd %s5109, %s5123
          %p5125 = scmp.ne.s32.totalorder 0, %s5121
          %s5126 = smul.addr %s5116, 3
          %s5127 = smul.addr %s5126, 128
          %s5128 = scalar_lea.hbm %s2, %s5127
          %s5129 = smul.u32 24, %s5119
          %s5130 = sshll.u32 %s5112, 4
          %s5131 = int_to_ptr.vmem [resolvable:$true] %s5130
          %s5132 = sshll.u32 %s5129, 4
          %5136 = dma.vmem_to_hbm [thread:$0]  (%p5125), %s5131, %s5132, %s5128, %s5109, 384, 384, 24
        $region32: #{tpu_custom_call.1} parent=27 // pred_fallthru
          _
      $region28: #{tpu_custom_call.1} parent=5 // pred_fallthru
        _
      %p5137 = scmp.le.s32.totalorder 2, %s11
      // Predicated region
      $region33: #{tpu_custom_call.1} parent=5 // pred_check
        %p5138 = pneg %p5137
      $region34: #{tpu_custom_call.1} parent=5 // pred_check_branch
        %5140 = sbr.rel (%p5138) target = $region36
      $region35: #{tpu_custom_call.1} parent=5 // pred_region
        %s5141 = ssub.s32 %s11, 2
        // Predicated region
        $region37: #{tpu_custom_call.1} parent=35 // pred_check
          %p5142 = pneg %p87
        $region38: #{tpu_custom_call.1} parent=35 // pred_check_branch
          %5144 = sbr.rel (%p5142) target = $region40
        $region39: #{tpu_custom_call.1} parent=35 // pred_region
          %s5145 = sand.u32 %s72, 1
          %s5146 = scalar_lea.sflag [#allocation3], %s5145
          %s5147 = sand.u32 %s72, 1
          %s5148 = smul.addr %s5147, 264
          %s5149 = scalar_lea.vmem [#allocation2], %s5148
          %5150 = dma.done %s5146, 4224
        $region40: #{tpu_custom_call.1} parent=35 // pred_fallthru
          _
      $region36: #{tpu_custom_call.1} parent=5 // pred_fallthru
        _
    $region6: #{tpu_custom_call.1} parent=1 // loop_footer
      %s15 = sadd.s32 1, %s11
    $region7: #{tpu_custom_call.1} parent=1 // loop_footer_branch
      %10 = sbr.rel target = $region3
    $region8: #{tpu_custom_call.1} parent=1 // loop_exit
      _
    %5151 = vsyncpa [#allocation3], 1
    %s5152 = scalar_lea.sflag [#allocation3], 1
    %5153 = vsyncpa %s5152, 1

</llo_original>
